<compile_context>
chip_gen: v7x
topology: tpu7x:2x2x1
jax: 0.10.0
libtpu: 0.0.40
codegen_flags: <defaults>
</compile_context>

<pallas_src>
import functools

import jax
import jax.numpy as jnp
from jax.experimental import pallas as pl
from jax.experimental.pallas import tpu as pltpu


# ----------------------------- dims -----------------------------------------
U_DIM, P_DIM = 64, 64
Y_DIM = 1682
H1, H2, H3, H4 = 100, 100, 50, 30


def _round_up(x, m):
    return ((x + m - 1) // m) * m


def _cdiv(a, b):
    return (a + b - 1) // b


def _vmem_capacity_bytes():
    """Chip VMEM capacity; conservative 64 MiB (v7x) fallback."""
    try:
        return int(pltpu.get_tpu_info().vmem_capacity_bytes)
    except Exception:
        return 64 << 20


# ----------------------------- kernel body ----------------------------------
def dve_kernel(u_ref, p_ref, y_ref,
               w1u_ref, w1p_ref, b1_ref,
               w2_ref, b2_ref,
               w3_ref, b3_ref,
               w4z_ref, w4y_ref, b4_ref,
               w5_ref, b5_ref,
               o_ref):
    f32 = jnp.float32

    # fc1: concat(user, pos) @ W1 + b1  ==  user @ W1u + pos @ W1p + b1
    h = (jnp.dot(u_ref[...], w1u_ref[...], preferred_element_type=f32)
         + jnp.dot(p_ref[...], w1p_ref[...], preferred_element_type=f32)
         + b1_ref[...])
    h = jnp.maximum(h, 0.0)

    # fc2
    h = jnp.dot(h, w2_ref[...], preferred_element_type=f32) + b2_ref[...]
    h = jnp.maximum(h, 0.0)

    # fc3
    h = jnp.dot(h, w3_ref[...], preferred_element_type=f32) + b3_ref[...]
    h = jnp.maximum(h, 0.0)

    # fc4[0]: concat(z, y_hat) @ W4 + b4  ==  z @ W4z + y_hat @ W4y + b4
    #   (y_ref / w4y_ref may be bf16; accumulation is forced to f32 on the MXU)
    h = (jnp.dot(h, w4z_ref[...], preferred_element_type=f32)
         + jnp.dot(y_ref[...], w4y_ref[...], preferred_element_type=f32)
         + b4_ref[...])
    h = jnp.maximum(h, 0.0)

    # fc4[2]: final Linear(30 -> 1) + sigmoid
    logit = jnp.dot(h, w5_ref[...], preferred_element_type=f32) + b5_ref[...]
    o_ref[...] = jax.nn.sigmoid(logit)


# ----------------------------- wrapper ---------------------------------------
@functools.partial(jax.jit, static_argnames=("block_b",))
def data_value_evaluator_forward(user_emb, pos_emb, y_hat_input, params,
                                 block_b=None):
    B = user_emb.shape[0]
    (w1u, w1p, b1, w2, b2, w3, b3, w4z, w4y, b4, w5, b5) = params

    # y_hat is streamed at the dtype the producer emitted (bf16 recommended);
    # no pad / cast / copy pass over the big array.  Only the tiny W4y
    # (1682 x 30 ~ 200 KB) is cast to match.
    y_dtype = y_hat_input.dtype
    w4y_s = w4y if w4y.dtype == y_dtype else w4y.astype(y_dtype)
    y_bpe = jnp.dtype(y_dtype).itemsize

    # ---- batch tile selection (static: shapes/dtypes are static under jit) ---
    if block_b is None:
        # >= 2 tiles when possible so v7x's two TensorCores both get work;
        # tile rows are multiples of 128 (lane/sublane friendly), <= 1024.
        block_b = min(1024, _round_up(_cdiv(B, 2), 128))
    # multiple of 16 so bf16 tiles pack sublanes without relayout
    block_b = max(16, _round_up(min(block_b, _round_up(B, 16)), 16))

    # ---- VMEM budget from the actual tile, clamped to chip capacity ---------
    def _need(bb):
        stream_row_bytes = (U_DIM + P_DIM + 1) * 4 + Y_DIM * y_bpe
        weight_bytes = (4 * ((U_DIM + P_DIM) * H1 + H1 + H1 * H2 + H2
                             + H2 * H3 + H3 + H3 * H4 + H4 + H4 + 1)
                        + Y_DIM * H4 * y_bpe)
        # 2x: double-buffered pipeline; + headroom for activations / scratch.
        return 2 * (bb * stream_row_bytes + weight_bytes) + (8 << 20)

    vmem_cap = _vmem_capacity_bytes()
    cap = max(32 << 20, vmem_cap - (16 << 20))
    while _need(block_b) > cap and block_b > 128:
        block_b = _round_up(block_b // 2, 16)
    vmem_limit = int(min(max(_need(block_b), 32 << 20), cap))

    # Partial last tile (B not a multiple of block_b) is handled by Pallas:
    # out-of-bounds output rows are masked, pad rows never reach the result.
    grid = (_cdiv(B, block_b),)

    def batched(feat):
        # tile over the batch axis only; last dim = full array dim (legal,
        # no 128-alignment needed, no feature padding)
        return pl.BlockSpec((block_b, feat), lambda i: (i, 0))

    def replicated(shape):
        # full weight / bias block, identical for every batch tile
        return pl.BlockSpec(shape, lambda i: (0, 0))

    out = pl.pallas_call(
        dve_kernel,
        out_shape=jax.ShapeDtypeStruct((B, 1), jnp.float32),
        grid_spec=pltpu.PrefetchScalarGridSpec(
            num_scalar_prefetch=0,
            grid=grid,
            in_specs=[
                batched(U_DIM),             # user_emb
                batched(P_DIM),             # pos_emb
                batched(Y_DIM),             # y_hat (streamed as-is, maybe bf16)
                replicated(w1u.shape),      # W1 (user half)
                replicated(w1p.shape),      # W1 (pos half)
                replicated(b1.shape),       # b1
                replicated(w2.shape),       # W2
                replicated(b2.shape),       # b2
                replicated(w3.shape),       # W3
                replicated(b3.shape),       # b3
                replicated(w4z.shape),      # W4 (z half)
                replicated(w4y_s.shape),    # W4 (y_hat half)
                replicated(b4.shape),       # b4
                replicated(w5.shape),       # W5
                replicated(b5.shape),       # b5
            ],
            out_specs=pl.BlockSpec((block_b, 1), lambda i: (i, 0)),
        ),
        compiler_params=pltpu.CompilerParams(
            dimension_semantics=("parallel",),
            vmem_limit_bytes=vmem_limit),
    )(user_emb, pos_emb, y_hat_input,
      w1u, w1p, b1, w2, b2, w3, b3, w4z, w4y_s, b4, w5, b5)

    # torch: sigmoid(dve).squeeze()  -> shape (B,)
    return jnp.squeeze(out, axis=-1)


# ----------------------------- param init ------------------------------------
def init_params(key):
    """Deterministic init mirroring nn.Linear default (U[-1/sqrt(fan_in), ...])."""
    def linear(key, fan_in, fan_out):
        kw, kb = jax.random.split(key)
        bound = 1.0 / jnp.sqrt(fan_in)
        w = jax.random.uniform(kw, (fan_in, fan_out), jnp.float32, -bound, bound)
        b = jax.random.uniform(kb, (1, fan_out), jnp.float32, -bound, bound)
        return w, b

    k1, k2, k3, k4, k5 = jax.random.split(key, 5)
    w1, b1 = linear(k1, U_DIM + P_DIM, H1)   # fc1: Linear(64+64, 100)
    w2, b2 = linear(k2, H1, H2)              # fc2
    w3, b3 = linear(k3, H2, H3)              # fc3
    w4, b4 = linear(k4, H3 + Y_DIM, H4)      # fc4[0]
    w5, b5 = linear(k5, H4, 1)               # fc4[2]

    w1u, w1p = w1[:U_DIM], w1[U_DIM:]        # split W1 along the concat axis
    w4z, w4y = w4[:H3], w4[H3:]              # split W4 along the concat axis
    return (w1u, w1p, b1, w2, b2, w3, b3, w4z, w4y, b4, w5, b5)


# ----------------------------- pure-JAX reference -----------------------------
def reference_forward(user_emb, pos_emb, y_hat_input, params):
    (w1u, w1p, b1, w2, b2, w3, b3, w4z, w4y, b4, w5, b5) = params
    w1 = jnp.concatenate([w1u, w1p], axis=0)
    w4 = jnp.concatenate([w4z, w4y], axis=0)
    z = jnp.concatenate([user_emb, pos_emb], axis=1)
    z = jax.nn.relu(z @ w1 + b1)
    z = jax.nn.relu(z @ w2 + b2)
    z = jax.nn.relu(z @ w3 + b3)
    cat = jnp.concatenate([z, y_hat_input.astype(jnp.float32)], axis=1)
    dve = jax.nn.relu(cat @ w4 + b4) @ w5 + b5
    return jnp.squeeze(jax.nn.sigmoid(dve), axis=-1)


# ----------------------------- main -------------------------------------------
if __name__ == "__main__":
    key = jax.random.PRNGKey(0)
    k_params, k_u, k_p, k_y = jax.random.split(key, 4)

    # B deliberately NOT a multiple of the batch tile -> exercises the ragged
    # (partial last block) path with no explicit batch padding.
    B = 300
    params = init_params(k_params)
    user_emb = jax.random.normal(k_u, (B, U_DIM), jnp.float32)
    pos_emb = jax.random.normal(k_p, (B, P_DIM), jnp.float32)
    y_hat_f32 = jax.random.normal(k_y, (B, Y_DIM), jnp.float32)

    ref = reference_forward(user_emb, pos_emb, y_hat_f32, params)

    # f32 y_hat stream: bit-for-bit semantics of the original module,
    # auto-chosen block_b (>= 2 tiles -> both v7x TensorCores busy).
    out_f32 = jax.block_until_ready(
        data_value_evaluator_forward(user_emb, pos_emb, y_hat_f32, params))
    assert out_f32.shape == (B,)
    assert jnp.allclose(out_f32, ref, atol=1e-5, rtol=1e-5)

    # explicit small tile -> 3 grid steps including a ragged last tile
    out_small = jax.block_until_ready(
        data_value_evaluator_forward(user_emb, pos_emb, y_hat_f32, params,
                                     block_b=128))
    assert out_small.shape == (B,)
    assert jnp.allclose(out_small, ref, atol=1e-5, rtol=1e-5)

    # bf16 y_hat as emitted by an upstream producer: halves the dominant HBM
    # stream; accumulation stays f32 on the MXU.
    y_hat_bf16 = y_hat_f32.astype(jnp.bfloat16)
    out_bf16 = jax.block_until_ready(
        data_value_evaluator_forward(user_emb, pos_emb, y_hat_bf16, params))
    assert out_bf16.shape == (B,)
    assert jnp.allclose(out_bf16, ref, atol=2e-2, rtol=0.0)

    print("KERNEL_OK")
</pallas_src>

<mosaic_0001>
module attributes {stable_mosaic.version = 11 : i64} {
  func.func @dve_kernel(%arg0: i32, %arg1: memref<256x64xf32, #tpu.memory_space<vmem>>, %arg2: memref<256x64xf32, #tpu.memory_space<vmem>>, %arg3: memref<256x1682xf32, #tpu.memory_space<vmem>>, %arg4: memref<64x100xf32, #tpu.memory_space<vmem>>, %arg5: memref<64x100xf32, #tpu.memory_space<vmem>>, %arg6: memref<1x100xf32, #tpu.memory_space<vmem>>, %arg7: memref<100x100xf32, #tpu.memory_space<vmem>>, %arg8: memref<1x100xf32, #tpu.memory_space<vmem>>, %arg9: memref<100x50xf32, #tpu.memory_space<vmem>>, %arg10: memref<1x50xf32, #tpu.memory_space<vmem>>, %arg11: memref<50x30xf32, #tpu.memory_space<vmem>>, %arg12: memref<1682x30xf32, #tpu.memory_space<vmem>>, %arg13: memref<1x30xf32, #tpu.memory_space<vmem>>, %arg14: memref<30x1xf32, #tpu.memory_space<vmem>>, %arg15: memref<1x1xf32, #tpu.memory_space<vmem>>, %arg16: memref<256x1xf32, #tpu.memory_space<vmem>>) attributes {dimension_semantics = [#tpu.dimension_semantics<parallel>], iteration_bounds = array<i64: 2>, scalar_prefetch = 0 : i64, scratch_operands = 0 : i64, tpu.core_type = #tpu.core_type<tc>, window_params = [{transform_indices = @transform_0, window_bounds = array<i64: 256, 64>}, {transform_indices = @transform_1, window_bounds = array<i64: 256, 64>}, {transform_indices = @transform_2, window_bounds = array<i64: 256, 1682>}, {pipeline_mode = #tpu.pipeline_mode<synchronous>, transform_indices = @transform_3, window_bounds = array<i64: 64, 100>}, {pipeline_mode = #tpu.pipeline_mode<synchronous>, transform_indices = @transform_4, window_bounds = array<i64: 64, 100>}, {pipeline_mode = #tpu.pipeline_mode<synchronous>, transform_indices = @transform_5, window_bounds = array<i64: 1, 100>}, {pipeline_mode = #tpu.pipeline_mode<synchronous>, transform_indices = @transform_6, window_bounds = array<i64: 100, 100>}, {pipeline_mode = #tpu.pipeline_mode<synchronous>, transform_indices = @transform_7, window_bounds = array<i64: 1, 100>}, {pipeline_mode = #tpu.pipeline_mode<synchronous>, transform_indices = @transform_8, window_bounds = array<i64: 100, 50>}, {pipeline_mode = #tpu.pipeline_mode<synchronous>, transform_indices = @transform_9, window_bounds = array<i64: 1, 50>}, {pipeline_mode = #tpu.pipeline_mode<synchronous>, transform_indices = @transform_10, window_bounds = array<i64: 50, 30>}, {pipeline_mode = #tpu.pipeline_mode<synchronous>, transform_indices = @transform_11, window_bounds = array<i64: 1682, 30>}, {pipeline_mode = #tpu.pipeline_mode<synchronous>, transform_indices = @transform_12, window_bounds = array<i64: 1, 30>}, {pipeline_mode = #tpu.pipeline_mode<synchronous>, transform_indices = @transform_13, window_bounds = array<i64: 30, 1>}, {pipeline_mode = #tpu.pipeline_mode<synchronous>, transform_indices = @transform_14, window_bounds = array<i64: 1, 1>}, {transform_indices = @transform_15, window_bounds = array<i64: 256, 1>}]} {
    %c0 = arith.constant 0 : index
    %c0_0 = arith.constant 0 : index
    %0 = vector.load %arg1[%c0, %c0_0] : memref<256x64xf32, #tpu.memory_space<vmem>>, vector<256x64xf32>
    %c0_1 = arith.constant 0 : index
    %c0_2 = arith.constant 0 : index
    %1 = vector.load %arg4[%c0_1, %c0_2] : memref<64x100xf32, #tpu.memory_space<vmem>>, vector<64x100xf32>
    %cst = arith.constant dense<0.000000e+00> : vector<256x100xf32>
    %2 = tpu.matmul %0, %1, %cst {dimension_numbers = #tpu.dot_dimension_numbers<[1], [0], [0], [1], [0, 0, 1, 1], [], []>} : vector<256x64xf32>, vector<64x100xf32>, vector<256x100xf32> -> vector<256x100xf32>
    %c0_3 = arith.constant 0 : index
    %c0_4 = arith.constant 0 : index
    %3 = vector.load %arg2[%c0_3, %c0_4] : memref<256x64xf32, #tpu.memory_space<vmem>>, vector<256x64xf32>
    %c0_5 = arith.constant 0 : index
    %c0_6 = arith.constant 0 : index
    %4 = vector.load %arg5[%c0_5, %c0_6] : memref<64x100xf32, #tpu.memory_space<vmem>>, vector<64x100xf32>
    %cst_7 = arith.constant dense<0.000000e+00> : vector<256x100xf32>
    %5 = tpu.matmul %3, %4, %cst_7 {dimension_numbers = #tpu.dot_dimension_numbers<[1], [0], [0], [1], [0, 0, 1, 1], [], []>} : vector<256x64xf32>, vector<64x100xf32>, vector<256x100xf32> -> vector<256x100xf32>
    %6 = arith.addf %2, %5 : vector<256x100xf32>
    %c0_8 = arith.constant 0 : index
    %c0_9 = arith.constant 0 : index
    %7 = vector.load %arg6[%c0_8, %c0_9] : memref<1x100xf32, #tpu.memory_space<vmem>>, vector<1x100xf32>
    %8 = vector.broadcast %7 : vector<1x100xf32> to vector<256x100xf32>
    %9 = arith.addf %6, %8 : vector<256x100xf32>
    %cst_10 = arith.constant 0.000000e+00 : f32
    %10 = vector.broadcast %cst_10 : f32 to vector<256x100xf32>
    %11 = arith.maximumf %9, %10 : vector<256x100xf32>
    %c0_11 = arith.constant 0 : index
    %c0_12 = arith.constant 0 : index
    %12 = vector.load %arg7[%c0_11, %c0_12] : memref<100x100xf32, #tpu.memory_space<vmem>>, vector<100x100xf32>
    %cst_13 = arith.constant dense<0.000000e+00> : vector<256x100xf32>
    %13 = tpu.matmul %11, %12, %cst_13 {dimension_numbers = #tpu.dot_dimension_numbers<[1], [0], [0], [1], [0, 0, 1, 1], [], []>} : vector<256x100xf32>, vector<100x100xf32>, vector<256x100xf32> -> vector<256x100xf32>
    %c0_14 = arith.constant 0 : index
    %c0_15 = arith.constant 0 : index
    %14 = vector.load %arg8[%c0_14, %c0_15] : memref<1x100xf32, #tpu.memory_space<vmem>>, vector<1x100xf32>
    %15 = vector.broadcast %14 : vector<1x100xf32> to vector<256x100xf32>
    %16 = arith.addf %13, %15 : vector<256x100xf32>
    %cst_16 = arith.constant 0.000000e+00 : f32
    %17 = vector.broadcast %cst_16 : f32 to vector<256x100xf32>
    %18 = arith.maximumf %16, %17 : vector<256x100xf32>
    %c0_17 = arith.constant 0 : index
    %c0_18 = arith.constant 0 : index
    %19 = vector.load %arg9[%c0_17, %c0_18] : memref<100x50xf32, #tpu.memory_space<vmem>>, vector<100x50xf32>
    %cst_19 = arith.constant dense<0.000000e+00> : vector<256x50xf32>
    %20 = tpu.matmul %18, %19, %cst_19 {dimension_numbers = #tpu.dot_dimension_numbers<[1], [0], [0], [1], [0, 0, 1, 1], [], []>} : vector<256x100xf32>, vector<100x50xf32>, vector<256x50xf32> -> vector<256x50xf32>
    %c0_20 = arith.constant 0 : index
    %c0_21 = arith.constant 0 : index
    %21 = vector.load %arg10[%c0_20, %c0_21] : memref<1x50xf32, #tpu.memory_space<vmem>>, vector<1x50xf32>
    %22 = vector.broadcast %21 : vector<1x50xf32> to vector<256x50xf32>
    %23 = arith.addf %20, %22 : vector<256x50xf32>
    %cst_22 = arith.constant 0.000000e+00 : f32
    %24 = vector.broadcast %cst_22 : f32 to vector<256x50xf32>
    %25 = arith.maximumf %23, %24 : vector<256x50xf32>
    %c0_23 = arith.constant 0 : index
    %c0_24 = arith.constant 0 : index
    %26 = vector.load %arg11[%c0_23, %c0_24] : memref<50x30xf32, #tpu.memory_space<vmem>>, vector<50x30xf32>
    %cst_25 = arith.constant dense<0.000000e+00> : vector<256x30xf32>
    %27 = tpu.matmul %25, %26, %cst_25 {dimension_numbers = #tpu.dot_dimension_numbers<[1], [0], [0], [1], [0, 0, 1, 1], [], []>} : vector<256x50xf32>, vector<50x30xf32>, vector<256x30xf32> -> vector<256x30xf32>
    %c0_26 = arith.constant 0 : index
    %c0_27 = arith.constant 0 : index
    %28 = vector.load %arg3[%c0_26, %c0_27] : memref<256x1682xf32, #tpu.memory_space<vmem>>, vector<256x1682xf32>
    %c0_28 = arith.constant 0 : index
    %c0_29 = arith.constant 0 : index
    %29 = vector.load %arg12[%c0_28, %c0_29] : memref<1682x30xf32, #tpu.memory_space<vmem>>, vector<1682x30xf32>
    %cst_30 = arith.constant dense<0.000000e+00> : vector<256x30xf32>
    %30 = tpu.matmul %28, %29, %cst_30 {dimension_numbers = #tpu.dot_dimension_numbers<[1], [0], [0], [1], [0, 0, 1, 1], [], []>} : vector<256x1682xf32>, vector<1682x30xf32>, vector<256x30xf32> -> vector<256x30xf32>
    %31 = arith.addf %27, %30 : vector<256x30xf32>
    %c0_31 = arith.constant 0 : index
    %c0_32 = arith.constant 0 : index
    %32 = vector.load %arg13[%c0_31, %c0_32] : memref<1x30xf32, #tpu.memory_space<vmem>>, vector<1x30xf32>
    %33 = vector.broadcast %32 : vector<1x30xf32> to vector<256x30xf32>
    %34 = arith.addf %31, %33 : vector<256x30xf32>
    %cst_33 = arith.constant 0.000000e+00 : f32
    %35 = vector.broadcast %cst_33 : f32 to vector<256x30xf32>
    %36 = arith.maximumf %34, %35 : vector<256x30xf32>
    %c0_34 = arith.constant 0 : index
    %c0_35 = arith.constant 0 : index
    %37 = vector.load %arg14[%c0_34, %c0_35] : memref<30x1xf32, #tpu.memory_space<vmem>>, vector<30x1xf32>
    %cst_36 = arith.constant dense<0.000000e+00> : vector<256x1xf32>
    %38 = tpu.matmul %36, %37, %cst_36 {dimension_numbers = #tpu.dot_dimension_numbers<[1], [0], [0], [1], [0, 0, 1, 1], [], []>} : vector<256x30xf32>, vector<30x1xf32>, vector<256x1xf32> -> vector<256x1xf32>
    %c0_37 = arith.constant 0 : index
    %c0_38 = arith.constant 0 : index
    %39 = vector.load %arg15[%c0_37, %c0_38] : memref<1x1xf32, #tpu.memory_space<vmem>>, vector<1x1xf32>
    %40 = vector.broadcast %39 : vector<1x1xf32> to vector<256x1xf32>
    %41 = arith.addf %38, %40 : vector<256x1xf32>
    %42 = arith.negf %41 : vector<256x1xf32>
    %43 = math.exp %42 : vector<256x1xf32>
    %cst_39 = arith.constant 1.000000e+00 : f32
    %44 = vector.broadcast %cst_39 : f32 to vector<256x1xf32>
    %45 = arith.addf %44, %43 : vector<256x1xf32>
    %46 = arith.divf %44, %45 : vector<256x1xf32>
    %c0_40 = arith.constant 0 : index
    %c0_41 = arith.constant 0 : index
    %47 = vector.load %arg16[%c0_40, %c0_41] : memref<256x1xf32, #tpu.memory_space<vmem>>, vector<256x1xf32>
    tpu.vector_store %arg16[%c0_40, %c0_41], %46 {strides = array<i32>} : memref<256x1xf32, #tpu.memory_space<vmem>>, vector<256x1xf32>,
    return
  }
  func.func @transform_0(%arg0: i32) -> (i32, i32) {
    %c0_i32 = arith.constant 0 : i32
    %c0_i32_0 = arith.constant 0 : i32
    return %arg0, %c0_i32 : i32, i32
  }
  func.func @transform_1(%arg0: i32) -> (i32, i32) {
    %c0_i32 = arith.constant 0 : i32
    %c0_i32_0 = arith.constant 0 : i32
    return %arg0, %c0_i32 : i32, i32
  }
  func.func @transform_2(%arg0: i32) -> (i32, i32) {
    %c0_i32 = arith.constant 0 : i32
    %c0_i32_0 = arith.constant 0 : i32
    return %arg0, %c0_i32 : i32, i32
  }
  func.func @transform_3(%arg0: i32) -> (i32, i32) {
    %c0_i32 = arith.constant 0 : i32
    %c0_i32_0 = arith.constant 0 : i32
    %c0_i32_1 = arith.constant 0 : i32
    return %c0_i32, %c0_i32_0 : i32, i32
  }
  func.func @transform_4(%arg0: i32) -> (i32, i32) {
    %c0_i32 = arith.constant 0 : i32
    %c0_i32_0 = arith.constant 0 : i32
    %c0_i32_1 = arith.constant 0 : i32
    return %c0_i32, %c0_i32_0 : i32, i32
  }
  func.func @transform_5(%arg0: i32) -> (i32, i32) {
    %c0_i32 = arith.constant 0 : i32
    %c0_i32_0 = arith.constant 0 : i32
    %c0_i32_1 = arith.constant 0 : i32
    return %c0_i32, %c0_i32_0 : i32, i32
  }
  func.func @transform_6(%arg0: i32) -> (i32, i32) {
    %c0_i32 = arith.constant 0 : i32
    %c0_i32_0 = arith.constant 0 : i32
    %c0_i32_1 = arith.constant 0 : i32
    return %c0_i32, %c0_i32_0 : i32, i32
  }
  func.func @transform_7(%arg0: i32) -> (i32, i32) {
    %c0_i32 = arith.constant 0 : i32
    %c0_i32_0 = arith.constant 0 : i32
    %c0_i32_1 = arith.constant 0 : i32
    return %c0_i32, %c0_i32_0 : i32, i32
  }
  func.func @transform_8(%arg0: i32) -> (i32, i32) {
    %c0_i32 = arith.constant 0 : i32
    %c0_i32_0 = arith.constant 0 : i32
    %c0_i32_1 = arith.constant 0 : i32
    return %c0_i32, %c0_i32_0 : i32, i32
  }
  func.func @transform_9(%arg0: i32) -> (i32, i32) {
    %c0_i32 = arith.constant 0 : i32
    %c0_i32_0 = arith.constant 0 : i32
    %c0_i32_1 = arith.constant 0 : i32
    return %c0_i32, %c0_i32_0 : i32, i32
  }
  func.func @transform_10(%arg0: i32) -> (i32, i32) {
    %c0_i32 = arith.constant 0 : i32
    %c0_i32_0 = arith.constant 0 : i32
    %c0_i32_1 = arith.constant 0 : i32
    return %c0_i32, %c0_i32_0 : i32, i32
  }
  func.func @transform_11(%arg0: i32) -> (i32, i32) {
    %c0_i32 = arith.constant 0 : i32
    %c0_i32_0 = arith.constant 0 : i32
    %c0_i32_1 = arith.constant 0 : i32
    return %c0_i32, %c0_i32_0 : i32, i32
  }
  func.func @transform_12(%arg0: i32) -> (i32, i32) {
    %c0_i32 = arith.constant 0 : i32
    %c0_i32_0 = arith.constant 0 : i32
    %c0_i32_1 = arith.constant 0 : i32
    return %c0_i32, %c0_i32_0 : i32, i32
  }
  func.func @transform_13(%arg0: i32) -> (i32, i32) {
    %c0_i32 = arith.constant 0 : i32
    %c0_i32_0 = arith.constant 0 : i32
    %c0_i32_1 = arith.constant 0 : i32
    return %c0_i32, %c0_i32_0 : i32, i32
  }
  func.func @transform_14(%arg0: i32) -> (i32, i32) {
    %c0_i32 = arith.constant 0 : i32
    %c0_i32_0 = arith.constant 0 : i32
    %c0_i32_1 = arith.constant 0 : i32
    return %c0_i32, %c0_i32_0 : i32, i32
  }
  func.func @transform_15(%arg0: i32) -> (i32, i32) {
    %c0_i32 = arith.constant 0 : i32
    %c0_i32_0 = arith.constant 0 : i32
    return %arg0, %c0_i32 : i32, i32
  }
}

</mosaic_0001>

<llo_original>
// kernel: data_value_evaluator_forward.1
$region0: #{data_value_evaluator_forward.1}
  #allocation0 [shape = 'u32[]', space=smem, size = 0x4, offset = 0x4, fixed_abs, tag = 'smem constant byte address 0x4 - core index']
  #allocation1 [shape = 'u32[144,128]{1,0:T(1,128)}', space=vmem, size = 0x12000, scoped, tag = 'internal scratch']
  #allocation2 [shape = 'f32[1,1]{1,0:T(1,128)S(1)}', space=vmem, size = 0x200, scoped, tag = 'scoped memory for data_value_evaluator_forward.1']
  %s0 = inlined_call_operand.vmem [shape: f32[300,64], index: 0, kind: input, shape index: {}]
  %s1 = inlined_call_operand.vmem [shape: f32[300,64], index: 1, kind: input, shape index: {}]
  %s2 = inlined_call_operand.hbm [shape: f32[300,1682], index: 2, kind: input, shape index: {}]
  %s3 = inlined_call_operand.hbm [shape: f32[64,100], index: 3, kind: input, shape index: {}]
  %s4 = inlined_call_operand.hbm [shape: f32[64,100], index: 4, kind: input, shape index: {}]
  %s5 = inlined_call_operand.hbm [shape: f32[1,100], index: 5, kind: input, shape index: {}]
  %s6 = inlined_call_operand.hbm [shape: f32[100,100], index: 6, kind: input, shape index: {}]
  %s7 = inlined_call_operand.hbm [shape: f32[1,100], index: 7, kind: input, shape index: {}]
  %s8 = inlined_call_operand.vmem [shape: f32[100,50], index: 8, kind: input, shape index: {}]
  %s9 = inlined_call_operand.hbm [shape: f32[1,50], index: 9, kind: input, shape index: {}]
  %s10 = inlined_call_operand.vmem [shape: f32[50,30], index: 10, kind: input, shape index: {}]
  %s11 = inlined_call_operand.vmem [shape: f32[1682,30], index: 11, kind: input, shape index: {}]
  %s12 = inlined_call_operand.hbm [shape: f32[1,30], index: 12, kind: input, shape index: {}]
  %s13 = inlined_call_operand.vmem [shape: f32[30,1], index: 13, kind: input, shape index: {}]
  %s14 = inlined_call_operand.<no memory space> [shape: f32[1,1], index: 14, kind: input, shape index: {}]
  %s15 = inlined_call_operand.vmem [shape: f32[300,1], index: 15, kind: output, shape index: {}]
  %s16 = sld [smem:[#allocation0]]
  $region173: #{data_value_evaluator_forward.1} parent=0
    _
  %s18 = ssub.s32 1, %s16
  %s19 = scalar_select 0, %s18, %s16
  %v20 = vstv %s14
  %21 = vst [vmem:[#allocation2] sm:$0x1] %v20
  $region1: #{data_value_evaluator_forward.1} parent=0
    #allocation3 [shape = 'u8[3670016]{0}', space=vmem, size = 0x380000, scoped, tag = 'input window, operand 2']
    #allocation4 [shape = 's32[2]{0}', space=sflag, size = 0x8, scoped, tag = 'scoped memory for data_value_evaluator_forward.1']
    #allocation5 [shape = 'u8[32768]{0}', space=vmem, size = 0x8000, scoped, tag = 'input window, operand 3, single buffered']
    #allocation6 [shape = 's32[1]{0}', space=sflag, size = 0x4, scoped, tag = 'scoped memory for data_value_evaluator_forward.1']
    #allocation7 [shape = 'u8[32768]{0}', space=vmem, size = 0x8000, scoped, tag = 'input window, operand 4, single buffered']
    #allocation8 [shape = 'u8[512]{0}', space=vmem, size = 0x400, scoped, tag = 'input window, operand 5, single buffered']
    #allocation9 [shape = 's32[1]{0}', space=sflag, size = 0x4, scoped, tag = 'scoped memory for data_value_evaluator_forward.1']
    #allocation10 [shape = 'u8[53248]{0}', space=vmem, size = 0xd000, scoped, tag = 'input window, operand 6, single buffered']
    #allocation11 [shape = 'u8[512]{0}', space=vmem, size = 0x400, scoped, tag = 'input window, operand 7, single buffered']
    #allocation12 [shape = 's32[1]{0}', space=sflag, size = 0x4, scoped, tag = 'scoped memory for data_value_evaluator_forward.1']
    #allocation13 [shape = 'u8[512]{0}', space=vmem, size = 0x400, scoped, tag = 'input window, operand 9, single buffered']
    #allocation14 [shape = 'u8[512]{0}', space=vmem, size = 0x400, scoped, tag = 'input window, operand 12, single buffered']
    #allocation15 [shape = 's32[1]{0}', space=sflag, size = 0x4, scoped, tag = 'scoped memory for data_value_evaluator_forward.1']
    #allocation16 [shape = 'u8[262144]{0}', space=vmem, size = 0x40000, scoped, tag = 'output window, operand 0']
    %22 = vsyncpa [#allocation4], 0
    %s23 = scalar_lea.sflag [#allocation4], 1
    %24 = vsyncpa %s23, 0
    %25 = vsyncpa [#allocation6], 0
    %26 = vsyncpa [#allocation9], 0
    %27 = vsyncpa [#allocation12], 0
    %28 = vsyncpa [#allocation15], 0
    loop: start=0, step=1, limit=4
    $region2: #{data_value_evaluator_forward.1} parent=1 // loop_pre_header
      _
    $region3: #{data_value_evaluator_forward.1} parent=1 // loop_header
      %s30 = sphi 0, %s34
      %p31 = scmp.ge.s32.totalorder %s30, 4
      %s40 = sphi 0, %s42
      %s43 = sphi 0, %s40
      %s44 = sphi 0, %s43
      %s60 = sphi 0, %s44
      %s66 = sphi 0, %s68
      %s69 = sphi 0, %s66
      %s70 = sphi 0, %s69
      %s86 = sphi 0, %s70
      %s92 = sphi 0, %s94
      %s95 = sphi 0, %s92
      %s96 = sphi 0, %s95
      %s112 = sphi 0, %s96
      %s116 = sphi 0, %s116
      %s118 = sphi 0, %s116
      %s119 = sphi 0, %s118
      %s133 = sphi 0, %s119
      %s137 = sphi 0, %s137
      %s139 = sphi 0, %s137
      %s140 = sphi 0, %s139
      %s154 = sphi 0, %s140
      %s158 = sphi 0, %s158
      %s160 = sphi 0, %s158
      %s161 = sphi 0, %s160
      %s175 = sphi 0, %s161
      %s179 = sphi 0, %s179
      %s181 = sphi 0, %s179
      %s182 = sphi 0, %s181
      %s196 = sphi 0, %s182
      %s200 = sphi 0, %s200
      %s202 = sphi 0, %s200
      %s203 = sphi 0, %s202
      %s217 = sphi 0, %s203
      %s221 = sphi 0, %s221
      %s223 = sphi 0, %s221
      %s224 = sphi 0, %s223
      %s238 = sphi 0, %s224
      %s242 = sphi 0, %s242
      %s244 = sphi 0, %s242
      %s245 = sphi 0, %s244
      %s259 = sphi 0, %s245
      %s263 = sphi 0, %s263
      %s265 = sphi 0, %s263
      %s266 = sphi 0, %s265
      %s280 = sphi 0, %s266
      %s284 = sphi 0, %s284
      %s286 = sphi 0, %s284
      %s287 = sphi 0, %s286
      %s301 = sphi 0, %s287
      %s305 = sphi 0, %s305
      %s307 = sphi 0, %s305
      %s308 = sphi 0, %s307
      %s322 = sphi 0, %s308
      %s326 = sphi 0, %s326
      %s328 = sphi 0, %s326
      %s329 = sphi 0, %s328
      %s343 = sphi 0, %s329
      %s347 = sphi 0, %s347
      %s349 = sphi 0, %s347
      %s350 = sphi 0, %s349
      %s364 = sphi 0, %s350
      %s370 = sphi 0, %s372
      %s373 = sphi 0, %s370
      %s374 = sphi 0, %s373
      %s390 = sphi 0, %s374
    $region4: #{data_value_evaluator_forward.1} parent=1 // loop_header_branch
      %33 = sbr.rel (%p31) target = $region8
    $region5: #{data_value_evaluator_forward.1} parent=1 // loop_body
      %s35 = ssub.s32 %s30, 1
      %s36 = ssub.s32 %s30, 2
      %s37 = sadd.s32 %s30, 1
      %s38 = ssub.s32 %s30, %s37
      %p39 = scmp.eq.s32.totalorder %s38, 0
      %s41 = sadd.s32 %s40, 1
      %s42 = scalar_select %p39, %s40, %s41
      %p45 = pneg %p39
      %p46 = scmp.eq.s32.totalorder %s30, 1
      %p47 = por %p45, %p46
      %p48 = scmp.ne.s32.totalorder %s40, %s43
      %p49 = scmp.eq.s32.totalorder %s30, 0
      %p50 = por %p48, %p49
      %p51 = scmp.ne.s32.totalorder %s40, %s43
      %p52 = scmp.eq.s32.totalorder %s35, 1
      %p53 = por %p51, %p52
      %p54 = scmp.ne.s32.totalorder %s43, %s44
      %p55 = scmp.eq.s32.totalorder %s35, 0
      %p56 = por %p54, %p55
      %p57 = scmp.ne.s32.totalorder %s43, %s44
      %p58 = scmp.eq.s32.totalorder %s36, 1
      %p59 = por %p57, %p58
      %p61 = scmp.ne.s32.totalorder %s44, %s60
      %p62 = scmp.eq.s32.totalorder %s36, 0
      %p63 = por %p61, %p62
      %s64 = ssub.s32 %s30, %s37
      %p65 = scmp.eq.s32.totalorder %s64, 0
      %s67 = sadd.s32 %s66, 1
      %s68 = scalar_select %p65, %s66, %s67
      %p71 = pneg %p65
      %p72 = scmp.eq.s32.totalorder %s30, 1
      %p73 = por %p71, %p72
      %p74 = scmp.ne.s32.totalorder %s66, %s69
      %p75 = scmp.eq.s32.totalorder %s30, 0
      %p76 = por %p74, %p75
      %p77 = scmp.ne.s32.totalorder %s66, %s69
      %p78 = scmp.eq.s32.totalorder %s35, 1
      %p79 = por %p77, %p78
      %p80 = scmp.ne.s32.totalorder %s69, %s70
      %p81 = scmp.eq.s32.totalorder %s35, 0
      %p82 = por %p80, %p81
      %p83 = scmp.ne.s32.totalorder %s69, %s70
      %p84 = scmp.eq.s32.totalorder %s36, 1
      %p85 = por %p83, %p84
      %p87 = scmp.ne.s32.totalorder %s70, %s86
      %p88 = scmp.eq.s32.totalorder %s36, 0
      %p89 = por %p87, %p88
      %s90 = ssub.s32 %s30, %s37
      %p91 = scmp.eq.s32.totalorder %s90, 0
      %s93 = sadd.s32 %s92, 1
      %s94 = scalar_select %p91, %s92, %s93
      %p97 = pneg %p91
      %p98 = scmp.eq.s32.totalorder %s30, 1
      %p99 = por %p97, %p98
      %p100 = scmp.ne.s32.totalorder %s92, %s95
      %p101 = scmp.eq.s32.totalorder %s30, 0
      %p102 = por %p100, %p101
      %p103 = scmp.ne.s32.totalorder %s92, %s95
      %p104 = scmp.eq.s32.totalorder %s35, 1
      %p105 = por %p103, %p104
      %p106 = scmp.ne.s32.totalorder %s95, %s96
      %p107 = scmp.eq.s32.totalorder %s35, 0
      %p108 = por %p106, %p107
      %p109 = scmp.ne.s32.totalorder %s95, %s96
      %p110 = scmp.eq.s32.totalorder %s36, 1
      %p111 = por %p109, %p110
      %p113 = scmp.ne.s32.totalorder %s96, %s112
      %p114 = scmp.eq.s32.totalorder %s36, 0
      %p115 = por %p113, %p114
      %s117 = sadd.s32 %s116, 1
      %p120 = scmp.eq.s32.totalorder %s30, 1
      %p121 = scmp.ne.s32.totalorder %s116, %s118
      %p122 = scmp.eq.s32.totalorder %s30, 0
      %p123 = por %p121, %p122
      %p124 = scmp.ne.s32.totalorder %s116, %s118
      %p125 = scmp.eq.s32.totalorder %s35, 1
      %p126 = por %p124, %p125
      %p127 = scmp.ne.s32.totalorder %s118, %s119
      %p128 = scmp.eq.s32.totalorder %s35, 0
      %p129 = por %p127, %p128
      %p130 = scmp.ne.s32.totalorder %s118, %s119
      %p131 = scmp.eq.s32.totalorder %s36, 1
      %p132 = por %p130, %p131
      %p134 = scmp.ne.s32.totalorder %s119, %s133
      %p135 = scmp.eq.s32.totalorder %s36, 0
      %p136 = por %p134, %p135
      %s138 = sadd.s32 %s137, 1
      %p141 = scmp.eq.s32.totalorder %s30, 1
      %p142 = scmp.ne.s32.totalorder %s137, %s139
      %p143 = scmp.eq.s32.totalorder %s30, 0
      %p144 = por %p142, %p143
      %p145 = scmp.ne.s32.totalorder %s137, %s139
      %p146 = scmp.eq.s32.totalorder %s35, 1
      %p147 = por %p145, %p146
      %p148 = scmp.ne.s32.totalorder %s139, %s140
      %p149 = scmp.eq.s32.totalorder %s35, 0
      %p150 = por %p148, %p149
      %p151 = scmp.ne.s32.totalorder %s139, %s140
      %p152 = scmp.eq.s32.totalorder %s36, 1
      %p153 = por %p151, %p152
      %p155 = scmp.ne.s32.totalorder %s140, %s154
      %p156 = scmp.eq.s32.totalorder %s36, 0
      %p157 = por %p155, %p156
      %s159 = sadd.s32 %s158, 1
      %p162 = scmp.eq.s32.totalorder %s30, 1
      %p163 = scmp.ne.s32.totalorder %s158, %s160
      %p164 = scmp.eq.s32.totalorder %s30, 0
      %p165 = por %p163, %p164
      %p166 = scmp.ne.s32.totalorder %s158, %s160
      %p167 = scmp.eq.s32.totalorder %s35, 1
      %p168 = por %p166, %p167
      %p169 = scmp.ne.s32.totalorder %s160, %s161
      %p170 = scmp.eq.s32.totalorder %s35, 0
      %p171 = por %p169, %p170
      %p172 = scmp.ne.s32.totalorder %s160, %s161
      %p173 = scmp.eq.s32.totalorder %s36, 1
      %p174 = por %p172, %p173
      %p176 = scmp.ne.s32.totalorder %s161, %s175
      %p177 = scmp.eq.s32.totalorder %s36, 0
      %p178 = por %p176, %p177
      %s180 = sadd.s32 %s179, 1
      %p183 = scmp.eq.s32.totalorder %s30, 1
      %p184 = scmp.ne.s32.totalorder %s179, %s181
      %p185 = scmp.eq.s32.totalorder %s30, 0
      %p186 = por %p184, %p185
      %p187 = scmp.ne.s32.totalorder %s179, %s181
      %p188 = scmp.eq.s32.totalorder %s35, 1
      %p189 = por %p187, %p188
      %p190 = scmp.ne.s32.totalorder %s181, %s182
      %p191 = scmp.eq.s32.totalorder %s35, 0
      %p192 = por %p190, %p191
      %p193 = scmp.ne.s32.totalorder %s181, %s182
      %p194 = scmp.eq.s32.totalorder %s36, 1
      %p195 = por %p193, %p194
      %p197 = scmp.ne.s32.totalorder %s182, %s196
      %p198 = scmp.eq.s32.totalorder %s36, 0
      %p199 = por %p197, %p198
      %s201 = sadd.s32 %s200, 1
      %p204 = scmp.eq.s32.totalorder %s30, 1
      %p205 = scmp.ne.s32.totalorder %s200, %s202
      %p206 = scmp.eq.s32.totalorder %s30, 0
      %p207 = por %p205, %p206
      %p208 = scmp.ne.s32.totalorder %s200, %s202
      %p209 = scmp.eq.s32.totalorder %s35, 1
      %p210 = por %p208, %p209
      %p211 = scmp.ne.s32.totalorder %s202, %s203
      %p212 = scmp.eq.s32.totalorder %s35, 0
      %p213 = por %p211, %p212
      %p214 = scmp.ne.s32.totalorder %s202, %s203
      %p215 = scmp.eq.s32.totalorder %s36, 1
      %p216 = por %p214, %p215
      %p218 = scmp.ne.s32.totalorder %s203, %s217
      %p219 = scmp.eq.s32.totalorder %s36, 0
      %p220 = por %p218, %p219
      %s222 = sadd.s32 %s221, 1
      %p225 = scmp.eq.s32.totalorder %s30, 1
      %p226 = scmp.ne.s32.totalorder %s221, %s223
      %p227 = scmp.eq.s32.totalorder %s30, 0
      %p228 = por %p226, %p227
      %p229 = scmp.ne.s32.totalorder %s221, %s223
      %p230 = scmp.eq.s32.totalorder %s35, 1
      %p231 = por %p229, %p230
      %p232 = scmp.ne.s32.totalorder %s223, %s224
      %p233 = scmp.eq.s32.totalorder %s35, 0
      %p234 = por %p232, %p233
      %p235 = scmp.ne.s32.totalorder %s223, %s224
      %p236 = scmp.eq.s32.totalorder %s36, 1
      %p237 = por %p235, %p236
      %p239 = scmp.ne.s32.totalorder %s224, %s238
      %p240 = scmp.eq.s32.totalorder %s36, 0
      %p241 = por %p239, %p240
      %s243 = sadd.s32 %s242, 1
      %p246 = scmp.eq.s32.totalorder %s30, 1
      %p247 = scmp.ne.s32.totalorder %s242, %s244
      %p248 = scmp.eq.s32.totalorder %s30, 0
      %p249 = por %p247, %p248
      %p250 = scmp.ne.s32.totalorder %s242, %s244
      %p251 = scmp.eq.s32.totalorder %s35, 1
      %p252 = por %p250, %p251
      %p253 = scmp.ne.s32.totalorder %s244, %s245
      %p254 = scmp.eq.s32.totalorder %s35, 0
      %p255 = por %p253, %p254
      %p256 = scmp.ne.s32.totalorder %s244, %s245
      %p257 = scmp.eq.s32.totalorder %s36, 1
      %p258 = por %p256, %p257
      %p260 = scmp.ne.s32.totalorder %s245, %s259
      %p261 = scmp.eq.s32.totalorder %s36, 0
      %p262 = por %p260, %p261
      %s264 = sadd.s32 %s263, 1
      %p267 = scmp.eq.s32.totalorder %s30, 1
      %p268 = scmp.ne.s32.totalorder %s263, %s265
      %p269 = scmp.eq.s32.totalorder %s30, 0
      %p270 = por %p268, %p269
      %p271 = scmp.ne.s32.totalorder %s263, %s265
      %p272 = scmp.eq.s32.totalorder %s35, 1
      %p273 = por %p271, %p272
      %p274 = scmp.ne.s32.totalorder %s265, %s266
      %p275 = scmp.eq.s32.totalorder %s35, 0
      %p276 = por %p274, %p275
      %p277 = scmp.ne.s32.totalorder %s265, %s266
      %p278 = scmp.eq.s32.totalorder %s36, 1
      %p279 = por %p277, %p278
      %p281 = scmp.ne.s32.totalorder %s266, %s280
      %p282 = scmp.eq.s32.totalorder %s36, 0
      %p283 = por %p281, %p282
      %s285 = sadd.s32 %s284, 1
      %p288 = scmp.eq.s32.totalorder %s30, 1
      %p289 = scmp.ne.s32.totalorder %s284, %s286
      %p290 = scmp.eq.s32.totalorder %s30, 0
      %p291 = por %p289, %p290
      %p292 = scmp.ne.s32.totalorder %s284, %s286
      %p293 = scmp.eq.s32.totalorder %s35, 1
      %p294 = por %p292, %p293
      %p295 = scmp.ne.s32.totalorder %s286, %s287
      %p296 = scmp.eq.s32.totalorder %s35, 0
      %p297 = por %p295, %p296
      %p298 = scmp.ne.s32.totalorder %s286, %s287
      %p299 = scmp.eq.s32.totalorder %s36, 1
      %p300 = por %p298, %p299
      %p302 = scmp.ne.s32.totalorder %s287, %s301
      %p303 = scmp.eq.s32.totalorder %s36, 0
      %p304 = por %p302, %p303
      %s306 = sadd.s32 %s305, 1
      %p309 = scmp.eq.s32.totalorder %s30, 1
      %p310 = scmp.ne.s32.totalorder %s305, %s307
      %p311 = scmp.eq.s32.totalorder %s30, 0
      %p312 = por %p310, %p311
      %p313 = scmp.ne.s32.totalorder %s305, %s307
      %p314 = scmp.eq.s32.totalorder %s35, 1
      %p315 = por %p313, %p314
      %p316 = scmp.ne.s32.totalorder %s307, %s308
      %p317 = scmp.eq.s32.totalorder %s35, 0
      %p318 = por %p316, %p317
      %p319 = scmp.ne.s32.totalorder %s307, %s308
      %p320 = scmp.eq.s32.totalorder %s36, 1
      %p321 = por %p319, %p320
      %p323 = scmp.ne.s32.totalorder %s308, %s322
      %p324 = scmp.eq.s32.totalorder %s36, 0
      %p325 = por %p323, %p324
      %s327 = sadd.s32 %s326, 1
      %p330 = scmp.eq.s32.totalorder %s30, 1
      %p331 = scmp.ne.s32.totalorder %s326, %s328
      %p332 = scmp.eq.s32.totalorder %s30, 0
      %p333 = por %p331, %p332
      %p334 = scmp.ne.s32.totalorder %s326, %s328
      %p335 = scmp.eq.s32.totalorder %s35, 1
      %p336 = por %p334, %p335
      %p337 = scmp.ne.s32.totalorder %s328, %s329
      %p338 = scmp.eq.s32.totalorder %s35, 0
      %p339 = por %p337, %p338
      %p340 = scmp.ne.s32.totalorder %s328, %s329
      %p341 = scmp.eq.s32.totalorder %s36, 1
      %p342 = por %p340, %p341
      %p344 = scmp.ne.s32.totalorder %s329, %s343
      %p345 = scmp.eq.s32.totalorder %s36, 0
      %p346 = por %p344, %p345
      %s348 = sadd.s32 %s347, 1
      %p351 = scmp.eq.s32.totalorder %s30, 1
      %p352 = scmp.ne.s32.totalorder %s347, %s349
      %p353 = scmp.eq.s32.totalorder %s30, 0
      %p354 = por %p352, %p353
      %p355 = scmp.ne.s32.totalorder %s347, %s349
      %p356 = scmp.eq.s32.totalorder %s35, 1
      %p357 = por %p355, %p356
      %p358 = scmp.ne.s32.totalorder %s349, %s350
      %p359 = scmp.eq.s32.totalorder %s35, 0
      %p360 = por %p358, %p359
      %p361 = scmp.ne.s32.totalorder %s349, %s350
      %p362 = scmp.eq.s32.totalorder %s36, 1
      %p363 = por %p361, %p362
      %p365 = scmp.ne.s32.totalorder %s350, %s364
      %p366 = scmp.eq.s32.totalorder %s36, 0
      %p367 = por %p365, %p366
      %s368 = ssub.s32 %s30, %s37
      %p369 = scmp.eq.s32.totalorder %s368, 0
      %s371 = sadd.s32 %s370, 1
      %s372 = scalar_select %p369, %s370, %s371
      %p375 = pneg %p369
      %p376 = scmp.eq.s32.totalorder %s30, 1
      %p377 = por %p375, %p376
      %p378 = scmp.ne.s32.totalorder %s370, %s373
      %p379 = scmp.eq.s32.totalorder %s30, 0
      %p380 = por %p378, %p379
      %p381 = scmp.ne.s32.totalorder %s370, %s373
      %p382 = scmp.eq.s32.totalorder %s35, 1
      %p383 = por %p381, %p382
      %p384 = scmp.ne.s32.totalorder %s373, %s374
      %p385 = scmp.eq.s32.totalorder %s35, 0
      %p386 = por %p384, %p385
      %p387 = scmp.ne.s32.totalorder %s373, %s374
      %p388 = scmp.eq.s32.totalorder %s36, 1
      %p389 = por %p387, %p388
      %p391 = scmp.ne.s32.totalorder %s374, %s390
      %p392 = scmp.eq.s32.totalorder %s36, 0
      %p393 = por %p391, %p392
      %p394 = scmp.le.s32.totalorder 1, %s30
      %p395 = scmp.lt.s32.totalorder %s30, 3
      %p396 = pnand %p394, %p395
      %p397 = pneg %p396
      // Predicated region
      $region9: #{data_value_evaluator_forward.1} parent=5 // pred_check
        _
      $region10: #{data_value_evaluator_forward.1} parent=5 // pred_check_branch
        %399 = sbr.rel (%p396) target = $region12
      $region11: #{data_value_evaluator_forward.1} parent=5 // pred_region
        %s400 = ssub.s32 %s30, 1
        // Predicated region
        $region13: #{data_value_evaluator_forward.1} parent=11 // pred_check
          %p401 = pneg %p129
        $region14: #{data_value_evaluator_forward.1} parent=11 // pred_check_branch
          %403 = sbr.rel (%p401) target = $region16
        $region15: #{data_value_evaluator_forward.1} parent=11 // pred_region
          %s405 = ssub.s32 1024, 1024
          %406 = vsyncadd [#allocation6], %s405
          %s407 = sshll.u32 [#allocation5], 4
          %s408 = int_to_ptr.vmem [resolvable:$true] %s407
          %413 = dma.hbm_to_vmem [thread:$0]  %s3, 1024, %s408, [#allocation6], 128, 128, 8
        $region16: #{data_value_evaluator_forward.1} parent=11 // pred_fallthru
          _
        // Predicated region
        $region17: #{data_value_evaluator_forward.1} parent=11 // pred_check
          %p414 = pneg %p150
        $region18: #{data_value_evaluator_forward.1} parent=11 // pred_check_branch
          %416 = sbr.rel (%p414) target = $region20
        $region19: #{data_value_evaluator_forward.1} parent=11 // pred_region
          %s418 = ssub.s32 1024, 1024
          %419 = vsyncadd [#allocation6], %s418
          %s420 = sshll.u32 [#allocation7], 4
          %s421 = int_to_ptr.vmem [resolvable:$true] %s420
          %426 = dma.hbm_to_vmem [thread:$0]  %s4, 1024, %s421, [#allocation6], 128, 128, 8
        $region20: #{data_value_evaluator_forward.1} parent=11 // pred_fallthru
          _
        // Predicated region
        $region21: #{data_value_evaluator_forward.1} parent=11 // pred_check
          %p427 = pneg %p171
        $region22: #{data_value_evaluator_forward.1} parent=11 // pred_check_branch
          %429 = sbr.rel (%p427) target = $region24
        $region23: #{data_value_evaluator_forward.1} parent=11 // pred_region
          %s431 = ssub.s32 16, 16
          %432 = vsyncadd [#allocation9], %s431
          %s434 = sshll.u32 [#allocation8], 4
          %s435 = int_to_ptr.vmem [resolvable:$true] %s434
          %437 = dma.hbm_to_vmem [thread:$0]  %s5, 16, %s435, [#allocation9]
        $region24: #{data_value_evaluator_forward.1} parent=11 // pred_fallthru
          _
        // Predicated region
        $region25: #{data_value_evaluator_forward.1} parent=11 // pred_check
          %p438 = pneg %p192
        $region26: #{data_value_evaluator_forward.1} parent=11 // pred_check_branch
          %440 = sbr.rel (%p438) target = $region28
        $region27: #{data_value_evaluator_forward.1} parent=11 // pred_region
          %s442 = ssub.s32 1664, 1664
          %443 = vsyncadd [#allocation9], %s442
          %s444 = sshll.u32 [#allocation10], 4
          %s445 = int_to_ptr.vmem [resolvable:$true] %s444
          %450 = dma.hbm_to_vmem [thread:$0]  %s6, 1664, %s445, [#allocation9], 128, 128, 8
        $region28: #{data_value_evaluator_forward.1} parent=11 // pred_fallthru
          _
        // Predicated region
        $region29: #{data_value_evaluator_forward.1} parent=11 // pred_check
          %p451 = pneg %p213
        $region30: #{data_value_evaluator_forward.1} parent=11 // pred_check_branch
          %453 = sbr.rel (%p451) target = $region32
        $region31: #{data_value_evaluator_forward.1} parent=11 // pred_region
          %s455 = ssub.s32 16, 16
          %456 = vsyncadd [#allocation12], %s455
          %s458 = sshll.u32 [#allocation11], 4
          %s459 = int_to_ptr.vmem [resolvable:$true] %s458
          %461 = dma.hbm_to_vmem [thread:$0]  %s7, 16, %s459, [#allocation12]
        $region32: #{data_value_evaluator_forward.1} parent=11 // pred_fallthru
          _
        // Predicated region
        $region33: #{data_value_evaluator_forward.1} parent=11 // pred_check
          %p462 = pneg %p234
        $region34: #{data_value_evaluator_forward.1} parent=11 // pred_check_branch
          %464 = sbr.rel (%p462) target = $region36
        $region35: #{data_value_evaluator_forward.1} parent=11 // pred_region
          _
        $region36: #{data_value_evaluator_forward.1} parent=11 // pred_fallthru
          _
        // Predicated region
        $region37: #{data_value_evaluator_forward.1} parent=11 // pred_check
          %p465 = pneg %p255
        $region38: #{data_value_evaluator_forward.1} parent=11 // pred_check_branch
          %467 = sbr.rel (%p465) target = $region40
        $region39: #{data_value_evaluator_forward.1} parent=11 // pred_region
          %s469 = ssub.s32 16, 16
          %470 = vsyncadd [#allocation12], %s469
          %s472 = sshll.u32 [#allocation13], 4
          %s473 = int_to_ptr.vmem [resolvable:$true] %s472
          %475 = dma.hbm_to_vmem [thread:$0]  %s9, 16, %s473, [#allocation12]
        $region40: #{data_value_evaluator_forward.1} parent=11 // pred_fallthru
          _
        // Predicated region
        $region41: #{data_value_evaluator_forward.1} parent=11 // pred_check
          %p476 = pneg %p276
        $region42: #{data_value_evaluator_forward.1} parent=11 // pred_check_branch
          %478 = sbr.rel (%p476) target = $region44
        $region43: #{data_value_evaluator_forward.1} parent=11 // pred_region
          _
        $region44: #{data_value_evaluator_forward.1} parent=11 // pred_fallthru
          _
        // Predicated region
        $region45: #{data_value_evaluator_forward.1} parent=11 // pred_check
          %p479 = pneg %p297
        $region46: #{data_value_evaluator_forward.1} parent=11 // pred_check_branch
          %481 = sbr.rel (%p479) target = $region48
        $region47: #{data_value_evaluator_forward.1} parent=11 // pred_region
          _
        $region48: #{data_value_evaluator_forward.1} parent=11 // pred_fallthru
          _
        // Predicated region
        $region49: #{data_value_evaluator_forward.1} parent=11 // pred_check
          %p482 = pneg %p318
        $region50: #{data_value_evaluator_forward.1} parent=11 // pred_check_branch
          %484 = sbr.rel (%p482) target = $region52
        $region51: #{data_value_evaluator_forward.1} parent=11 // pred_region
          %s486 = ssub.s32 16, 16
          %487 = vsyncadd [#allocation15], %s486
          %s489 = sshll.u32 [#allocation14], 4
          %s490 = int_to_ptr.vmem [resolvable:$true] %s489
          %492 = dma.hbm_to_vmem [thread:$0]  %s12, 16, %s490, [#allocation15]
        $region52: #{data_value_evaluator_forward.1} parent=11 // pred_fallthru
          _
        // Predicated region
        $region53: #{data_value_evaluator_forward.1} parent=11 // pred_check
          %p493 = pneg %p339
        $region54: #{data_value_evaluator_forward.1} parent=11 // pred_check_branch
          %495 = sbr.rel (%p493) target = $region56
        $region55: #{data_value_evaluator_forward.1} parent=11 // pred_region
          _
        $region56: #{data_value_evaluator_forward.1} parent=11 // pred_fallthru
          _
        // Predicated region
        $region57: #{data_value_evaluator_forward.1} parent=11 // pred_check
          %p496 = pneg %p360
        $region58: #{data_value_evaluator_forward.1} parent=11 // pred_check_branch
          %498 = sbr.rel (%p496) target = $region60
        $region59: #{data_value_evaluator_forward.1} parent=11 // pred_region
          _
        $region60: #{data_value_evaluator_forward.1} parent=11 // pred_fallthru
          _
      $region12: #{data_value_evaluator_forward.1} parent=5 // pred_fallthru
        _
      %p499 = scmp.lt.s32.totalorder %s30, 2
      // Predicated region
      $region61: #{data_value_evaluator_forward.1} parent=5 // pred_check
        %p500 = pneg %p499
      $region62: #{data_value_evaluator_forward.1} parent=5 // pred_check_branch
        %502 = sbr.rel (%p500) target = $region64
      $region63: #{data_value_evaluator_forward.1} parent=5 // pred_region
        // Predicated region
        $region65: #{data_value_evaluator_forward.1} parent=63 // pred_check
          %p503 = pneg %p50
        $region66: #{data_value_evaluator_forward.1} parent=63 // pred_check_branch
          %505 = sbr.rel (%p503) target = $region68
        $region67: #{data_value_evaluator_forward.1} parent=63 // pred_region
          %s506 = smul.u32 32, %s30
          %s507 = ssub.s32 38, %s506
          %p508 = scmp.lt.s32.totalorder %s507, 32
          %s509 = scalar_select %p508, %s507, 32
          %s510 = smul.u32 128, %s509
          %p511 = scmp.lt.s32.totalorder %s506, 37
          %s512 = scalar_select %p511, %s506, 37
          %s513 = smul.addr %s512, 8
          %s514 = scalar_lea.vmem %s0, %s513
          %s515 = smul.u32 32, %s30
          %s516 = ssub.s32 38, %s515
          %p517 = scmp.lt.s32.totalorder %s516, 32
          %s518 = scalar_select %p517, %s516, 32
          %s519 = smul.u32 128, %s518
        $region68: #{data_value_evaluator_forward.1} parent=63 // pred_fallthru
          _
        // Predicated region
        $region69: #{data_value_evaluator_forward.1} parent=63 // pred_check
          %p520 = pneg %p76
        $region70: #{data_value_evaluator_forward.1} parent=63 // pred_check_branch
          %522 = sbr.rel (%p520) target = $region72
        $region71: #{data_value_evaluator_forward.1} parent=63 // pred_region
          %s523 = smul.u32 32, %s30
          %s524 = ssub.s32 38, %s523
          %p525 = scmp.lt.s32.totalorder %s524, 32
          %s526 = scalar_select %p525, %s524, 32
          %s527 = smul.u32 128, %s526
          %p528 = scmp.lt.s32.totalorder %s523, 37
          %s529 = scalar_select %p528, %s523, 37
          %s530 = smul.addr %s529, 8
          %s531 = scalar_lea.vmem %s1, %s530
          %s532 = smul.u32 32, %s30
          %s533 = ssub.s32 38, %s532
          %p534 = scmp.lt.s32.totalorder %s533, 32
          %s535 = scalar_select %p534, %s533, 32
          %s536 = smul.u32 128, %s535
        $region72: #{data_value_evaluator_forward.1} parent=63 // pred_fallthru
          _
        // Predicated region
        $region73: #{data_value_evaluator_forward.1} parent=63 // pred_check
          %p537 = pneg %p102
        $region74: #{data_value_evaluator_forward.1} parent=63 // pred_check_branch
          %539 = sbr.rel (%p537) target = $region76
        $region75: #{data_value_evaluator_forward.1} parent=63 // pred_region
          %s540 = sand.u32 %s92, 1
          %s541 = scalar_lea.sflag [#allocation4], %s540
          %s542 = sand.u32 %s92, 1
          %s543 = smul.addr %s542, 3584
          %s544 = scalar_lea.vmem [#allocation3], %s543
          %s545 = smul.u32 32, %s30
          %s546 = ssub.s32 38, %s545
          %p547 = scmp.lt.s32.totalorder %s546, 32
          %s548 = scalar_select %p547, %s546, 32
          %s549 = smul.u32 128, %s548
          %s550 = smul.u32 %s549, 14
          %s552 = ssub.s32 57344, %s550
          %553 = vsyncadd %s541, %s552
          %p554 = scmp.ne.s32.totalorder 0, %s550
          %s555 = smul.addr %s545, 14
          %s556 = smul.addr %s555, 128
          %s557 = scalar_lea.hbm %s2, %s556
          %s558 = smul.u32 112, %s548
          %s559 = sshll.u32 %s544, 4
          %s560 = int_to_ptr.vmem [resolvable:$true] %s559
          %s561 = sshll.u32 %s558, 4
          %565 = dma.hbm_to_vmem [thread:$0]  (%p554), %s557, %s561, %s560, %s541, 1792, 1792, 112
        $region76: #{data_value_evaluator_forward.1} parent=63 // pred_fallthru
          _
      $region64: #{data_value_evaluator_forward.1} parent=5 // pred_fallthru
        _
      %p566 = scmp.le.s32.totalorder 1, %s30
      %p567 = scmp.lt.s32.totalorder %s30, 3
      %p568 = pnand %p566, %p567
      %p569 = pneg %p568
      // Predicated region
      $region77: #{data_value_evaluator_forward.1} parent=5 // pred_check
        _
      $region78: #{data_value_evaluator_forward.1} parent=5 // pred_check_branch
        %571 = sbr.rel (%p568) target = $region80
      $region79: #{data_value_evaluator_forward.1} parent=5 // pred_region
        %s572 = ssub.s32 %s30, 1
        %s573 = sand.u32 %s95, 1
        %s574 = scalar_lea.sflag [#allocation4], %s573
        %s575 = sand.u32 %s95, 1
        %s576 = smul.addr %s575, 3584
        %s577 = scalar_lea.vmem [#allocation3], %s576
        // Predicated region
        $region81: #{data_value_evaluator_forward.1} parent=79 // pred_check
          %p578 = pneg %p108
        $region82: #{data_value_evaluator_forward.1} parent=79 // pred_check_branch
          %580 = sbr.rel (%p578) target = $region84
        $region83: #{data_value_evaluator_forward.1} parent=79 // pred_region
          %581 = dma.done %s574, 57344
        $region84: #{data_value_evaluator_forward.1} parent=79 // pred_fallthru
          _
        // Predicated region
        $region85: #{data_value_evaluator_forward.1} parent=79 // pred_check
          %p582 = pneg %p129
        $region86: #{data_value_evaluator_forward.1} parent=79 // pred_check_branch
          %584 = sbr.rel (%p582) target = $region88
        $region87: #{data_value_evaluator_forward.1} parent=79 // pred_region
          %585 = dma.done [#allocation6], 1024
        $region88: #{data_value_evaluator_forward.1} parent=79 // pred_fallthru
          _
        // Predicated region
        $region89: #{data_value_evaluator_forward.1} parent=79 // pred_check
          %p586 = pneg %p150
        $region90: #{data_value_evaluator_forward.1} parent=79 // pred_check_branch
          %588 = sbr.rel (%p586) target = $region92
        $region91: #{data_value_evaluator_forward.1} parent=79 // pred_region
          %589 = dma.done [#allocation6], 1024
        $region92: #{data_value_evaluator_forward.1} parent=79 // pred_fallthru
          _
        // Predicated region
        $region93: #{data_value_evaluator_forward.1} parent=79 // pred_check
          %p590 = pneg %p171
        $region94: #{data_value_evaluator_forward.1} parent=79 // pred_check_branch
          %592 = sbr.rel (%p590) target = $region96
        $region95: #{data_value_evaluator_forward.1} parent=79 // pred_region
          %593 = dma.done [#allocation9], 16
        $region96: #{data_value_evaluator_forward.1} parent=79 // pred_fallthru
          _
        // Predicated region
        $region97: #{data_value_evaluator_forward.1} parent=79 // pred_check
          %p594 = pneg %p192
        $region98: #{data_value_evaluator_forward.1} parent=79 // pred_check_branch
          %596 = sbr.rel (%p594) target = $region100
        $region99: #{data_value_evaluator_forward.1} parent=79 // pred_region
          %597 = dma.done [#allocation9], 1664
        $region100: #{data_value_evaluator_forward.1} parent=79 // pred_fallthru
          _
        // Predicated region
        $region101: #{data_value_evaluator_forward.1} parent=79 // pred_check
          %p598 = pneg %p213
        $region102: #{data_value_evaluator_forward.1} parent=79 // pred_check_branch
          %600 = sbr.rel (%p598) target = $region104
        $region103: #{data_value_evaluator_forward.1} parent=79 // pred_region
          %601 = dma.done [#allocation12], 16
        $region104: #{data_value_evaluator_forward.1} parent=79 // pred_fallthru
          _
        // Predicated region
        $region105: #{data_value_evaluator_forward.1} parent=79 // pred_check
          %p602 = pneg %p255
        $region106: #{data_value_evaluator_forward.1} parent=79 // pred_check_branch
          %604 = sbr.rel (%p602) target = $region108
        $region107: #{data_value_evaluator_forward.1} parent=79 // pred_region
          %605 = dma.done [#allocation12], 16
        $region108: #{data_value_evaluator_forward.1} parent=79 // pred_fallthru
          _
        // Predicated region
        $region109: #{data_value_evaluator_forward.1} parent=79 // pred_check
          %p606 = pneg %p318
        $region110: #{data_value_evaluator_forward.1} parent=79 // pred_check_branch
          %608 = sbr.rel (%p606) target = $region112
        $region111: #{data_value_evaluator_forward.1} parent=79 // pred_region
          %609 = dma.done [#allocation15], 16
        $region112: #{data_value_evaluator_forward.1} parent=79 // pred_fallthru
          _
        %s610 = smul.u32 32, %s35
        %s611 = ssub.s32 38, %s610
        %p612 = scmp.lt.s32.totalorder %s611, 32
        %s613 = scalar_select %p612, %s611, 32
        %s614 = smul.u32 128, %s613
        %p615 = scmp.lt.s32.totalorder %s610, 37
        %s616 = scalar_select %p615, %s610, 37
        %s617 = smul.addr %s616, 8
        %s618 = scalar_lea.vmem %s0, %s617
        %p619 = pneg %p56
        %p620 = pneg %p53
        %s621 = smul.u32 32, %s35
        %s622 = ssub.s32 38, %s621
        %p623 = scmp.lt.s32.totalorder %s622, 32
        %s624 = scalar_select %p623, %s622, 32
        %s625 = smul.u32 128, %s624
        %p626 = scmp.lt.s32.totalorder %s621, 37
        %s627 = scalar_select %p626, %s621, 37
        %s628 = smul.addr %s627, 8
        %s629 = scalar_lea.vmem %s1, %s628
        %p630 = pneg %p82
        %p631 = pneg %p79
        %s632 = sand.u32 %s95, 1
        %s633 = scalar_lea.sflag [#allocation4], %s632
        %s634 = sand.u32 %s95, 1
        %s635 = smul.addr %s634, 3584
        %s636 = scalar_lea.vmem [#allocation3], %s635
        %p637 = pneg %p108
        %p638 = pneg %p105
        %p639 = pneg %p129
        %p640 = pneg %p126
        %p641 = pneg %p150
        %p642 = pneg %p147
        %p643 = pneg %p171
        %p644 = pneg %p168
        %p645 = pneg %p192
        %p646 = pneg %p189
        %p647 = pneg %p213
        %p648 = pneg %p210
        %p649 = pneg %p234
        %p650 = pneg %p231
        %p651 = pneg %p255
        %p652 = pneg %p252
        %p653 = pneg %p276
        %p654 = pneg %p273
        %p655 = pneg %p297
        %p656 = pneg %p294
        %p657 = pneg %p318
        %p658 = pneg %p315
        %p659 = pneg %p339
        %p660 = pneg %p336
        %p661 = pneg %p360
        %p662 = pneg %p357
        %p663 = pneg %p386
        %p664 = pneg %p383
        %s665 = sand.u32 %s373, 1
        %s666 = sand.u32 %s373, 1
        %s667 = smul.addr %s666, 256
        %s668 = scalar_lea.vmem [#allocation16], %s667
        %s669 = smul.u32 32, %s35
        %s670 = ssub.s32 38, %s669
        %p671 = scmp.lt.s32.totalorder %s670, 32
        %s672 = scalar_select %p671, %s670, 32
        %s673 = smul.u32 128, %s672
        %p674 = scmp.lt.s32.totalorder %s669, 37
        %s675 = scalar_select %p674, %s669, 37
        %s676 = smul.addr %s675, 8
        %s677 = scalar_lea.vmem %s0, %s676
        %s678 = smul.u32 32, %s35
        %s679 = ssub.s32 38, %s678
        %p680 = scmp.lt.s32.totalorder %s679, 32
        %s681 = scalar_select %p680, %s679, 32
        %s682 = smul.u32 128, %s681
        %s683 = smul.u32 32, %s35
        %s684 = ssub.s32 38, %s683
        %p685 = scmp.lt.s32.totalorder %s684, 32
        %s686 = scalar_select %p685, %s684, 32
        %s687 = smul.u32 128, %s686
        %p688 = scmp.lt.s32.totalorder %s683, 37
        %s689 = scalar_select %p688, %s683, 37
        %s690 = smul.addr %s689, 8
        %s691 = scalar_lea.vmem %s1, %s690
        %s692 = smul.u32 32, %s35
        %s693 = ssub.s32 38, %s692
        %p694 = scmp.lt.s32.totalorder %s693, 32
        %s695 = scalar_select %p694, %s693, 32
        %s696 = smul.u32 128, %s695
        %s697 = smul.u32 32, %s35
        %s698 = ssub.s32 38, %s697
        %p699 = scmp.lt.s32.totalorder %s698, 32
        %s700 = scalar_select %p699, %s698, 32
        %s701 = smul.u32 128, %s700
        %s702 = smul.u32 %s701, 14
        %s703 = smul.u32 32, %s35
        %s704 = ssub.s32 38, %s703
        %p705 = scmp.lt.s32.totalorder %s704, 32
        %s706 = scalar_select %p705, %s704, 32
        %s707 = smul.u32 128, %s706
        %v708 = vld [vmem:[%s677] sm:$0xff]
        %v709 = vld [vmem:[%s677 + $0x8] sm:$0xff]
        %v710 = vld [vmem:[%s677 + $0x10] sm:$0xff]
        %v711 = vld [vmem:[%s677 + $0x18] sm:$0xff]
        %v712 = vld [vmem:[%s677 + $0x20] sm:$0xff]
        %v713 = vld [vmem:[%s677 + $0x28] sm:$0xff]
        %v714 = vld [vmem:[%s677 + $0x30] sm:$0xff]
        %v715 = vld [vmem:[%s677 + $0x38] sm:$0xff]
        %v716 = vld [vmem:[%s677 + $0x40] sm:$0xff]
        %v717 = vld [vmem:[%s677 + $0x48] sm:$0xff]
        %v718 = vld [vmem:[%s677 + $0x50] sm:$0xff]
        %v719 = vld [vmem:[%s677 + $0x58] sm:$0xff]
        %v720 = vld [vmem:[%s677 + $0x60] sm:$0xff]
        %v721 = vld [vmem:[%s677 + $0x68] sm:$0xff]
        %v722 = vld [vmem:[%s677 + $0x70] sm:$0xff]
        %v723 = vld [vmem:[%s677 + $0x78] sm:$0xff]
        %v724 = vld [vmem:[%s677 + $0x80] sm:$0xff]
        %v725 = vld [vmem:[%s677 + $0x88] sm:$0xff]
        %v726 = vld [vmem:[%s677 + $0x90] sm:$0xff]
        %v727 = vld [vmem:[%s677 + $0x98] sm:$0xff]
        %v728 = vld [vmem:[%s677 + $0xa0] sm:$0xff]
        %v729 = vld [vmem:[%s677 + $0xa8] sm:$0xff]
        %v730 = vld [vmem:[%s677 + $0xb0] sm:$0xff]
        %v731 = vld [vmem:[%s677 + $0xb8] sm:$0xff]
        %v732 = vld [vmem:[%s677 + $0xc0] sm:$0xff]
        %v733 = vld [vmem:[%s677 + $0xc8] sm:$0xff]
        %v734 = vld [vmem:[%s677 + $0xd0] sm:$0xff]
        %v735 = vld [vmem:[%s677 + $0xd8] sm:$0xff]
        %v736 = vld [vmem:[%s677 + $0xe0] sm:$0xff]
        %v737 = vld [vmem:[%s677 + $0xe8] sm:$0xff]
        %v738 = vld [vmem:[%s677 + $0xf0] sm:$0xff]
        %v739 = vld [vmem:[%s677 + $0xf8] sm:$0xff]
        %v740 = vld [vmem:[#allocation5] sm:$0xff]
        %v741 = vld [vmem:[#allocation5 + $0x8] sm:$0xff]
        %v742 = vld [vmem:[#allocation5 + $0x10] sm:$0xff]
        %v743 = vld [vmem:[#allocation5 + $0x18] sm:$0xff]
        %v744 = vld [vmem:[#allocation5 + $0x20] sm:$0xff]
        %v745 = vld [vmem:[#allocation5 + $0x28] sm:$0xff]
        %v746 = vld [vmem:[#allocation5 + $0x30] sm:$0xff]
        %v747 = vld [vmem:[#allocation5 + $0x38] sm:$0xff]
        %v748 = vld [vmem:[%s691] sm:$0xff]
        %v749 = vld [vmem:[%s691 + $0x8] sm:$0xff]
        %v750 = vld [vmem:[%s691 + $0x10] sm:$0xff]
        %v751 = vld [vmem:[%s691 + $0x18] sm:$0xff]
        %v752 = vld [vmem:[%s691 + $0x20] sm:$0xff]
        %v753 = vld [vmem:[%s691 + $0x28] sm:$0xff]
        %v754 = vld [vmem:[%s691 + $0x30] sm:$0xff]
        %v755 = vld [vmem:[%s691 + $0x38] sm:$0xff]
        %v756 = vld [vmem:[%s691 + $0x40] sm:$0xff]
        %v757 = vld [vmem:[%s691 + $0x48] sm:$0xff]
        %v758 = vld [vmem:[%s691 + $0x50] sm:$0xff]
        %v759 = vld [vmem:[%s691 + $0x58] sm:$0xff]
        %v760 = vld [vmem:[%s691 + $0x60] sm:$0xff]
        %v761 = vld [vmem:[%s691 + $0x68] sm:$0xff]
        %v762 = vld [vmem:[%s691 + $0x70] sm:$0xff]
        %v763 = vld [vmem:[%s691 + $0x78] sm:$0xff]
        %v764 = vld [vmem:[%s691 + $0x80] sm:$0xff]
        %v765 = vld [vmem:[%s691 + $0x88] sm:$0xff]
        %v766 = vld [vmem:[%s691 + $0x90] sm:$0xff]
        %v767 = vld [vmem:[%s691 + $0x98] sm:$0xff]
        %v768 = vld [vmem:[%s691 + $0xa0] sm:$0xff]
        %v769 = vld [vmem:[%s691 + $0xa8] sm:$0xff]
        %v770 = vld [vmem:[%s691 + $0xb0] sm:$0xff]
        %v771 = vld [vmem:[%s691 + $0xb8] sm:$0xff]
        %v772 = vld [vmem:[%s691 + $0xc0] sm:$0xff]
        %v773 = vld [vmem:[%s691 + $0xc8] sm:$0xff]
        %v774 = vld [vmem:[%s691 + $0xd0] sm:$0xff]
        %v775 = vld [vmem:[%s691 + $0xd8] sm:$0xff]
        %v776 = vld [vmem:[%s691 + $0xe0] sm:$0xff]
        %v777 = vld [vmem:[%s691 + $0xe8] sm:$0xff]
        %v778 = vld [vmem:[%s691 + $0xf0] sm:$0xff]
        %v779 = vld [vmem:[%s691 + $0xf8] sm:$0xff]
        %v780 = vld [vmem:[#allocation7] sm:$0xff]
        %v781 = vld [vmem:[#allocation7 + $0x8] sm:$0xff]
        %v782 = vld [vmem:[#allocation7 + $0x10] sm:$0xff]
        %v783 = vld [vmem:[#allocation7 + $0x18] sm:$0xff]
        %v784 = vld [vmem:[#allocation7 + $0x20] sm:$0xff]
        %v785 = vld [vmem:[#allocation7 + $0x28] sm:$0xff]
        %v786 = vld [vmem:[#allocation7 + $0x30] sm:$0xff]
        %v787 = vld [vmem:[#allocation7 + $0x38] sm:$0xff]
        %vm788 = vcmask 523264
        %v790 = vsel %vm788, %v748, 0
        %v793 = vsel %vm788, %v749, 0
        %v796 = vsel %vm788, %v750, 0
        %v799 = vsel %vm788, %v751, 0
        %v802 = vsel %vm788, %v752, 0
        %v805 = vsel %vm788, %v753, 0
        %v808 = vsel %vm788, %v754, 0
        %v811 = vsel %vm788, %v755, 0
        %v814 = vsel %vm788, %v756, 0
        %v817 = vsel %vm788, %v757, 0
        %v820 = vsel %vm788, %v758, 0
        %v823 = vsel %vm788, %v759, 0
        %v826 = vsel %vm788, %v760, 0
        %v829 = vsel %vm788, %v761, 0
        %v832 = vsel %vm788, %v762, 0
        %v835 = vsel %vm788, %v763, 0
        %v838 = vsel %vm788, %v764, 0
        %v841 = vsel %vm788, %v765, 0
        %v844 = vsel %vm788, %v766, 0
        %v847 = vsel %vm788, %v767, 0
        %v850 = vsel %vm788, %v768, 0
        %v853 = vsel %vm788, %v769, 0
        %v856 = vsel %vm788, %v770, 0
        %v859 = vsel %vm788, %v771, 0
        %v862 = vsel %vm788, %v772, 0
        %v865 = vsel %vm788, %v773, 0
        %v868 = vsel %vm788, %v774, 0
        %v871 = vsel %vm788, %v775, 0
        %v874 = vsel %vm788, %v776, 0
        %v877 = vsel %vm788, %v777, 0
        %v880 = vsel %vm788, %v778, 0
        %v883 = vsel %vm788, %v779, 0
        %885 = vmatprep.subr.mxu0 0.0
        %886 = vmatpush1.msra.mxu0 %v780
        %887 = vmatprep.subr.mxu0 0.0
        %888 = vmatpush1.msra.mxu0 %v781
        %889 = vmatprep.subr.mxu0 0.0
        %890 = vmatpush1.msra.mxu0 %v782
        %891 = vmatprep.subr.mxu0 0.0
        %892 = vmatpush1.msra.mxu0 %v783
        %893 = vmatprep.subr.mxu0 0.0
        %894 = vmatpush1.msra.mxu0 %v784
        %895 = vmatprep.subr.mxu0 0.0
        %896 = vmatpush1.msra.mxu0 %v785
        %897 = vmatprep.subr.mxu0 0.0
        %898 = vmatpush1.msra.mxu0 %v786
        %899 = vmatprep.subr.mxu0 0.0
        %900 = vmatpush1.msra.mxu0 %v787
        %901 = vmatprep.subr.mxu0 0.0
        %902 = vmatpush1.msra.mxu0 0.0
        %903 = vmatprep.subr.mxu0 0.0
        %904 = vmatpush1.msra.mxu0 0.0
        %905 = vmatprep.subr.mxu0 0.0
        %906 = vmatpush1.msra.mxu0 0.0
        %907 = vmatprep.subr.mxu0 0.0
        %908 = vmatpush1.msra.mxu0 0.0
        %909 = vmatprep.subr.mxu0 0.0
        %910 = vmatpush1.msra.mxu0 0.0
        %911 = vmatprep.subr.mxu0 0.0
        %912 = vmatpush1.msra.mxu0 0.0
        %913 = vmatprep.subr.mxu0 0.0
        %914 = vmatpush1.msra.mxu0 0.0
        %915 = vmatprep.subr.mxu0 0.0
        %916 = vmatpush1.msra.mxu0 0.0
        %917 = vmatprep.subr.mxu0 0.0
        %918 = vmatpush1.msra.mxu0 0.0
        %919 = vmatprep.subr.mxu0 0.0
        %920 = vmatpush1.msra.mxu0 0.0
        %921 = vmatprep.subr.mxu0 0.0
        %922 = vmatpush1.msra.mxu0 0.0
        %923 = vmatprep.subr.mxu0 0.0
        %924 = vmatpush1.msra.mxu0 0.0
        %925 = vmatprep.subr.mxu0 0.0
        %926 = vmatpush1.msra.mxu0 0.0
        %927 = vmatprep.subr.mxu0 0.0
        %928 = vmatpush1.msra.mxu0 0.0
        %929 = vmatprep.subr.mxu0 0.0
        %930 = vmatpush1.msra.mxu0 0.0
        %931 = vmatprep.subr.mxu0 0.0
        %932 = vmatpush1.msra.mxu0 0.0
        %933 = vmatprep.subr.mxu0 0.0
        %934 = vmatpush1.msra.mxu0 0.0
        %935 = vmatprep.subr.mxu0 0.0
        %936 = vmatpush1.msra.mxu0 0.0
        %937 = vmatprep.subr.mxu0 0.0
        %938 = vmatpush1.msra.mxu0 0.0
        %939 = vmatprep.subr.mxu0 0.0
        %940 = vmatpush1.msra.mxu0 0.0
        %941 = vmatprep.subr.mxu0 0.0
        %942 = vmatpush1.msra.mxu0 0.0
        %943 = vmatprep.subr.mxu0 0.0
        %944 = vmatpush1.msra.mxu0 0.0
        %945 = vmatprep.subr.mxu0 0.0
        %946 = vmatpush1.msra.mxu0 0.0
        %947 = vmatprep.subr.mxu0 0.0
        %948 = vmatpush1.msra.mxu0 0.0
        %949 = vmatprep.mubr.f32.mxu0 0.0
        %950 = vmatmul.mubr.f32.gmra.mrb[0].mxu0 %v790
        %v951 = vpop.f32.mrb[0].mxu0
        %v952 = vadd.f32 0.0, %v951
        %v953 = vpop.f32.mrb[0].mxu0
        %954 = vmatprep.mubr.f32.mxu0 0.0
        %955 = vmatmul.mubr.f32.gmra.mrb[0].mxu0 %v793
        %v956 = vpop.f32.mrb[0].mxu0
        %v957 = vadd.f32 0.0, %v956
        %v958 = vpop.f32.mrb[0].mxu0
        %959 = vmatprep.mubr.f32.mxu0 0.0
        %960 = vmatmul.mubr.f32.gmra.mrb[0].mxu0 %v796
        %v961 = vpop.f32.mrb[0].mxu0
        %v962 = vadd.f32 0.0, %v961
        %v963 = vpop.f32.mrb[0].mxu0
        %964 = vmatprep.mubr.f32.mxu0 0.0
        %965 = vmatmul.mubr.f32.gmra.mrb[0].mxu0 %v799
        %v966 = vpop.f32.mrb[0].mxu0
        %v967 = vadd.f32 0.0, %v966
        %v968 = vpop.f32.mrb[0].mxu0
        %969 = vmatprep.mubr.f32.mxu0 0.0
        %970 = vmatmul.mubr.f32.gmra.mrb[0].mxu0 %v802
        %v971 = vpop.f32.mrb[0].mxu0
        %v972 = vadd.f32 0.0, %v971
        %v973 = vpop.f32.mrb[0].mxu0
        %974 = vmatprep.mubr.f32.mxu0 0.0
        %975 = vmatmul.mubr.f32.gmra.mrb[0].mxu0 %v805
        %v976 = vpop.f32.mrb[0].mxu0
        %v977 = vadd.f32 0.0, %v976
        %v978 = vpop.f32.mrb[0].mxu0
        %979 = vmatprep.mubr.f32.mxu0 0.0
        %980 = vmatmul.mubr.f32.gmra.mrb[0].mxu0 %v808
        %v981 = vpop.f32.mrb[0].mxu0
        %v982 = vadd.f32 0.0, %v981
        %v983 = vpop.f32.mrb[0].mxu0
        %984 = vmatprep.mubr.f32.mxu0 0.0
        %985 = vmatmul.mubr.f32.gmra.mrb[0].mxu0 %v811
        %v986 = vpop.f32.mrb[0].mxu0
        %v987 = vadd.f32 0.0, %v986
        %v988 = vpop.f32.mrb[0].mxu0
        %989 = vmatprep.mubr.f32.mxu0 0.0
        %990 = vmatmul.mubr.f32.gmra.mrb[0].mxu0 %v814
        %v991 = vpop.f32.mrb[0].mxu0
        %v992 = vadd.f32 0.0, %v991
        %v993 = vpop.f32.mrb[0].mxu0
        %994 = vmatprep.mubr.f32.mxu0 0.0
        %995 = vmatmul.mubr.f32.gmra.mrb[0].mxu0 %v817
        %v996 = vpop.f32.mrb[0].mxu0
        %v997 = vadd.f32 0.0, %v996
        %v998 = vpop.f32.mrb[0].mxu0
        %999 = vmatprep.mubr.f32.mxu0 0.0
        %1000 = vmatmul.mubr.f32.gmra.mrb[0].mxu0 %v820
        %v1001 = vpop.f32.mrb[0].mxu0
        %v1002 = vadd.f32 0.0, %v1001
        %v1003 = vpop.f32.mrb[0].mxu0
        %1004 = vmatprep.mubr.f32.mxu0 0.0
        %1005 = vmatmul.mubr.f32.gmra.mrb[0].mxu0 %v823
        %v1006 = vpop.f32.mrb[0].mxu0
        %v1007 = vadd.f32 0.0, %v1006
        %v1008 = vpop.f32.mrb[0].mxu0
        %1009 = vmatprep.mubr.f32.mxu0 0.0
        %1010 = vmatmul.mubr.f32.gmra.mrb[0].mxu0 %v826
        %v1011 = vpop.f32.mrb[0].mxu0
        %v1012 = vadd.f32 0.0, %v1011
        %v1013 = vpop.f32.mrb[0].mxu0
        %1014 = vmatprep.mubr.f32.mxu0 0.0
        %1015 = vmatmul.mubr.f32.gmra.mrb[0].mxu0 %v829
        %v1016 = vpop.f32.mrb[0].mxu0
        %v1017 = vadd.f32 0.0, %v1016
        %v1018 = vpop.f32.mrb[0].mxu0
        %1019 = vmatprep.mubr.f32.mxu0 0.0
        %1020 = vmatmul.mubr.f32.gmra.mrb[0].mxu0 %v832
        %v1021 = vpop.f32.mrb[0].mxu0
        %v1022 = vadd.f32 0.0, %v1021
        %v1023 = vpop.f32.mrb[0].mxu0
        %1024 = vmatprep.mubr.f32.mxu0 0.0
        %1025 = vmatmul.mubr.f32.gmra.mrb[0].mxu0 %v835
        %v1026 = vpop.f32.mrb[0].mxu0
        %v1027 = vadd.f32 0.0, %v1026
        %v1028 = vpop.f32.mrb[0].mxu0
        %1029 = vmatprep.mubr.f32.mxu0 0.0
        %1030 = vmatmul.mubr.f32.gmra.mrb[0].mxu0 %v838
        %v1031 = vpop.f32.mrb[0].mxu0
        %v1032 = vadd.f32 0.0, %v1031
        %v1033 = vpop.f32.mrb[0].mxu0
        %1034 = vmatprep.mubr.f32.mxu0 0.0
        %1035 = vmatmul.mubr.f32.gmra.mrb[0].mxu0 %v841
        %v1036 = vpop.f32.mrb[0].mxu0
        %v1037 = vadd.f32 0.0, %v1036
        %v1038 = vpop.f32.mrb[0].mxu0
        %1039 = vmatprep.mubr.f32.mxu0 0.0
        %1040 = vmatmul.mubr.f32.gmra.mrb[0].mxu0 %v844
        %v1041 = vpop.f32.mrb[0].mxu0
        %v1042 = vadd.f32 0.0, %v1041
        %v1043 = vpop.f32.mrb[0].mxu0
        %1044 = vmatprep.mubr.f32.mxu0 0.0
        %1045 = vmatmul.mubr.f32.gmra.mrb[0].mxu0 %v847
        %v1046 = vpop.f32.mrb[0].mxu0
        %v1047 = vadd.f32 0.0, %v1046
        %v1048 = vpop.f32.mrb[0].mxu0
        %1049 = vmatprep.mubr.f32.mxu0 0.0
        %1050 = vmatmul.mubr.f32.gmra.mrb[0].mxu0 %v850
        %v1051 = vpop.f32.mrb[0].mxu0
        %v1052 = vadd.f32 0.0, %v1051
        %v1053 = vpop.f32.mrb[0].mxu0
        %1054 = vmatprep.mubr.f32.mxu0 0.0
        %1055 = vmatmul.mubr.f32.gmra.mrb[0].mxu0 %v853
        %v1056 = vpop.f32.mrb[0].mxu0
        %v1057 = vadd.f32 0.0, %v1056
        %v1058 = vpop.f32.mrb[0].mxu0
        %1059 = vmatprep.mubr.f32.mxu0 0.0
        %1060 = vmatmul.mubr.f32.gmra.mrb[0].mxu0 %v856
        %v1061 = vpop.f32.mrb[0].mxu0
        %v1062 = vadd.f32 0.0, %v1061
        %v1063 = vpop.f32.mrb[0].mxu0
        %1064 = vmatprep.mubr.f32.mxu0 0.0
        %1065 = vmatmul.mubr.f32.gmra.mrb[0].mxu0 %v859
        %v1066 = vpop.f32.mrb[0].mxu0
        %v1067 = vadd.f32 0.0, %v1066
        %v1068 = vpop.f32.mrb[0].mxu0
        %1069 = vmatprep.mubr.f32.mxu0 0.0
        %1070 = vmatmul.mubr.f32.gmra.mrb[0].mxu0 %v862
        %v1071 = vpop.f32.mrb[0].mxu0
        %v1072 = vadd.f32 0.0, %v1071
        %v1073 = vpop.f32.mrb[0].mxu0
        %1074 = vmatprep.mubr.f32.mxu0 0.0
        %1075 = vmatmul.mubr.f32.gmra.mrb[0].mxu0 %v865
        %v1076 = vpop.f32.mrb[0].mxu0
        %v1077 = vadd.f32 0.0, %v1076
        %v1078 = vpop.f32.mrb[0].mxu0
        %1079 = vmatprep.mubr.f32.mxu0 0.0
        %1080 = vmatmul.mubr.f32.gmra.mrb[0].mxu0 %v868
        %v1081 = vpop.f32.mrb[0].mxu0
        %v1082 = vadd.f32 0.0, %v1081
        %v1083 = vpop.f32.mrb[0].mxu0
        %1084 = vmatprep.mubr.f32.mxu0 0.0
        %1085 = vmatmul.mubr.f32.gmra.mrb[0].mxu0 %v871
        %v1086 = vpop.f32.mrb[0].mxu0
        %v1087 = vadd.f32 0.0, %v1086
        %v1088 = vpop.f32.mrb[0].mxu0
        %1089 = vmatprep.mubr.f32.mxu0 0.0
        %1090 = vmatmul.mubr.f32.gmra.mrb[0].mxu0 %v874
        %v1091 = vpop.f32.mrb[0].mxu0
        %v1092 = vadd.f32 0.0, %v1091
        %v1093 = vpop.f32.mrb[0].mxu0
        %1094 = vmatprep.mubr.f32.mxu0 0.0
        %1095 = vmatmul.mubr.f32.gmra.mrb[0].mxu0 %v877
        %v1096 = vpop.f32.mrb[0].mxu0
        %v1097 = vadd.f32 0.0, %v1096
        %v1098 = vpop.f32.mrb[0].mxu0
        %1099 = vmatprep.mubr.f32.mxu0 0.0
        %1100 = vmatmul.mubr.f32.gmra.mrb[0].mxu0 %v880
        %v1101 = vpop.f32.mrb[0].mxu0
        %v1102 = vadd.f32 0.0, %v1101
        %v1103 = vpop.f32.mrb[0].mxu0
        %1104 = vmatprep.mubr.f32.mxu0 0.0
        %1105 = vmatmul.mubr.f32.gmra.mrb[0].mxu0 %v883
        %v1106 = vpop.f32.mrb[0].mxu0
        %v1107 = vadd.f32 0.0, %v1106
        %v1108 = vpop.f32.mrb[0].mxu0
        %1109 = vdwg.mxu0
        %v1111 = vsel %vm788, %v708, 0
        %v1114 = vsel %vm788, %v709, 0
        %v1117 = vsel %vm788, %v710, 0
        %v1120 = vsel %vm788, %v711, 0
        %v1123 = vsel %vm788, %v712, 0
        %v1126 = vsel %vm788, %v713, 0
        %v1129 = vsel %vm788, %v714, 0
        %v1132 = vsel %vm788, %v715, 0
        %v1135 = vsel %vm788, %v716, 0
        %v1138 = vsel %vm788, %v717, 0
        %v1141 = vsel %vm788, %v718, 0
        %v1144 = vsel %vm788, %v719, 0
        %v1147 = vsel %vm788, %v720, 0
        %v1150 = vsel %vm788, %v721, 0
        %v1153 = vsel %vm788, %v722, 0
        %v1156 = vsel %vm788, %v723, 0
        %v1159 = vsel %vm788, %v724, 0
        %v1162 = vsel %vm788, %v725, 0
        %v1165 = vsel %vm788, %v726, 0
        %v1168 = vsel %vm788, %v727, 0
        %v1171 = vsel %vm788, %v728, 0
        %v1174 = vsel %vm788, %v729, 0
        %v1177 = vsel %vm788, %v730, 0
        %v1180 = vsel %vm788, %v731, 0
        %v1183 = vsel %vm788, %v732, 0
        %v1186 = vsel %vm788, %v733, 0
        %v1189 = vsel %vm788, %v734, 0
        %v1192 = vsel %vm788, %v735, 0
        %v1195 = vsel %vm788, %v736, 0
        %v1198 = vsel %vm788, %v737, 0
        %v1201 = vsel %vm788, %v738, 0
        %v1204 = vsel %vm788, %v739, 0
        %1206 = vmatprep.subr.mxu0 0.0
        %1207 = vmatpush1.msra.mxu0 %v740
        %1208 = vmatprep.subr.mxu0 0.0
        %1209 = vmatpush1.msra.mxu0 %v741
        %1210 = vmatprep.subr.mxu0 0.0
        %1211 = vmatpush1.msra.mxu0 %v742
        %1212 = vmatprep.subr.mxu0 0.0
        %1213 = vmatpush1.msra.mxu0 %v743
        %1214 = vmatprep.subr.mxu0 0.0
        %1215 = vmatpush1.msra.mxu0 %v744
        %1216 = vmatprep.subr.mxu0 0.0
        %1217 = vmatpush1.msra.mxu0 %v745
        %1218 = vmatprep.subr.mxu0 0.0
        %1219 = vmatpush1.msra.mxu0 %v746
        %1220 = vmatprep.subr.mxu0 0.0
        %1221 = vmatpush1.msra.mxu0 %v747
        %1222 = vmatprep.subr.mxu0 0.0
        %1223 = vmatpush1.msra.mxu0 0.0
        %1224 = vmatprep.subr.mxu0 0.0
        %1225 = vmatpush1.msra.mxu0 0.0
        %1226 = vmatprep.subr.mxu0 0.0
        %1227 = vmatpush1.msra.mxu0 0.0
        %1228 = vmatprep.subr.mxu0 0.0
        %1229 = vmatpush1.msra.mxu0 0.0
        %1230 = vmatprep.subr.mxu0 0.0
        %1231 = vmatpush1.msra.mxu0 0.0
        %1232 = vmatprep.subr.mxu0 0.0
        %1233 = vmatpush1.msra.mxu0 0.0
        %1234 = vmatprep.subr.mxu0 0.0
        %1235 = vmatpush1.msra.mxu0 0.0
        %1236 = vmatprep.subr.mxu0 0.0
        %1237 = vmatpush1.msra.mxu0 0.0
        %1238 = vmatprep.subr.mxu0 0.0
        %1239 = vmatpush1.msra.mxu0 0.0
        %1240 = vmatprep.subr.mxu0 0.0
        %1241 = vmatpush1.msra.mxu0 0.0
        %1242 = vmatprep.subr.mxu0 0.0
        %1243 = vmatpush1.msra.mxu0 0.0
        %1244 = vmatprep.subr.mxu0 0.0
        %1245 = vmatpush1.msra.mxu0 0.0
        %1246 = vmatprep.subr.mxu0 0.0
        %1247 = vmatpush1.msra.mxu0 0.0
        %1248 = vmatprep.subr.mxu0 0.0
        %1249 = vmatpush1.msra.mxu0 0.0
        %1250 = vmatprep.subr.mxu0 0.0
        %1251 = vmatpush1.msra.mxu0 0.0
        %1252 = vmatprep.subr.mxu0 0.0
        %1253 = vmatpush1.msra.mxu0 0.0
        %1254 = vmatprep.subr.mxu0 0.0
        %1255 = vmatpush1.msra.mxu0 0.0
        %1256 = vmatprep.subr.mxu0 0.0
        %1257 = vmatpush1.msra.mxu0 0.0
        %1258 = vmatprep.subr.mxu0 0.0
        %1259 = vmatpush1.msra.mxu0 0.0
        %1260 = vmatprep.subr.mxu0 0.0
        %1261 = vmatpush1.msra.mxu0 0.0
        %1262 = vmatprep.subr.mxu0 0.0
        %1263 = vmatpush1.msra.mxu0 0.0
        %1264 = vmatprep.subr.mxu0 0.0
        %1265 = vmatpush1.msra.mxu0 0.0
        %1266 = vmatprep.subr.mxu0 0.0
        %1267 = vmatpush1.msra.mxu0 0.0
        %1268 = vmatprep.subr.mxu0 0.0
        %1269 = vmatpush1.msra.mxu0 0.0
        %1270 = vmatprep.mubr.f32.mxu0 0.0
        %1271 = vmatmul.mubr.f32.gmra.mrb[0].mxu0 %v1111
        %v1272 = vpop.f32.mrb[0].mxu0
        %v1273 = vadd.f32 %v952, %v1272
        %v1274 = vpop.f32.mrb[0].mxu0
        %1275 = vmatprep.mubr.f32.mxu0 0.0
        %1276 = vmatmul.mubr.f32.gmra.mrb[0].mxu0 %v1114
        %v1277 = vpop.f32.mrb[0].mxu0
        %v1278 = vadd.f32 %v957, %v1277
        %v1279 = vpop.f32.mrb[0].mxu0
        %1280 = vmatprep.mubr.f32.mxu0 0.0
        %1281 = vmatmul.mubr.f32.gmra.mrb[0].mxu0 %v1117
        %v1282 = vpop.f32.mrb[0].mxu0
        %v1283 = vadd.f32 %v962, %v1282
        %v1284 = vpop.f32.mrb[0].mxu0
        %1285 = vmatprep.mubr.f32.mxu0 0.0
        %1286 = vmatmul.mubr.f32.gmra.mrb[0].mxu0 %v1120
        %v1287 = vpop.f32.mrb[0].mxu0
        %v1288 = vadd.f32 %v967, %v1287
        %v1289 = vpop.f32.mrb[0].mxu0
        %1290 = vmatprep.mubr.f32.mxu0 0.0
        %1291 = vmatmul.mubr.f32.gmra.mrb[0].mxu0 %v1123
        %v1292 = vpop.f32.mrb[0].mxu0
        %v1293 = vadd.f32 %v972, %v1292
        %v1294 = vpop.f32.mrb[0].mxu0
        %1295 = vmatprep.mubr.f32.mxu0 0.0
        %1296 = vmatmul.mubr.f32.gmra.mrb[0].mxu0 %v1126
        %v1297 = vpop.f32.mrb[0].mxu0
        %v1298 = vadd.f32 %v977, %v1297
        %v1299 = vpop.f32.mrb[0].mxu0
        %1300 = vmatprep.mubr.f32.mxu0 0.0
        %1301 = vmatmul.mubr.f32.gmra.mrb[0].mxu0 %v1129
        %v1302 = vpop.f32.mrb[0].mxu0
        %v1303 = vadd.f32 %v982, %v1302
        %v1304 = vpop.f32.mrb[0].mxu0
        %1305 = vmatprep.mubr.f32.mxu0 0.0
        %1306 = vmatmul.mubr.f32.gmra.mrb[0].mxu0 %v1132
        %v1307 = vpop.f32.mrb[0].mxu0
        %v1308 = vadd.f32 %v987, %v1307
        %v1309 = vpop.f32.mrb[0].mxu0
        %1310 = vmatprep.mubr.f32.mxu0 0.0
        %1311 = vmatmul.mubr.f32.gmra.mrb[0].mxu0 %v1135
        %v1312 = vpop.f32.mrb[0].mxu0
        %v1313 = vadd.f32 %v992, %v1312
        %v1314 = vpop.f32.mrb[0].mxu0
        %1315 = vmatprep.mubr.f32.mxu0 0.0
        %1316 = vmatmul.mubr.f32.gmra.mrb[0].mxu0 %v1138
        %v1317 = vpop.f32.mrb[0].mxu0
        %v1318 = vadd.f32 %v997, %v1317
        %v1319 = vpop.f32.mrb[0].mxu0
        %1320 = vmatprep.mubr.f32.mxu0 0.0
        %1321 = vmatmul.mubr.f32.gmra.mrb[0].mxu0 %v1141
        %v1322 = vpop.f32.mrb[0].mxu0
        %v1323 = vadd.f32 %v1002, %v1322
        %v1324 = vpop.f32.mrb[0].mxu0
        %1325 = vmatprep.mubr.f32.mxu0 0.0
        %1326 = vmatmul.mubr.f32.gmra.mrb[0].mxu0 %v1144
        %v1327 = vpop.f32.mrb[0].mxu0
        %v1328 = vadd.f32 %v1007, %v1327
        %v1329 = vpop.f32.mrb[0].mxu0
        %1330 = vmatprep.mubr.f32.mxu0 0.0
        %1331 = vmatmul.mubr.f32.gmra.mrb[0].mxu0 %v1147
        %v1332 = vpop.f32.mrb[0].mxu0
        %v1333 = vadd.f32 %v1012, %v1332
        %v1334 = vpop.f32.mrb[0].mxu0
        %1335 = vmatprep.mubr.f32.mxu0 0.0
        %1336 = vmatmul.mubr.f32.gmra.mrb[0].mxu0 %v1150
        %v1337 = vpop.f32.mrb[0].mxu0
        %v1338 = vadd.f32 %v1017, %v1337
        %v1339 = vpop.f32.mrb[0].mxu0
        %1340 = vmatprep.mubr.f32.mxu0 0.0
        %1341 = vmatmul.mubr.f32.gmra.mrb[0].mxu0 %v1153
        %v1342 = vpop.f32.mrb[0].mxu0
        %v1343 = vadd.f32 %v1022, %v1342
        %v1344 = vpop.f32.mrb[0].mxu0
        %1345 = vmatprep.mubr.f32.mxu0 0.0
        %1346 = vmatmul.mubr.f32.gmra.mrb[0].mxu0 %v1156
        %v1347 = vpop.f32.mrb[0].mxu0
        %v1348 = vadd.f32 %v1027, %v1347
        %v1349 = vpop.f32.mrb[0].mxu0
        %1350 = vmatprep.mubr.f32.mxu0 0.0
        %1351 = vmatmul.mubr.f32.gmra.mrb[0].mxu0 %v1159
        %v1352 = vpop.f32.mrb[0].mxu0
        %v1353 = vadd.f32 %v1032, %v1352
        %v1354 = vpop.f32.mrb[0].mxu0
        %1355 = vmatprep.mubr.f32.mxu0 0.0
        %1356 = vmatmul.mubr.f32.gmra.mrb[0].mxu0 %v1162
        %v1357 = vpop.f32.mrb[0].mxu0
        %v1358 = vadd.f32 %v1037, %v1357
        %v1359 = vpop.f32.mrb[0].mxu0
        %1360 = vmatprep.mubr.f32.mxu0 0.0
        %1361 = vmatmul.mubr.f32.gmra.mrb[0].mxu0 %v1165
        %v1362 = vpop.f32.mrb[0].mxu0
        %v1363 = vadd.f32 %v1042, %v1362
        %v1364 = vpop.f32.mrb[0].mxu0
        %1365 = vmatprep.mubr.f32.mxu0 0.0
        %1366 = vmatmul.mubr.f32.gmra.mrb[0].mxu0 %v1168
        %v1367 = vpop.f32.mrb[0].mxu0
        %v1368 = vadd.f32 %v1047, %v1367
        %v1369 = vpop.f32.mrb[0].mxu0
        %1370 = vmatprep.mubr.f32.mxu0 0.0
        %1371 = vmatmul.mubr.f32.gmra.mrb[0].mxu0 %v1171
        %v1372 = vpop.f32.mrb[0].mxu0
        %v1373 = vadd.f32 %v1052, %v1372
        %v1374 = vpop.f32.mrb[0].mxu0
        %1375 = vmatprep.mubr.f32.mxu0 0.0
        %1376 = vmatmul.mubr.f32.gmra.mrb[0].mxu0 %v1174
        %v1377 = vpop.f32.mrb[0].mxu0
        %v1378 = vadd.f32 %v1057, %v1377
        %v1379 = vpop.f32.mrb[0].mxu0
        %1380 = vmatprep.mubr.f32.mxu0 0.0
        %1381 = vmatmul.mubr.f32.gmra.mrb[0].mxu0 %v1177
        %v1382 = vpop.f32.mrb[0].mxu0
        %v1383 = vadd.f32 %v1062, %v1382
        %v1384 = vpop.f32.mrb[0].mxu0
        %1385 = vmatprep.mubr.f32.mxu0 0.0
        %1386 = vmatmul.mubr.f32.gmra.mrb[0].mxu0 %v1180
        %v1387 = vpop.f32.mrb[0].mxu0
        %v1388 = vadd.f32 %v1067, %v1387
        %v1389 = vpop.f32.mrb[0].mxu0
        %1390 = vmatprep.mubr.f32.mxu0 0.0
        %1391 = vmatmul.mubr.f32.gmra.mrb[0].mxu0 %v1183
        %v1392 = vpop.f32.mrb[0].mxu0
        %v1393 = vadd.f32 %v1072, %v1392
        %v1394 = vpop.f32.mrb[0].mxu0
        %1395 = vmatprep.mubr.f32.mxu0 0.0
        %1396 = vmatmul.mubr.f32.gmra.mrb[0].mxu0 %v1186
        %v1397 = vpop.f32.mrb[0].mxu0
        %v1398 = vadd.f32 %v1077, %v1397
        %v1399 = vpop.f32.mrb[0].mxu0
        %1400 = vmatprep.mubr.f32.mxu0 0.0
        %1401 = vmatmul.mubr.f32.gmra.mrb[0].mxu0 %v1189
        %v1402 = vpop.f32.mrb[0].mxu0
        %v1403 = vadd.f32 %v1082, %v1402
        %v1404 = vpop.f32.mrb[0].mxu0
        %1405 = vmatprep.mubr.f32.mxu0 0.0
        %1406 = vmatmul.mubr.f32.gmra.mrb[0].mxu0 %v1192
        %v1407 = vpop.f32.mrb[0].mxu0
        %v1408 = vadd.f32 %v1087, %v1407
        %v1409 = vpop.f32.mrb[0].mxu0
        %1410 = vmatprep.mubr.f32.mxu0 0.0
        %1411 = vmatmul.mubr.f32.gmra.mrb[0].mxu0 %v1195
        %v1412 = vpop.f32.mrb[0].mxu0
        %v1413 = vadd.f32 %v1092, %v1412
        %v1414 = vpop.f32.mrb[0].mxu0
        %1415 = vmatprep.mubr.f32.mxu0 0.0
        %1416 = vmatmul.mubr.f32.gmra.mrb[0].mxu0 %v1198
        %v1417 = vpop.f32.mrb[0].mxu0
        %v1418 = vadd.f32 %v1097, %v1417
        %v1419 = vpop.f32.mrb[0].mxu0
        %1420 = vmatprep.mubr.f32.mxu0 0.0
        %1421 = vmatmul.mubr.f32.gmra.mrb[0].mxu0 %v1201
        %v1422 = vpop.f32.mrb[0].mxu0
        %v1423 = vadd.f32 %v1102, %v1422
        %v1424 = vpop.f32.mrb[0].mxu0
        %1425 = vmatprep.mubr.f32.mxu0 0.0
        %1426 = vmatmul.mubr.f32.gmra.mrb[0].mxu0 %v1204
        %v1427 = vpop.f32.mrb[0].mxu0
        %v1428 = vadd.f32 %v1107, %v1427
        %v1429 = vpop.f32.mrb[0].mxu0
        %1430 = vdwg.mxu0
        %v1431 = vld [vmem:[#allocation8] sm:$0x1]
        %v1433 = vlaneseq
        %v1434 = vshrl.u32 %v1433, 7
        %v1435 = vsub.s32 0, %v1434
        %v1436 = vrot.slane %v1431, %v1435
        %v1438 = vadd.f32 %v1273, %v1436
        %v1439 = vadd.f32 %v1278, %v1436
        %v1440 = vadd.f32 %v1283, %v1436
        %v1441 = vadd.f32 %v1288, %v1436
        %v1442 = vadd.f32 %v1293, %v1436
        %v1443 = vadd.f32 %v1298, %v1436
        %v1444 = vadd.f32 %v1303, %v1436
        %v1445 = vadd.f32 %v1308, %v1436
        %v1446 = vadd.f32 %v1313, %v1436
        %v1447 = vadd.f32 %v1318, %v1436
        %v1448 = vadd.f32 %v1323, %v1436
        %v1449 = vadd.f32 %v1328, %v1436
        %v1450 = vadd.f32 %v1333, %v1436
        %v1451 = vadd.f32 %v1338, %v1436
        %v1452 = vadd.f32 %v1343, %v1436
        %v1453 = vadd.f32 %v1348, %v1436
        %v1454 = vadd.f32 %v1353, %v1436
        %v1455 = vadd.f32 %v1358, %v1436
        %v1456 = vadd.f32 %v1363, %v1436
        %v1457 = vadd.f32 %v1368, %v1436
        %v1458 = vadd.f32 %v1373, %v1436
        %v1459 = vadd.f32 %v1378, %v1436
        %v1460 = vadd.f32 %v1383, %v1436
        %v1461 = vadd.f32 %v1388, %v1436
        %v1462 = vadd.f32 %v1393, %v1436
        %v1463 = vadd.f32 %v1398, %v1436
        %v1464 = vadd.f32 %v1403, %v1436
        %v1465 = vadd.f32 %v1408, %v1436
        %v1466 = vadd.f32 %v1413, %v1436
        %v1467 = vadd.f32 %v1418, %v1436
        %v1468 = vadd.f32 %v1423, %v1436
        %v1469 = vadd.f32 %v1428, %v1436
        %v1470 = vmax.f32 %v1438, 0.0
        %v1471 = vmax.f32 %v1439, 0.0
        %v1472 = vmax.f32 %v1440, 0.0
        %v1473 = vmax.f32 %v1441, 0.0
        %v1474 = vmax.f32 %v1442, 0.0
        %v1475 = vmax.f32 %v1443, 0.0
        %v1476 = vmax.f32 %v1444, 0.0
        %v1477 = vmax.f32 %v1445, 0.0
        %v1478 = vmax.f32 %v1446, 0.0
        %v1479 = vmax.f32 %v1447, 0.0
        %v1480 = vmax.f32 %v1448, 0.0
        %v1481 = vmax.f32 %v1449, 0.0
        %v1482 = vmax.f32 %v1450, 0.0
        %v1483 = vmax.f32 %v1451, 0.0
        %v1484 = vmax.f32 %v1452, 0.0
        %v1485 = vmax.f32 %v1453, 0.0
        %v1486 = vmax.f32 %v1454, 0.0
        %v1487 = vmax.f32 %v1455, 0.0
        %v1488 = vmax.f32 %v1456, 0.0
        %v1489 = vmax.f32 %v1457, 0.0
        %v1490 = vmax.f32 %v1458, 0.0
        %v1491 = vmax.f32 %v1459, 0.0
        %v1492 = vmax.f32 %v1460, 0.0
        %v1493 = vmax.f32 %v1461, 0.0
        %v1494 = vmax.f32 %v1462, 0.0
        %v1495 = vmax.f32 %v1463, 0.0
        %v1496 = vmax.f32 %v1464, 0.0
        %v1497 = vmax.f32 %v1465, 0.0
        %v1498 = vmax.f32 %v1466, 0.0
        %v1499 = vmax.f32 %v1467, 0.0
        %v1500 = vmax.f32 %v1468, 0.0
        %v1501 = vmax.f32 %v1469, 0.0
        %v1502 = vld [vmem:[#allocation10] sm:$0xff]
        %v1503 = vld [vmem:[#allocation10 + $0x8] sm:$0xff]
        %v1504 = vld [vmem:[#allocation10 + $0x10] sm:$0xff]
        %v1505 = vld [vmem:[#allocation10 + $0x18] sm:$0xff]
        %v1506 = vld [vmem:[#allocation10 + $0x20] sm:$0xff]
        %v1507 = vld [vmem:[#allocation10 + $0x28] sm:$0xff]
        %v1508 = vld [vmem:[#allocation10 + $0x30] sm:$0xff]
        %v1509 = vld [vmem:[#allocation10 + $0x38] sm:$0xff]
        %v1510 = vld [vmem:[#allocation10 + $0x40] sm:$0xff]
        %v1511 = vld [vmem:[#allocation10 + $0x48] sm:$0xff]
        %v1512 = vld [vmem:[#allocation10 + $0x50] sm:$0xff]
        %v1513 = vld [vmem:[#allocation10 + $0x58] sm:$0xff]
        %v1514 = vld [vmem:[#allocation10 + $0x60] sm:$0xf]
        %v1515 = vld [vmem:[#allocation11] sm:$0x1]
        %v1517 = vlaneseq
        %v1518 = vshrl.u32 %v1517, 7
        %v1519 = vsub.s32 0, %v1518
        %v1520 = vrot.slane %v1515, %v1519
        %vm1522 = vcmask 818176
        %v1524 = vsel %vm1522, %v1470, 0
        %v1527 = vsel %vm1522, %v1471, 0
        %v1530 = vsel %vm1522, %v1472, 0
        %v1533 = vsel %vm1522, %v1473, 0
        %v1536 = vsel %vm1522, %v1474, 0
        %v1539 = vsel %vm1522, %v1475, 0
        %v1542 = vsel %vm1522, %v1476, 0
        %v1545 = vsel %vm1522, %v1477, 0
        %v1548 = vsel %vm1522, %v1478, 0
        %v1551 = vsel %vm1522, %v1479, 0
        %v1554 = vsel %vm1522, %v1480, 0
        %v1557 = vsel %vm1522, %v1481, 0
        %v1560 = vsel %vm1522, %v1482, 0
        %v1563 = vsel %vm1522, %v1483, 0
        %v1566 = vsel %vm1522, %v1484, 0
        %v1569 = vsel %vm1522, %v1485, 0
        %v1572 = vsel %vm1522, %v1486, 0
        %v1575 = vsel %vm1522, %v1487, 0
        %v1578 = vsel %vm1522, %v1488, 0
        %v1581 = vsel %vm1522, %v1489, 0
        %v1584 = vsel %vm1522, %v1490, 0
        %v1587 = vsel %vm1522, %v1491, 0
        %v1590 = vsel %vm1522, %v1492, 0
        %v1593 = vsel %vm1522, %v1493, 0
        %v1596 = vsel %vm1522, %v1494, 0
        %v1599 = vsel %vm1522, %v1495, 0
        %v1602 = vsel %vm1522, %v1496, 0
        %v1605 = vsel %vm1522, %v1497, 0
        %v1608 = vsel %vm1522, %v1498, 0
        %v1611 = vsel %vm1522, %v1499, 0
        %v1614 = vsel %vm1522, %v1500, 0
        %v1617 = vsel %vm1522, %v1501, 0
        %vm1619 = vcmask 1043456
        %v1621 = vsel %vm1619, %v1514, 0
        %1623 = vmatprep.subr.mxu0 0.0
        %1624 = vmatpush1.msra.mxu0 %v1502
        %1625 = vmatprep.subr.mxu0 0.0
        %1626 = vmatpush1.msra.mxu0 %v1503
        %1627 = vmatprep.subr.mxu0 0.0
        %1628 = vmatpush1.msra.mxu0 %v1504
        %1629 = vmatprep.subr.mxu0 0.0
        %1630 = vmatpush1.msra.mxu0 %v1505
        %1631 = vmatprep.subr.mxu0 0.0
        %1632 = vmatpush1.msra.mxu0 %v1506
        %1633 = vmatprep.subr.mxu0 0.0
        %1634 = vmatpush1.msra.mxu0 %v1507
        %1635 = vmatprep.subr.mxu0 0.0
        %1636 = vmatpush1.msra.mxu0 %v1508
        %1637 = vmatprep.subr.mxu0 0.0
        %1638 = vmatpush1.msra.mxu0 %v1509
        %1639 = vmatprep.subr.mxu0 0.0
        %1640 = vmatpush1.msra.mxu0 %v1510
        %1641 = vmatprep.subr.mxu0 0.0
        %1642 = vmatpush1.msra.mxu0 %v1511
        %1643 = vmatprep.subr.mxu0 0.0
        %1644 = vmatpush1.msra.mxu0 %v1512
        %1645 = vmatprep.subr.mxu0 0.0
        %1646 = vmatpush1.msra.mxu0 %v1513
        %1647 = vmatprep.subr.mxu0 0.0
        %1648 = vmatpush1.msra.mxu0 %v1621
        %1649 = vmatprep.subr.mxu0 0.0
        %1650 = vmatpush1.msra.mxu0 0.0
        %1651 = vmatprep.subr.mxu0 0.0
        %1652 = vmatpush1.msra.mxu0 0.0
        %1653 = vmatprep.subr.mxu0 0.0
        %1654 = vmatpush1.msra.mxu0 0.0
        %1655 = vmatprep.subr.mxu0 0.0
        %1656 = vmatpush1.msra.mxu0 0.0
        %1657 = vmatprep.subr.mxu0 0.0
        %1658 = vmatpush1.msra.mxu0 0.0
        %1659 = vmatprep.subr.mxu0 0.0
        %1660 = vmatpush1.msra.mxu0 0.0
        %1661 = vmatprep.subr.mxu0 0.0
        %1662 = vmatpush1.msra.mxu0 0.0
        %1663 = vmatprep.subr.mxu0 0.0
        %1664 = vmatpush1.msra.mxu0 0.0
        %1665 = vmatprep.subr.mxu0 0.0
        %1666 = vmatpush1.msra.mxu0 0.0
        %1667 = vmatprep.subr.mxu0 0.0
        %1668 = vmatpush1.msra.mxu0 0.0
        %1669 = vmatprep.subr.mxu0 0.0
        %1670 = vmatpush1.msra.mxu0 0.0
        %1671 = vmatprep.subr.mxu0 0.0
        %1672 = vmatpush1.msra.mxu0 0.0
        %1673 = vmatprep.subr.mxu0 0.0
        %1674 = vmatpush1.msra.mxu0 0.0
        %1675 = vmatprep.subr.mxu0 0.0
        %1676 = vmatpush1.msra.mxu0 0.0
        %1677 = vmatprep.subr.mxu0 0.0
        %1678 = vmatpush1.msra.mxu0 0.0
        %1679 = vmatprep.subr.mxu0 0.0
        %1680 = vmatpush1.msra.mxu0 0.0
        %1681 = vmatprep.subr.mxu0 0.0
        %1682 = vmatpush1.msra.mxu0 0.0
        %1683 = vmatprep.subr.mxu0 0.0
        %1684 = vmatpush1.msra.mxu0 0.0
        %1685 = vmatprep.subr.mxu0 0.0
        %1686 = vmatpush1.msra.mxu0 0.0
        %1687 = vmatprep.mubr.f32.mxu0 0.0
        %1688 = vmatmul.mubr.f32.gmra.mrb[0].mxu0 %v1524
        %v1689 = vpop.f32.mrb[0].mxu0
        %v1690 = vadd.f32 %v1520, %v1689
        %v1691 = vpop.f32.mrb[0].mxu0
        %1692 = vmatprep.mubr.f32.mxu0 0.0
        %1693 = vmatmul.mubr.f32.gmra.mrb[0].mxu0 %v1527
        %v1694 = vpop.f32.mrb[0].mxu0
        %v1695 = vadd.f32 %v1520, %v1694
        %v1696 = vpop.f32.mrb[0].mxu0
        %1697 = vmatprep.mubr.f32.mxu0 0.0
        %1698 = vmatmul.mubr.f32.gmra.mrb[0].mxu0 %v1530
        %v1699 = vpop.f32.mrb[0].mxu0
        %v1700 = vadd.f32 %v1520, %v1699
        %v1701 = vpop.f32.mrb[0].mxu0
        %1702 = vmatprep.mubr.f32.mxu0 0.0
        %1703 = vmatmul.mubr.f32.gmra.mrb[0].mxu0 %v1533
        %v1704 = vpop.f32.mrb[0].mxu0
        %v1705 = vadd.f32 %v1520, %v1704
        %v1706 = vpop.f32.mrb[0].mxu0
        %1707 = vmatprep.mubr.f32.mxu0 0.0
        %1708 = vmatmul.mubr.f32.gmra.mrb[0].mxu0 %v1536
        %v1709 = vpop.f32.mrb[0].mxu0
        %v1710 = vadd.f32 %v1520, %v1709
        %v1711 = vpop.f32.mrb[0].mxu0
        %1712 = vmatprep.mubr.f32.mxu0 0.0
        %1713 = vmatmul.mubr.f32.gmra.mrb[0].mxu0 %v1539
        %v1714 = vpop.f32.mrb[0].mxu0
        %v1715 = vadd.f32 %v1520, %v1714
        %v1716 = vpop.f32.mrb[0].mxu0
        %1717 = vmatprep.mubr.f32.mxu0 0.0
        %1718 = vmatmul.mubr.f32.gmra.mrb[0].mxu0 %v1542
        %v1719 = vpop.f32.mrb[0].mxu0
        %v1720 = vadd.f32 %v1520, %v1719
        %v1721 = vpop.f32.mrb[0].mxu0
        %1722 = vmatprep.mubr.f32.mxu0 0.0
        %1723 = vmatmul.mubr.f32.gmra.mrb[0].mxu0 %v1545
        %v1724 = vpop.f32.mrb[0].mxu0
        %v1725 = vadd.f32 %v1520, %v1724
        %v1726 = vpop.f32.mrb[0].mxu0
        %1727 = vmatprep.mubr.f32.mxu0 0.0
        %1728 = vmatmul.mubr.f32.gmra.mrb[0].mxu0 %v1548
        %v1729 = vpop.f32.mrb[0].mxu0
        %v1730 = vadd.f32 %v1520, %v1729
        %v1731 = vpop.f32.mrb[0].mxu0
        %1732 = vmatprep.mubr.f32.mxu0 0.0
        %1733 = vmatmul.mubr.f32.gmra.mrb[0].mxu0 %v1551
        %v1734 = vpop.f32.mrb[0].mxu0
        %v1735 = vadd.f32 %v1520, %v1734
        %v1736 = vpop.f32.mrb[0].mxu0
        %1737 = vmatprep.mubr.f32.mxu0 0.0
        %1738 = vmatmul.mubr.f32.gmra.mrb[0].mxu0 %v1554
        %v1739 = vpop.f32.mrb[0].mxu0
        %v1740 = vadd.f32 %v1520, %v1739
        %v1741 = vpop.f32.mrb[0].mxu0
        %1742 = vmatprep.mubr.f32.mxu0 0.0
        %1743 = vmatmul.mubr.f32.gmra.mrb[0].mxu0 %v1557
        %v1744 = vpop.f32.mrb[0].mxu0
        %v1745 = vadd.f32 %v1520, %v1744
        %v1746 = vpop.f32.mrb[0].mxu0
        %1747 = vmatprep.mubr.f32.mxu0 0.0
        %1748 = vmatmul.mubr.f32.gmra.mrb[0].mxu0 %v1560
        %v1749 = vpop.f32.mrb[0].mxu0
        %v1750 = vadd.f32 %v1520, %v1749
        %v1751 = vpop.f32.mrb[0].mxu0
        %1752 = vmatprep.mubr.f32.mxu0 0.0
        %1753 = vmatmul.mubr.f32.gmra.mrb[0].mxu0 %v1563
        %v1754 = vpop.f32.mrb[0].mxu0
        %v1755 = vadd.f32 %v1520, %v1754
        %v1756 = vpop.f32.mrb[0].mxu0
        %1757 = vmatprep.mubr.f32.mxu0 0.0
        %1758 = vmatmul.mubr.f32.gmra.mrb[0].mxu0 %v1566
        %v1759 = vpop.f32.mrb[0].mxu0
        %v1760 = vadd.f32 %v1520, %v1759
        %v1761 = vpop.f32.mrb[0].mxu0
        %1762 = vmatprep.mubr.f32.mxu0 0.0
        %1763 = vmatmul.mubr.f32.gmra.mrb[0].mxu0 %v1569
        %v1764 = vpop.f32.mrb[0].mxu0
        %v1765 = vadd.f32 %v1520, %v1764
        %v1766 = vpop.f32.mrb[0].mxu0
        %1767 = vmatprep.mubr.f32.mxu0 0.0
        %1768 = vmatmul.mubr.f32.gmra.mrb[0].mxu0 %v1572
        %v1769 = vpop.f32.mrb[0].mxu0
        %v1770 = vadd.f32 %v1520, %v1769
        %v1771 = vpop.f32.mrb[0].mxu0
        %1772 = vmatprep.mubr.f32.mxu0 0.0
        %1773 = vmatmul.mubr.f32.gmra.mrb[0].mxu0 %v1575
        %v1774 = vpop.f32.mrb[0].mxu0
        %v1775 = vadd.f32 %v1520, %v1774
        %v1776 = vpop.f32.mrb[0].mxu0
        %1777 = vmatprep.mubr.f32.mxu0 0.0
        %1778 = vmatmul.mubr.f32.gmra.mrb[0].mxu0 %v1578
        %v1779 = vpop.f32.mrb[0].mxu0
        %v1780 = vadd.f32 %v1520, %v1779
        %v1781 = vpop.f32.mrb[0].mxu0
        %1782 = vmatprep.mubr.f32.mxu0 0.0
        %1783 = vmatmul.mubr.f32.gmra.mrb[0].mxu0 %v1581
        %v1784 = vpop.f32.mrb[0].mxu0
        %v1785 = vadd.f32 %v1520, %v1784
        %v1786 = vpop.f32.mrb[0].mxu0
        %1787 = vmatprep.mubr.f32.mxu0 0.0
        %1788 = vmatmul.mubr.f32.gmra.mrb[0].mxu0 %v1584
        %v1789 = vpop.f32.mrb[0].mxu0
        %v1790 = vadd.f32 %v1520, %v1789
        %v1791 = vpop.f32.mrb[0].mxu0
        %1792 = vmatprep.mubr.f32.mxu0 0.0
        %1793 = vmatmul.mubr.f32.gmra.mrb[0].mxu0 %v1587
        %v1794 = vpop.f32.mrb[0].mxu0
        %v1795 = vadd.f32 %v1520, %v1794
        %v1796 = vpop.f32.mrb[0].mxu0
        %1797 = vmatprep.mubr.f32.mxu0 0.0
        %1798 = vmatmul.mubr.f32.gmra.mrb[0].mxu0 %v1590
        %v1799 = vpop.f32.mrb[0].mxu0
        %v1800 = vadd.f32 %v1520, %v1799
        %v1801 = vpop.f32.mrb[0].mxu0
        %1802 = vmatprep.mubr.f32.mxu0 0.0
        %1803 = vmatmul.mubr.f32.gmra.mrb[0].mxu0 %v1593
        %v1804 = vpop.f32.mrb[0].mxu0
        %v1805 = vadd.f32 %v1520, %v1804
        %v1806 = vpop.f32.mrb[0].mxu0
        %1807 = vmatprep.mubr.f32.mxu0 0.0
        %1808 = vmatmul.mubr.f32.gmra.mrb[0].mxu0 %v1596
        %v1809 = vpop.f32.mrb[0].mxu0
        %v1810 = vadd.f32 %v1520, %v1809
        %v1811 = vpop.f32.mrb[0].mxu0
        %1812 = vmatprep.mubr.f32.mxu0 0.0
        %1813 = vmatmul.mubr.f32.gmra.mrb[0].mxu0 %v1599
        %v1814 = vpop.f32.mrb[0].mxu0
        %v1815 = vadd.f32 %v1520, %v1814
        %v1816 = vpop.f32.mrb[0].mxu0
        %1817 = vmatprep.mubr.f32.mxu0 0.0
        %1818 = vmatmul.mubr.f32.gmra.mrb[0].mxu0 %v1602
        %v1819 = vpop.f32.mrb[0].mxu0
        %v1820 = vadd.f32 %v1520, %v1819
        %v1821 = vpop.f32.mrb[0].mxu0
        %1822 = vmatprep.mubr.f32.mxu0 0.0
        %1823 = vmatmul.mubr.f32.gmra.mrb[0].mxu0 %v1605
        %v1824 = vpop.f32.mrb[0].mxu0
        %v1825 = vadd.f32 %v1520, %v1824
        %v1826 = vpop.f32.mrb[0].mxu0
        %1827 = vmatprep.mubr.f32.mxu0 0.0
        %1828 = vmatmul.mubr.f32.gmra.mrb[0].mxu0 %v1608
        %v1829 = vpop.f32.mrb[0].mxu0
        %v1830 = vadd.f32 %v1520, %v1829
        %v1831 = vpop.f32.mrb[0].mxu0
        %1832 = vmatprep.mubr.f32.mxu0 0.0
        %1833 = vmatmul.mubr.f32.gmra.mrb[0].mxu0 %v1611
        %v1834 = vpop.f32.mrb[0].mxu0
        %v1835 = vadd.f32 %v1520, %v1834
        %v1836 = vpop.f32.mrb[0].mxu0
        %1837 = vmatprep.mubr.f32.mxu0 0.0
        %1838 = vmatmul.mubr.f32.gmra.mrb[0].mxu0 %v1614
        %v1839 = vpop.f32.mrb[0].mxu0
        %v1840 = vadd.f32 %v1520, %v1839
        %v1841 = vpop.f32.mrb[0].mxu0
        %1842 = vmatprep.mubr.f32.mxu0 0.0
        %1843 = vmatmul.mubr.f32.gmra.mrb[0].mxu0 %v1617
        %v1844 = vpop.f32.mrb[0].mxu0
        %v1845 = vadd.f32 %v1520, %v1844
        %v1846 = vpop.f32.mrb[0].mxu0
        %1847 = vdwg.mxu0
        %v1848 = vmax.f32 %v1690, 0.0
        %v1849 = vmax.f32 %v1695, 0.0
        %v1850 = vmax.f32 %v1700, 0.0
        %v1851 = vmax.f32 %v1705, 0.0
        %v1852 = vmax.f32 %v1710, 0.0
        %v1853 = vmax.f32 %v1715, 0.0
        %v1854 = vmax.f32 %v1720, 0.0
        %v1855 = vmax.f32 %v1725, 0.0
        %v1856 = vmax.f32 %v1730, 0.0
        %v1857 = vmax.f32 %v1735, 0.0
        %v1858 = vmax.f32 %v1740, 0.0
        %v1859 = vmax.f32 %v1745, 0.0
        %v1860 = vmax.f32 %v1750, 0.0
        %v1861 = vmax.f32 %v1755, 0.0
        %v1862 = vmax.f32 %v1760, 0.0
        %v1863 = vmax.f32 %v1765, 0.0
        %v1864 = vmax.f32 %v1770, 0.0
        %v1865 = vmax.f32 %v1775, 0.0
        %v1866 = vmax.f32 %v1780, 0.0
        %v1867 = vmax.f32 %v1785, 0.0
        %v1868 = vmax.f32 %v1790, 0.0
        %v1869 = vmax.f32 %v1795, 0.0
        %v1870 = vmax.f32 %v1800, 0.0
        %v1871 = vmax.f32 %v1805, 0.0
        %v1872 = vmax.f32 %v1810, 0.0
        %v1873 = vmax.f32 %v1815, 0.0
        %v1874 = vmax.f32 %v1820, 0.0
        %v1875 = vmax.f32 %v1825, 0.0
        %v1876 = vmax.f32 %v1830, 0.0
        %v1877 = vmax.f32 %v1835, 0.0
        %v1878 = vmax.f32 %v1840, 0.0
        %v1879 = vmax.f32 %v1845, 0.0
        %v1880 = vld [vmem:[%s8] sm:$0xff]
        %v1881 = vld [vmem:[%s8 + $0x8] sm:$0xff]
        %v1882 = vld [vmem:[%s8 + $0x10] sm:$0xff]
        %v1883 = vld [vmem:[%s8 + $0x18] sm:$0xff]
        %v1884 = vld [vmem:[%s8 + $0x20] sm:$0xff]
        %v1885 = vld [vmem:[%s8 + $0x28] sm:$0xff]
        %v1886 = vld [vmem:[%s8 + $0x30] sm:$0xff]
        %v1887 = vld [vmem:[%s8 + $0x38] sm:$0xff]
        %v1888 = vld [vmem:[%s8 + $0x40] sm:$0xff]
        %v1889 = vld [vmem:[%s8 + $0x48] sm:$0xff]
        %v1890 = vld [vmem:[%s8 + $0x50] sm:$0xff]
        %v1891 = vld [vmem:[%s8 + $0x58] sm:$0xff]
        %v1892 = vld [vmem:[%s8 + $0x60] sm:$0xf]
        %v1893 = vld [vmem:[#allocation13] sm:$0x1]
        %v1895 = vlaneseq
        %v1896 = vshrl.u32 %v1895, 7
        %v1897 = vsub.s32 0, %v1896
        %v1898 = vrot.slane %v1893, %v1897
        %v1901 = vsel %vm1522, %v1848, 0
        %v1904 = vsel %vm1522, %v1849, 0
        %v1907 = vsel %vm1522, %v1850, 0
        %v1910 = vsel %vm1522, %v1851, 0
        %v1913 = vsel %vm1522, %v1852, 0
        %v1916 = vsel %vm1522, %v1853, 0
        %v1919 = vsel %vm1522, %v1854, 0
        %v1922 = vsel %vm1522, %v1855, 0
        %v1925 = vsel %vm1522, %v1856, 0
        %v1928 = vsel %vm1522, %v1857, 0
        %v1931 = vsel %vm1522, %v1858, 0
        %v1934 = vsel %vm1522, %v1859, 0
        %v1937 = vsel %vm1522, %v1860, 0
        %v1940 = vsel %vm1522, %v1861, 0
        %v1943 = vsel %vm1522, %v1862, 0
        %v1946 = vsel %vm1522, %v1863, 0
        %v1949 = vsel %vm1522, %v1864, 0
        %v1952 = vsel %vm1522, %v1865, 0
        %v1955 = vsel %vm1522, %v1866, 0
        %v1958 = vsel %vm1522, %v1867, 0
        %v1961 = vsel %vm1522, %v1868, 0
        %v1964 = vsel %vm1522, %v1869, 0
        %v1967 = vsel %vm1522, %v1870, 0
        %v1970 = vsel %vm1522, %v1871, 0
        %v1973 = vsel %vm1522, %v1872, 0
        %v1976 = vsel %vm1522, %v1873, 0
        %v1979 = vsel %vm1522, %v1874, 0
        %v1982 = vsel %vm1522, %v1875, 0
        %v1985 = vsel %vm1522, %v1876, 0
        %v1988 = vsel %vm1522, %v1877, 0
        %v1991 = vsel %vm1522, %v1878, 0
        %v1994 = vsel %vm1522, %v1879, 0
        %v1997 = vsel %vm1619, %v1892, 0
        %1999 = vmatprep.subr.mxu0 0.0
        %2000 = vmatpush1.msra.mxu0 %v1880
        %2001 = vmatprep.subr.mxu0 0.0
        %2002 = vmatpush1.msra.mxu0 %v1881
        %2003 = vmatprep.subr.mxu0 0.0
        %2004 = vmatpush1.msra.mxu0 %v1882
        %2005 = vmatprep.subr.mxu0 0.0
        %2006 = vmatpush1.msra.mxu0 %v1883
        %2007 = vmatprep.subr.mxu0 0.0
        %2008 = vmatpush1.msra.mxu0 %v1884
        %2009 = vmatprep.subr.mxu0 0.0
        %2010 = vmatpush1.msra.mxu0 %v1885
        %2011 = vmatprep.subr.mxu0 0.0
        %2012 = vmatpush1.msra.mxu0 %v1886
        %2013 = vmatprep.subr.mxu0 0.0
        %2014 = vmatpush1.msra.mxu0 %v1887
        %2015 = vmatprep.subr.mxu0 0.0
        %2016 = vmatpush1.msra.mxu0 %v1888
        %2017 = vmatprep.subr.mxu0 0.0
        %2018 = vmatpush1.msra.mxu0 %v1889
        %2019 = vmatprep.subr.mxu0 0.0
        %2020 = vmatpush1.msra.mxu0 %v1890
        %2021 = vmatprep.subr.mxu0 0.0
        %2022 = vmatpush1.msra.mxu0 %v1891
        %2023 = vmatprep.subr.mxu0 0.0
        %2024 = vmatpush1.msra.mxu0 %v1997
        %2025 = vmatprep.subr.mxu0 0.0
        %2026 = vmatpush1.msra.mxu0 0.0
        %2027 = vmatprep.subr.mxu0 0.0
        %2028 = vmatpush1.msra.mxu0 0.0
        %2029 = vmatprep.subr.mxu0 0.0
        %2030 = vmatpush1.msra.mxu0 0.0
        %2031 = vmatprep.subr.mxu0 0.0
        %2032 = vmatpush1.msra.mxu0 0.0
        %2033 = vmatprep.subr.mxu0 0.0
        %2034 = vmatpush1.msra.mxu0 0.0
        %2035 = vmatprep.subr.mxu0 0.0
        %2036 = vmatpush1.msra.mxu0 0.0
        %2037 = vmatprep.subr.mxu0 0.0
        %2038 = vmatpush1.msra.mxu0 0.0
        %2039 = vmatprep.subr.mxu0 0.0
        %2040 = vmatpush1.msra.mxu0 0.0
        %2041 = vmatprep.subr.mxu0 0.0
        %2042 = vmatpush1.msra.mxu0 0.0
        %2043 = vmatprep.subr.mxu0 0.0
        %2044 = vmatpush1.msra.mxu0 0.0
        %2045 = vmatprep.subr.mxu0 0.0
        %2046 = vmatpush1.msra.mxu0 0.0
        %2047 = vmatprep.subr.mxu0 0.0
        %2048 = vmatpush1.msra.mxu0 0.0
        %2049 = vmatprep.subr.mxu0 0.0
        %2050 = vmatpush1.msra.mxu0 0.0
        %2051 = vmatprep.subr.mxu0 0.0
        %2052 = vmatpush1.msra.mxu0 0.0
        %2053 = vmatprep.subr.mxu0 0.0
        %2054 = vmatpush1.msra.mxu0 0.0
        %2055 = vmatprep.subr.mxu0 0.0
        %2056 = vmatpush1.msra.mxu0 0.0
        %2057 = vmatprep.subr.mxu0 0.0
        %2058 = vmatpush1.msra.mxu0 0.0
        %2059 = vmatprep.subr.mxu0 0.0
        %2060 = vmatpush1.msra.mxu0 0.0
        %2061 = vmatprep.subr.mxu0 0.0
        %2062 = vmatpush1.msra.mxu0 0.0
        %2063 = vmatprep.mubr.f32.mxu0 0.0
        %2064 = vmatmul.mubr.f32.gmra.mrb[0].mxu0 %v1901
        %v2065 = vpop.f32.mrb[0].mxu0
        %v2066 = vadd.f32 %v1898, %v2065
        %v2067 = vpop.f32.mrb[0].mxu0
        %2068 = vmatprep.mubr.f32.mxu0 0.0
        %2069 = vmatmul.mubr.f32.gmra.mrb[0].mxu0 %v1904
        %v2070 = vpop.f32.mrb[0].mxu0
        %v2071 = vadd.f32 %v1898, %v2070
        %v2072 = vpop.f32.mrb[0].mxu0
        %2073 = vmatprep.mubr.f32.mxu0 0.0
        %2074 = vmatmul.mubr.f32.gmra.mrb[0].mxu0 %v1907
        %v2075 = vpop.f32.mrb[0].mxu0
        %v2076 = vadd.f32 %v1898, %v2075
        %v2077 = vpop.f32.mrb[0].mxu0
        %2078 = vmatprep.mubr.f32.mxu0 0.0
        %2079 = vmatmul.mubr.f32.gmra.mrb[0].mxu0 %v1910
        %v2080 = vpop.f32.mrb[0].mxu0
        %v2081 = vadd.f32 %v1898, %v2080
        %v2082 = vpop.f32.mrb[0].mxu0
        %2083 = vmatprep.mubr.f32.mxu0 0.0
        %2084 = vmatmul.mubr.f32.gmra.mrb[0].mxu0 %v1913
        %v2085 = vpop.f32.mrb[0].mxu0
        %v2086 = vadd.f32 %v1898, %v2085
        %v2087 = vpop.f32.mrb[0].mxu0
        %2088 = vmatprep.mubr.f32.mxu0 0.0
        %2089 = vmatmul.mubr.f32.gmra.mrb[0].mxu0 %v1916
        %v2090 = vpop.f32.mrb[0].mxu0
        %v2091 = vadd.f32 %v1898, %v2090
        %v2092 = vpop.f32.mrb[0].mxu0
        %2093 = vmatprep.mubr.f32.mxu0 0.0
        %2094 = vmatmul.mubr.f32.gmra.mrb[0].mxu0 %v1919
        %v2095 = vpop.f32.mrb[0].mxu0
        %v2096 = vadd.f32 %v1898, %v2095
        %v2097 = vpop.f32.mrb[0].mxu0
        %2098 = vmatprep.mubr.f32.mxu0 0.0
        %2099 = vmatmul.mubr.f32.gmra.mrb[0].mxu0 %v1922
        %v2100 = vpop.f32.mrb[0].mxu0
        %v2101 = vadd.f32 %v1898, %v2100
        %v2102 = vpop.f32.mrb[0].mxu0
        %2103 = vmatprep.mubr.f32.mxu0 0.0
        %2104 = vmatmul.mubr.f32.gmra.mrb[0].mxu0 %v1925
        %v2105 = vpop.f32.mrb[0].mxu0
        %v2106 = vadd.f32 %v1898, %v2105
        %v2107 = vpop.f32.mrb[0].mxu0
        %2108 = vmatprep.mubr.f32.mxu0 0.0
        %2109 = vmatmul.mubr.f32.gmra.mrb[0].mxu0 %v1928
        %v2110 = vpop.f32.mrb[0].mxu0
        %v2111 = vadd.f32 %v1898, %v2110
        %v2112 = vpop.f32.mrb[0].mxu0
        %2113 = vmatprep.mubr.f32.mxu0 0.0
        %2114 = vmatmul.mubr.f32.gmra.mrb[0].mxu0 %v1931
        %v2115 = vpop.f32.mrb[0].mxu0
        %v2116 = vadd.f32 %v1898, %v2115
        %v2117 = vpop.f32.mrb[0].mxu0
        %2118 = vmatprep.mubr.f32.mxu0 0.0
        %2119 = vmatmul.mubr.f32.gmra.mrb[0].mxu0 %v1934
        %v2120 = vpop.f32.mrb[0].mxu0
        %v2121 = vadd.f32 %v1898, %v2120
        %v2122 = vpop.f32.mrb[0].mxu0
        %2123 = vmatprep.mubr.f32.mxu0 0.0
        %2124 = vmatmul.mubr.f32.gmra.mrb[0].mxu0 %v1937
        %v2125 = vpop.f32.mrb[0].mxu0
        %v2126 = vadd.f32 %v1898, %v2125
        %v2127 = vpop.f32.mrb[0].mxu0
        %2128 = vmatprep.mubr.f32.mxu0 0.0
        %2129 = vmatmul.mubr.f32.gmra.mrb[0].mxu0 %v1940
        %v2130 = vpop.f32.mrb[0].mxu0
        %v2131 = vadd.f32 %v1898, %v2130
        %v2132 = vpop.f32.mrb[0].mxu0
        %2133 = vmatprep.mubr.f32.mxu0 0.0
        %2134 = vmatmul.mubr.f32.gmra.mrb[0].mxu0 %v1943
        %v2135 = vpop.f32.mrb[0].mxu0
        %v2136 = vadd.f32 %v1898, %v2135
        %v2137 = vpop.f32.mrb[0].mxu0
        %2138 = vmatprep.mubr.f32.mxu0 0.0
        %2139 = vmatmul.mubr.f32.gmra.mrb[0].mxu0 %v1946
        %v2140 = vpop.f32.mrb[0].mxu0
        %v2141 = vadd.f32 %v1898, %v2140
        %v2142 = vpop.f32.mrb[0].mxu0
        %2143 = vmatprep.mubr.f32.mxu0 0.0
        %2144 = vmatmul.mubr.f32.gmra.mrb[0].mxu0 %v1949
        %v2145 = vpop.f32.mrb[0].mxu0
        %v2146 = vadd.f32 %v1898, %v2145
        %v2147 = vpop.f32.mrb[0].mxu0
        %2148 = vmatprep.mubr.f32.mxu0 0.0
        %2149 = vmatmul.mubr.f32.gmra.mrb[0].mxu0 %v1952
        %v2150 = vpop.f32.mrb[0].mxu0
        %v2151 = vadd.f32 %v1898, %v2150
        %v2152 = vpop.f32.mrb[0].mxu0
        %2153 = vmatprep.mubr.f32.mxu0 0.0
        %2154 = vmatmul.mubr.f32.gmra.mrb[0].mxu0 %v1955
        %v2155 = vpop.f32.mrb[0].mxu0
        %v2156 = vadd.f32 %v1898, %v2155
        %v2157 = vpop.f32.mrb[0].mxu0
        %2158 = vmatprep.mubr.f32.mxu0 0.0
        %2159 = vmatmul.mubr.f32.gmra.mrb[0].mxu0 %v1958
        %v2160 = vpop.f32.mrb[0].mxu0
        %v2161 = vadd.f32 %v1898, %v2160
        %v2162 = vpop.f32.mrb[0].mxu0
        %2163 = vmatprep.mubr.f32.mxu0 0.0
        %2164 = vmatmul.mubr.f32.gmra.mrb[0].mxu0 %v1961
        %v2165 = vpop.f32.mrb[0].mxu0
        %v2166 = vadd.f32 %v1898, %v2165
        %v2167 = vpop.f32.mrb[0].mxu0
        %2168 = vmatprep.mubr.f32.mxu0 0.0
        %2169 = vmatmul.mubr.f32.gmra.mrb[0].mxu0 %v1964
        %v2170 = vpop.f32.mrb[0].mxu0
        %v2171 = vadd.f32 %v1898, %v2170
        %v2172 = vpop.f32.mrb[0].mxu0
        %2173 = vmatprep.mubr.f32.mxu0 0.0
        %2174 = vmatmul.mubr.f32.gmra.mrb[0].mxu0 %v1967
        %v2175 = vpop.f32.mrb[0].mxu0
        %v2176 = vadd.f32 %v1898, %v2175
        %v2177 = vpop.f32.mrb[0].mxu0
        %2178 = vmatprep.mubr.f32.mxu0 0.0
        %2179 = vmatmul.mubr.f32.gmra.mrb[0].mxu0 %v1970
        %v2180 = vpop.f32.mrb[0].mxu0
        %v2181 = vadd.f32 %v1898, %v2180
        %v2182 = vpop.f32.mrb[0].mxu0
        %2183 = vmatprep.mubr.f32.mxu0 0.0
        %2184 = vmatmul.mubr.f32.gmra.mrb[0].mxu0 %v1973
        %v2185 = vpop.f32.mrb[0].mxu0
        %v2186 = vadd.f32 %v1898, %v2185
        %v2187 = vpop.f32.mrb[0].mxu0
        %2188 = vmatprep.mubr.f32.mxu0 0.0
        %2189 = vmatmul.mubr.f32.gmra.mrb[0].mxu0 %v1976
        %v2190 = vpop.f32.mrb[0].mxu0
        %v2191 = vadd.f32 %v1898, %v2190
        %v2192 = vpop.f32.mrb[0].mxu0
        %2193 = vmatprep.mubr.f32.mxu0 0.0
        %2194 = vmatmul.mubr.f32.gmra.mrb[0].mxu0 %v1979
        %v2195 = vpop.f32.mrb[0].mxu0
        %v2196 = vadd.f32 %v1898, %v2195
        %v2197 = vpop.f32.mrb[0].mxu0
        %2198 = vmatprep.mubr.f32.mxu0 0.0
        %2199 = vmatmul.mubr.f32.gmra.mrb[0].mxu0 %v1982
        %v2200 = vpop.f32.mrb[0].mxu0
        %v2201 = vadd.f32 %v1898, %v2200
        %v2202 = vpop.f32.mrb[0].mxu0
        %2203 = vmatprep.mubr.f32.mxu0 0.0
        %2204 = vmatmul.mubr.f32.gmra.mrb[0].mxu0 %v1985
        %v2205 = vpop.f32.mrb[0].mxu0
        %v2206 = vadd.f32 %v1898, %v2205
        %v2207 = vpop.f32.mrb[0].mxu0
        %2208 = vmatprep.mubr.f32.mxu0 0.0
        %2209 = vmatmul.mubr.f32.gmra.mrb[0].mxu0 %v1988
        %v2210 = vpop.f32.mrb[0].mxu0
        %v2211 = vadd.f32 %v1898, %v2210
        %v2212 = vpop.f32.mrb[0].mxu0
        %2213 = vmatprep.mubr.f32.mxu0 0.0
        %2214 = vmatmul.mubr.f32.gmra.mrb[0].mxu0 %v1991
        %v2215 = vpop.f32.mrb[0].mxu0
        %v2216 = vadd.f32 %v1898, %v2215
        %v2217 = vpop.f32.mrb[0].mxu0
        %2218 = vmatprep.mubr.f32.mxu0 0.0
        %2219 = vmatmul.mubr.f32.gmra.mrb[0].mxu0 %v1994
        %v2220 = vpop.f32.mrb[0].mxu0
        %v2221 = vadd.f32 %v1898, %v2220
        %v2222 = vpop.f32.mrb[0].mxu0
        %2223 = vdwg.mxu0
        %v2224 = vmax.f32 %v2066, 0.0
        %v2225 = vmax.f32 %v2071, 0.0
        %v2226 = vmax.f32 %v2076, 0.0
        %v2227 = vmax.f32 %v2081, 0.0
        %v2228 = vmax.f32 %v2086, 0.0
        %v2229 = vmax.f32 %v2091, 0.0
        %v2230 = vmax.f32 %v2096, 0.0
        %v2231 = vmax.f32 %v2101, 0.0
        %v2232 = vmax.f32 %v2106, 0.0
        %v2233 = vmax.f32 %v2111, 0.0
        %v2234 = vmax.f32 %v2116, 0.0
        %v2235 = vmax.f32 %v2121, 0.0
        %v2236 = vmax.f32 %v2126, 0.0
        %v2237 = vmax.f32 %v2131, 0.0
        %v2238 = vmax.f32 %v2136, 0.0
        %v2239 = vmax.f32 %v2141, 0.0
        %v2240 = vmax.f32 %v2146, 0.0
        %v2241 = vmax.f32 %v2151, 0.0
        %v2242 = vmax.f32 %v2156, 0.0
        %v2243 = vmax.f32 %v2161, 0.0
        %v2244 = vmax.f32 %v2166, 0.0
        %v2245 = vmax.f32 %v2171, 0.0
        %v2246 = vmax.f32 %v2176, 0.0
        %v2247 = vmax.f32 %v2181, 0.0
        %v2248 = vmax.f32 %v2186, 0.0
        %v2249 = vmax.f32 %v2191, 0.0
        %v2250 = vmax.f32 %v2196, 0.0
        %v2251 = vmax.f32 %v2201, 0.0
        %v2252 = vmax.f32 %v2206, 0.0
        %v2253 = vmax.f32 %v2211, 0.0
        %v2254 = vmax.f32 %v2216, 0.0
        %v2255 = vmax.f32 %v2221, 0.0
        %v2256 = vld [vmem:[%s10] sm:$0xff]
        %v2257 = vld [vmem:[%s10 + $0x8] sm:$0xff]
        %v2258 = vld [vmem:[%s10 + $0x10] sm:$0xff]
        %v2259 = vld [vmem:[%s10 + $0x18] sm:$0xff]
        %v2260 = vld [vmem:[%s10 + $0x20] sm:$0xff]
        %v2261 = vld [vmem:[%s10 + $0x28] sm:$0xff]
        %v2262 = vld [vmem:[%s10 + $0x30] sm:$0x3]
        %v2263 = vld [vmem:[%s577] sm:$0xff]
        %v2264 = vld [vmem:[%s577 + $0x8] sm:$0xff]
        %v2265 = vld [vmem:[%s577 + $0x10] sm:$0xff]
        %v2266 = vld [vmem:[%s577 + $0x18] sm:$0xff]
        %v2267 = vld [vmem:[%s577 + $0x20] sm:$0xff]
        %v2268 = vld [vmem:[%s577 + $0x28] sm:$0xff]
        %v2269 = vld [vmem:[%s577 + $0x30] sm:$0xff]
        %v2270 = vld [vmem:[%s577 + $0x38] sm:$0xff]
        %v2271 = vld [vmem:[%s577 + $0x40] sm:$0xff]
        %v2272 = vld [vmem:[%s577 + $0x48] sm:$0xff]
        %v2273 = vld [vmem:[%s577 + $0x50] sm:$0xff]
        %v2274 = vld [vmem:[%s577 + $0x58] sm:$0xff]
        %v2275 = vld [vmem:[%s577 + $0x60] sm:$0xff]
        %v2276 = vld [vmem:[%s577 + $0x68] sm:$0xff]
        %v2277 = vld [vmem:[%s577 + $0x70] sm:$0xff]
        %v2278 = vld [vmem:[%s577 + $0x78] sm:$0xff]
        %v2279 = vld [vmem:[%s577 + $0x80] sm:$0xff]
        %v2280 = vld [vmem:[%s577 + $0x88] sm:$0xff]
        %v2281 = vld [vmem:[%s577 + $0x90] sm:$0xff]
        %v2282 = vld [vmem:[%s577 + $0x98] sm:$0xff]
        %v2283 = vld [vmem:[%s577 + $0xa0] sm:$0xff]
        %v2284 = vld [vmem:[%s577 + $0xa8] sm:$0xff]
        %v2285 = vld [vmem:[%s577 + $0xb0] sm:$0xff]
        %v2286 = vld [vmem:[%s577 + $0xb8] sm:$0xff]
        %v2287 = vld [vmem:[%s577 + $0xc0] sm:$0xff]
        %v2288 = vld [vmem:[%s577 + $0xc8] sm:$0xff]
        %v2289 = vld [vmem:[%s577 + $0xd0] sm:$0xff]
        %v2290 = vld [vmem:[%s577 + $0xd8] sm:$0xff]
        %v2291 = vld [vmem:[%s577 + $0xe0] sm:$0xff]
        %v2292 = vld [vmem:[%s577 + $0xe8] sm:$0xff]
        %v2293 = vld [vmem:[%s577 + $0xf0] sm:$0xff]
        %v2294 = vld [vmem:[%s577 + $0xf8] sm:$0xff]
        %v2295 = vld [vmem:[%s577 + $0x100] sm:$0xff]
        %v2296 = vld [vmem:[%s577 + $0x108] sm:$0xff]
        %v2297 = vld [vmem:[%s577 + $0x110] sm:$0xff]
        %v2298 = vld [vmem:[%s577 + $0x118] sm:$0xff]
        %v2299 = vld [vmem:[%s577 + $0x120] sm:$0xff]
        %v2300 = vld [vmem:[%s577 + $0x128] sm:$0xff]
        %v2301 = vld [vmem:[%s577 + $0x130] sm:$0xff]
        %v2302 = vld [vmem:[%s577 + $0x138] sm:$0xff]
        %v2303 = vld [vmem:[%s577 + $0x140] sm:$0xff]
        %v2304 = vld [vmem:[%s577 + $0x148] sm:$0xff]
        %v2305 = vld [vmem:[%s577 + $0x150] sm:$0xff]
        %v2306 = vld [vmem:[%s577 + $0x158] sm:$0xff]
        %v2307 = vld [vmem:[%s577 + $0x160] sm:$0xff]
        %v2308 = vld [vmem:[%s577 + $0x168] sm:$0xff]
        %v2309 = vld [vmem:[%s577 + $0x170] sm:$0xff]
        %v2310 = vld [vmem:[%s577 + $0x178] sm:$0xff]
        %v2311 = vld [vmem:[%s577 + $0x180] sm:$0xff]
        %v2312 = vld [vmem:[%s577 + $0x188] sm:$0xff]
        %v2313 = vld [vmem:[%s577 + $0x190] sm:$0xff]
        %v2314 = vld [vmem:[%s577 + $0x198] sm:$0xff]
        %v2315 = vld [vmem:[%s577 + $0x1a0] sm:$0xff]
        %v2316 = vld [vmem:[%s577 + $0x1a8] sm:$0xff]
        %v2317 = vld [vmem:[%s577 + $0x1b0] sm:$0xff]
        %v2318 = vld [vmem:[%s577 + $0x1b8] sm:$0xff]
        %v2319 = vld [vmem:[%s577 + $0x1c0] sm:$0xff]
        %v2320 = vld [vmem:[%s577 + $0x1c8] sm:$0xff]
        %v2321 = vld [vmem:[%s577 + $0x1d0] sm:$0xff]
        %v2322 = vld [vmem:[%s577 + $0x1d8] sm:$0xff]
        %v2323 = vld [vmem:[%s577 + $0x1e0] sm:$0xff]
        %v2324 = vld [vmem:[%s577 + $0x1e8] sm:$0xff]
        %v2325 = vld [vmem:[%s577 + $0x1f0] sm:$0xff]
        %v2326 = vld [vmem:[%s577 + $0x1f8] sm:$0xff]
        %v2327 = vld [vmem:[%s577 + $0x200] sm:$0xff]
        %v2328 = vld [vmem:[%s577 + $0x208] sm:$0xff]
        %v2329 = vld [vmem:[%s577 + $0x210] sm:$0xff]
        %v2330 = vld [vmem:[%s577 + $0x218] sm:$0xff]
        %v2331 = vld [vmem:[%s577 + $0x220] sm:$0xff]
        %v2332 = vld [vmem:[%s577 + $0x228] sm:$0xff]
        %v2333 = vld [vmem:[%s577 + $0x230] sm:$0xff]
        %v2334 = vld [vmem:[%s577 + $0x238] sm:$0xff]
        %v2335 = vld [vmem:[%s577 + $0x240] sm:$0xff]
        %v2336 = vld [vmem:[%s577 + $0x248] sm:$0xff]
        %v2337 = vld [vmem:[%s577 + $0x250] sm:$0xff]
        %v2338 = vld [vmem:[%s577 + $0x258] sm:$0xff]
        %v2339 = vld [vmem:[%s577 + $0x260] sm:$0xff]
        %v2340 = vld [vmem:[%s577 + $0x268] sm:$0xff]
        %v2341 = vld [vmem:[%s577 + $0x270] sm:$0xff]
        %v2342 = vld [vmem:[%s577 + $0x278] sm:$0xff]
        %v2343 = vld [vmem:[%s577 + $0x280] sm:$0xff]
        %v2344 = vld [vmem:[%s577 + $0x288] sm:$0xff]
        %v2345 = vld [vmem:[%s577 + $0x290] sm:$0xff]
        %v2346 = vld [vmem:[%s577 + $0x298] sm:$0xff]
        %v2347 = vld [vmem:[%s577 + $0x2a0] sm:$0xff]
        %v2348 = vld [vmem:[%s577 + $0x2a8] sm:$0xff]
        %v2349 = vld [vmem:[%s577 + $0x2b0] sm:$0xff]
        %v2350 = vld [vmem:[%s577 + $0x2b8] sm:$0xff]
        %v2351 = vld [vmem:[%s577 + $0x2c0] sm:$0xff]
        %v2352 = vld [vmem:[%s577 + $0x2c8] sm:$0xff]
        %v2353 = vld [vmem:[%s577 + $0x2d0] sm:$0xff]
        %v2354 = vld [vmem:[%s577 + $0x2d8] sm:$0xff]
        %v2355 = vld [vmem:[%s577 + $0x2e0] sm:$0xff]
        %v2356 = vld [vmem:[%s577 + $0x2e8] sm:$0xff]
        %v2357 = vld [vmem:[%s577 + $0x2f0] sm:$0xff]
        %v2358 = vld [vmem:[%s577 + $0x2f8] sm:$0xff]
        %v2359 = vld [vmem:[%s577 + $0x300] sm:$0xff]
        %v2360 = vld [vmem:[%s577 + $0x308] sm:$0xff]
        %v2361 = vld [vmem:[%s577 + $0x310] sm:$0xff]
        %v2362 = vld [vmem:[%s577 + $0x318] sm:$0xff]
        %v2363 = vld [vmem:[%s577 + $0x320] sm:$0xff]
        %v2364 = vld [vmem:[%s577 + $0x328] sm:$0xff]
        %v2365 = vld [vmem:[%s577 + $0x330] sm:$0xff]
        %v2366 = vld [vmem:[%s577 + $0x338] sm:$0xff]
        %v2367 = vld [vmem:[%s577 + $0x340] sm:$0xff]
        %v2368 = vld [vmem:[%s577 + $0x348] sm:$0xff]
        %v2369 = vld [vmem:[%s577 + $0x350] sm:$0xff]
        %v2370 = vld [vmem:[%s577 + $0x358] sm:$0xff]
        %v2371 = vld [vmem:[%s577 + $0x360] sm:$0xff]
        %v2372 = vld [vmem:[%s577 + $0x368] sm:$0xff]
        %v2373 = vld [vmem:[%s577 + $0x370] sm:$0xff]
        %v2374 = vld [vmem:[%s577 + $0x378] sm:$0xff]
        %v2375 = vld [vmem:[%s577 + $0x380] sm:$0xff]
        %v2376 = vld [vmem:[%s577 + $0x388] sm:$0xff]
        %v2377 = vld [vmem:[%s577 + $0x390] sm:$0xff]
        %v2378 = vld [vmem:[%s577 + $0x398] sm:$0xff]
        %v2379 = vld [vmem:[%s577 + $0x3a0] sm:$0xff]
        %v2380 = vld [vmem:[%s577 + $0x3a8] sm:$0xff]
        %v2381 = vld [vmem:[%s577 + $0x3b0] sm:$0xff]
        %v2382 = vld [vmem:[%s577 + $0x3b8] sm:$0xff]
        %v2383 = vld [vmem:[%s577 + $0x3c0] sm:$0xff]
        %v2384 = vld [vmem:[%s577 + $0x3c8] sm:$0xff]
        %v2385 = vld [vmem:[%s577 + $0x3d0] sm:$0xff]
        %v2386 = vld [vmem:[%s577 + $0x3d8] sm:$0xff]
        %v2387 = vld [vmem:[%s577 + $0x3e0] sm:$0xff]
        %v2388 = vld [vmem:[%s577 + $0x3e8] sm:$0xff]
        %v2389 = vld [vmem:[%s577 + $0x3f0] sm:$0xff]
        %v2390 = vld [vmem:[%s577 + $0x3f8] sm:$0xff]
        %v2391 = vld [vmem:[%s577 + $0x400] sm:$0xff]
        %v2392 = vld [vmem:[%s577 + $0x408] sm:$0xff]
        %v2393 = vld [vmem:[%s577 + $0x410] sm:$0xff]
        %v2394 = vld [vmem:[%s577 + $0x418] sm:$0xff]
        %v2395 = vld [vmem:[%s577 + $0x420] sm:$0xff]
        %v2396 = vld [vmem:[%s577 + $0x428] sm:$0xff]
        %v2397 = vld [vmem:[%s577 + $0x430] sm:$0xff]
        %v2398 = vld [vmem:[%s577 + $0x438] sm:$0xff]
        %v2399 = vld [vmem:[%s577 + $0x440] sm:$0xff]
        %v2400 = vld [vmem:[%s577 + $0x448] sm:$0xff]
        %v2401 = vld [vmem:[%s577 + $0x450] sm:$0xff]
        %v2402 = vld [vmem:[%s577 + $0x458] sm:$0xff]
        %v2403 = vld [vmem:[%s577 + $0x460] sm:$0xff]
        %v2404 = vld [vmem:[%s577 + $0x468] sm:$0xff]
        %v2405 = vld [vmem:[%s577 + $0x470] sm:$0xff]
        %v2406 = vld [vmem:[%s577 + $0x478] sm:$0xff]
        %v2407 = vld [vmem:[%s577 + $0x480] sm:$0xff]
        %v2408 = vld [vmem:[%s577 + $0x488] sm:$0xff]
        %v2409 = vld [vmem:[%s577 + $0x490] sm:$0xff]
        %v2410 = vld [vmem:[%s577 + $0x498] sm:$0xff]
        %v2411 = vld [vmem:[%s577 + $0x4a0] sm:$0xff]
        %v2412 = vld [vmem:[%s577 + $0x4a8] sm:$0xff]
        %v2413 = vld [vmem:[%s577 + $0x4b0] sm:$0xff]
        %v2414 = vld [vmem:[%s577 + $0x4b8] sm:$0xff]
        %v2415 = vld [vmem:[%s577 + $0x4c0] sm:$0xff]
        %v2416 = vld [vmem:[%s577 + $0x4c8] sm:$0xff]
        %v2417 = vld [vmem:[%s577 + $0x4d0] sm:$0xff]
        %v2418 = vld [vmem:[%s577 + $0x4d8] sm:$0xff]
        %v2419 = vld [vmem:[%s577 + $0x4e0] sm:$0xff]
        %v2420 = vld [vmem:[%s577 + $0x4e8] sm:$0xff]
        %v2421 = vld [vmem:[%s577 + $0x4f0] sm:$0xff]
        %v2422 = vld [vmem:[%s577 + $0x4f8] sm:$0xff]
        %v2423 = vld [vmem:[%s577 + $0x500] sm:$0xff]
        %v2424 = vld [vmem:[%s577 + $0x508] sm:$0xff]
        %v2425 = vld [vmem:[%s577 + $0x510] sm:$0xff]
        %v2426 = vld [vmem:[%s577 + $0x518] sm:$0xff]
        %v2427 = vld [vmem:[%s577 + $0x520] sm:$0xff]
        %v2428 = vld [vmem:[%s577 + $0x528] sm:$0xff]
        %v2429 = vld [vmem:[%s577 + $0x530] sm:$0xff]
        %v2430 = vld [vmem:[%s577 + $0x538] sm:$0xff]
        %v2431 = vld [vmem:[%s577 + $0x540] sm:$0xff]
        %v2432 = vld [vmem:[%s577 + $0x548] sm:$0xff]
        %v2433 = vld [vmem:[%s577 + $0x550] sm:$0xff]
        %v2434 = vld [vmem:[%s577 + $0x558] sm:$0xff]
        %v2435 = vld [vmem:[%s577 + $0x560] sm:$0xff]
        %v2436 = vld [vmem:[%s577 + $0x568] sm:$0xff]
        %v2437 = vld [vmem:[%s577 + $0x570] sm:$0xff]
        %v2438 = vld [vmem:[%s577 + $0x578] sm:$0xff]
        %v2439 = vld [vmem:[%s577 + $0x580] sm:$0xff]
        %v2440 = vld [vmem:[%s577 + $0x588] sm:$0xff]
        %v2441 = vld [vmem:[%s577 + $0x590] sm:$0xff]
        %v2442 = vld [vmem:[%s577 + $0x598] sm:$0xff]
        %v2443 = vld [vmem:[%s577 + $0x5a0] sm:$0xff]
        %v2444 = vld [vmem:[%s577 + $0x5a8] sm:$0xff]
        %v2445 = vld [vmem:[%s577 + $0x5b0] sm:$0xff]
        %v2446 = vld [vmem:[%s577 + $0x5b8] sm:$0xff]
        %v2447 = vld [vmem:[%s577 + $0x5c0] sm:$0xff]
        %v2448 = vld [vmem:[%s577 + $0x5c8] sm:$0xff]
        %v2449 = vld [vmem:[%s577 + $0x5d0] sm:$0xff]
        %v2450 = vld [vmem:[%s577 + $0x5d8] sm:$0xff]
        %v2451 = vld [vmem:[%s577 + $0x5e0] sm:$0xff]
        %v2452 = vld [vmem:[%s577 + $0x5e8] sm:$0xff]
        %v2453 = vld [vmem:[%s577 + $0x5f0] sm:$0xff]
        %v2454 = vld [vmem:[%s577 + $0x5f8] sm:$0xff]
        %v2455 = vld [vmem:[%s577 + $0x600] sm:$0xff]
        %v2456 = vld [vmem:[%s577 + $0x608] sm:$0xff]
        %v2457 = vld [vmem:[%s577 + $0x610] sm:$0xff]
        %v2458 = vld [vmem:[%s577 + $0x618] sm:$0xff]
        %v2459 = vld [vmem:[%s577 + $0x620] sm:$0xff]
        %v2460 = vld [vmem:[%s577 + $0x628] sm:$0xff]
        %v2461 = vld [vmem:[%s577 + $0x630] sm:$0xff]
        %v2462 = vld [vmem:[%s577 + $0x638] sm:$0xff]
        %v2463 = vld [vmem:[%s577 + $0x640] sm:$0xff]
        %v2464 = vld [vmem:[%s577 + $0x648] sm:$0xff]
        %v2465 = vld [vmem:[%s577 + $0x650] sm:$0xff]
        %v2466 = vld [vmem:[%s577 + $0x658] sm:$0xff]
        %v2467 = vld [vmem:[%s577 + $0x660] sm:$0xff]
        %v2468 = vld [vmem:[%s577 + $0x668] sm:$0xff]
        %v2469 = vld [vmem:[%s577 + $0x670] sm:$0xff]
        %v2470 = vld [vmem:[%s577 + $0x678] sm:$0xff]
        %v2471 = vld [vmem:[%s577 + $0x680] sm:$0xff]
        %v2472 = vld [vmem:[%s577 + $0x688] sm:$0xff]
        %v2473 = vld [vmem:[%s577 + $0x690] sm:$0xff]
        %v2474 = vld [vmem:[%s577 + $0x698] sm:$0xff]
        %v2475 = vld [vmem:[%s577 + $0x6a0] sm:$0xff]
        %v2476 = vld [vmem:[%s577 + $0x6a8] sm:$0xff]
        %v2477 = vld [vmem:[%s577 + $0x6b0] sm:$0xff]
        %v2478 = vld [vmem:[%s577 + $0x6b8] sm:$0xff]
        %v2479 = vld [vmem:[%s577 + $0x6c0] sm:$0xff]
        %v2480 = vld [vmem:[%s577 + $0x6c8] sm:$0xff]
        %v2481 = vld [vmem:[%s577 + $0x6d0] sm:$0xff]
        %v2482 = vld [vmem:[%s577 + $0x6d8] sm:$0xff]
        %v2483 = vld [vmem:[%s577 + $0x6e0] sm:$0xff]
        %v2484 = vld [vmem:[%s577 + $0x6e8] sm:$0xff]
        %v2485 = vld [vmem:[%s577 + $0x6f0] sm:$0xff]
        %v2486 = vld [vmem:[%s577 + $0x6f8] sm:$0xff]
        %v2487 = vld [vmem:[%s577 + $0x700] sm:$0xff]
        %v2488 = vld [vmem:[%s577 + $0x708] sm:$0xff]
        %v2489 = vld [vmem:[%s577 + $0x710] sm:$0xff]
        %v2490 = vld [vmem:[%s577 + $0x718] sm:$0xff]
        %v2491 = vld [vmem:[%s577 + $0x720] sm:$0xff]
        %v2492 = vld [vmem:[%s577 + $0x728] sm:$0xff]
        %v2493 = vld [vmem:[%s577 + $0x730] sm:$0xff]
        %v2494 = vld [vmem:[%s577 + $0x738] sm:$0xff]
        %v2495 = vld [vmem:[%s577 + $0x740] sm:$0xff]
        %v2496 = vld [vmem:[%s577 + $0x748] sm:$0xff]
        %v2497 = vld [vmem:[%s577 + $0x750] sm:$0xff]
        %v2498 = vld [vmem:[%s577 + $0x758] sm:$0xff]
        %v2499 = vld [vmem:[%s577 + $0x760] sm:$0xff]
        %v2500 = vld [vmem:[%s577 + $0x768] sm:$0xff]
        %v2501 = vld [vmem:[%s577 + $0x770] sm:$0xff]
        %v2502 = vld [vmem:[%s577 + $0x778] sm:$0xff]
        %v2503 = vld [vmem:[%s577 + $0x780] sm:$0xff]
        %v2504 = vld [vmem:[%s577 + $0x788] sm:$0xff]
        %v2505 = vld [vmem:[%s577 + $0x790] sm:$0xff]
        %v2506 = vld [vmem:[%s577 + $0x798] sm:$0xff]
        %v2507 = vld [vmem:[%s577 + $0x7a0] sm:$0xff]
        %v2508 = vld [vmem:[%s577 + $0x7a8] sm:$0xff]
        %v2509 = vld [vmem:[%s577 + $0x7b0] sm:$0xff]
        %v2510 = vld [vmem:[%s577 + $0x7b8] sm:$0xff]
        %v2511 = vld [vmem:[%s577 + $0x7c0] sm:$0xff]
        %v2512 = vld [vmem:[%s577 + $0x7c8] sm:$0xff]
        %v2513 = vld [vmem:[%s577 + $0x7d0] sm:$0xff]
        %v2514 = vld [vmem:[%s577 + $0x7d8] sm:$0xff]
        %v2515 = vld [vmem:[%s577 + $0x7e0] sm:$0xff]
        %v2516 = vld [vmem:[%s577 + $0x7e8] sm:$0xff]
        %v2517 = vld [vmem:[%s577 + $0x7f0] sm:$0xff]
        %v2518 = vld [vmem:[%s577 + $0x7f8] sm:$0xff]
        %v2519 = vld [vmem:[%s577 + $0x800] sm:$0xff]
        %v2520 = vld [vmem:[%s577 + $0x808] sm:$0xff]
        %v2521 = vld [vmem:[%s577 + $0x810] sm:$0xff]
        %v2522 = vld [vmem:[%s577 + $0x818] sm:$0xff]
        %v2523 = vld [vmem:[%s577 + $0x820] sm:$0xff]
        %v2524 = vld [vmem:[%s577 + $0x828] sm:$0xff]
        %v2525 = vld [vmem:[%s577 + $0x830] sm:$0xff]
        %v2526 = vld [vmem:[%s577 + $0x838] sm:$0xff]
        %v2527 = vld [vmem:[%s577 + $0x840] sm:$0xff]
        %v2528 = vld [vmem:[%s577 + $0x848] sm:$0xff]
        %v2529 = vld [vmem:[%s577 + $0x850] sm:$0xff]
        %v2530 = vld [vmem:[%s577 + $0x858] sm:$0xff]
        %v2531 = vld [vmem:[%s577 + $0x860] sm:$0xff]
        %v2532 = vld [vmem:[%s577 + $0x868] sm:$0xff]
        %v2533 = vld [vmem:[%s577 + $0x870] sm:$0xff]
        %v2534 = vld [vmem:[%s577 + $0x878] sm:$0xff]
        %v2535 = vld [vmem:[%s577 + $0x880] sm:$0xff]
        %v2536 = vld [vmem:[%s577 + $0x888] sm:$0xff]
        %v2537 = vld [vmem:[%s577 + $0x890] sm:$0xff]
        %v2538 = vld [vmem:[%s577 + $0x898] sm:$0xff]
        %v2539 = vld [vmem:[%s577 + $0x8a0] sm:$0xff]
        %v2540 = vld [vmem:[%s577 + $0x8a8] sm:$0xff]
        %v2541 = vld [vmem:[%s577 + $0x8b0] sm:$0xff]
        %v2542 = vld [vmem:[%s577 + $0x8b8] sm:$0xff]
        %v2543 = vld [vmem:[%s577 + $0x8c0] sm:$0xff]
        %v2544 = vld [vmem:[%s577 + $0x8c8] sm:$0xff]
        %v2545 = vld [vmem:[%s577 + $0x8d0] sm:$0xff]
        %v2546 = vld [vmem:[%s577 + $0x8d8] sm:$0xff]
        %v2547 = vld [vmem:[%s577 + $0x8e0] sm:$0xff]
        %v2548 = vld [vmem:[%s577 + $0x8e8] sm:$0xff]
        %v2549 = vld [vmem:[%s577 + $0x8f0] sm:$0xff]
        %v2550 = vld [vmem:[%s577 + $0x8f8] sm:$0xff]
        %v2551 = vld [vmem:[%s577 + $0x900] sm:$0xff]
        %v2552 = vld [vmem:[%s577 + $0x908] sm:$0xff]
        %v2553 = vld [vmem:[%s577 + $0x910] sm:$0xff]
        %v2554 = vld [vmem:[%s577 + $0x918] sm:$0xff]
        %v2555 = vld [vmem:[%s577 + $0x920] sm:$0xff]
        %v2556 = vld [vmem:[%s577 + $0x928] sm:$0xff]
        %v2557 = vld [vmem:[%s577 + $0x930] sm:$0xff]
        %v2558 = vld [vmem:[%s577 + $0x938] sm:$0xff]
        %v2559 = vld [vmem:[%s577 + $0x940] sm:$0xff]
        %v2560 = vld [vmem:[%s577 + $0x948] sm:$0xff]
        %v2561 = vld [vmem:[%s577 + $0x950] sm:$0xff]
        %v2562 = vld [vmem:[%s577 + $0x958] sm:$0xff]
        %v2563 = vld [vmem:[%s577 + $0x960] sm:$0xff]
        %v2564 = vld [vmem:[%s577 + $0x968] sm:$0xff]
        %v2565 = vld [vmem:[%s577 + $0x970] sm:$0xff]
        %v2566 = vld [vmem:[%s577 + $0x978] sm:$0xff]
        %v2567 = vld [vmem:[%s577 + $0x980] sm:$0xff]
        %v2568 = vld [vmem:[%s577 + $0x988] sm:$0xff]
        %v2569 = vld [vmem:[%s577 + $0x990] sm:$0xff]
        %v2570 = vld [vmem:[%s577 + $0x998] sm:$0xff]
        %v2571 = vld [vmem:[%s577 + $0x9a0] sm:$0xff]
        %v2572 = vld [vmem:[%s577 + $0x9a8] sm:$0xff]
        %v2573 = vld [vmem:[%s577 + $0x9b0] sm:$0xff]
        %v2574 = vld [vmem:[%s577 + $0x9b8] sm:$0xff]
        %v2575 = vld [vmem:[%s577 + $0x9c0] sm:$0xff]
        %v2576 = vld [vmem:[%s577 + $0x9c8] sm:$0xff]
        %v2577 = vld [vmem:[%s577 + $0x9d0] sm:$0xff]
        %v2578 = vld [vmem:[%s577 + $0x9d8] sm:$0xff]
        %v2579 = vld [vmem:[%s577 + $0x9e0] sm:$0xff]
        %v2580 = vld [vmem:[%s577 + $0x9e8] sm:$0xff]
        %v2581 = vld [vmem:[%s577 + $0x9f0] sm:$0xff]
        %v2582 = vld [vmem:[%s577 + $0x9f8] sm:$0xff]
        %v2583 = vld [vmem:[%s577 + $0xa00] sm:$0xff]
        %v2584 = vld [vmem:[%s577 + $0xa08] sm:$0xff]
        %v2585 = vld [vmem:[%s577 + $0xa10] sm:$0xff]
        %v2586 = vld [vmem:[%s577 + $0xa18] sm:$0xff]
        %v2587 = vld [vmem:[%s577 + $0xa20] sm:$0xff]
        %v2588 = vld [vmem:[%s577 + $0xa28] sm:$0xff]
        %v2589 = vld [vmem:[%s577 + $0xa30] sm:$0xff]
        %v2590 = vld [vmem:[%s577 + $0xa38] sm:$0xff]
        %v2591 = vld [vmem:[%s577 + $0xa40] sm:$0xff]
        %v2592 = vld [vmem:[%s577 + $0xa48] sm:$0xff]
        %v2593 = vld [vmem:[%s577 + $0xa50] sm:$0xff]
        %v2594 = vld [vmem:[%s577 + $0xa58] sm:$0xff]
        %v2595 = vld [vmem:[%s577 + $0xa60] sm:$0xff]
        %v2596 = vld [vmem:[%s577 + $0xa68] sm:$0xff]
        %v2597 = vld [vmem:[%s577 + $0xa70] sm:$0xff]
        %v2598 = vld [vmem:[%s577 + $0xa78] sm:$0xff]
        %v2599 = vld [vmem:[%s577 + $0xa80] sm:$0xff]
        %v2600 = vld [vmem:[%s577 + $0xa88] sm:$0xff]
        %v2601 = vld [vmem:[%s577 + $0xa90] sm:$0xff]
        %v2602 = vld [vmem:[%s577 + $0xa98] sm:$0xff]
        %v2603 = vld [vmem:[%s577 + $0xaa0] sm:$0xff]
        %v2604 = vld [vmem:[%s577 + $0xaa8] sm:$0xff]
        %v2605 = vld [vmem:[%s577 + $0xab0] sm:$0xff]
        %v2606 = vld [vmem:[%s577 + $0xab8] sm:$0xff]
        %v2607 = vld [vmem:[%s577 + $0xac0] sm:$0xff]
        %v2608 = vld [vmem:[%s577 + $0xac8] sm:$0xff]
        %v2609 = vld [vmem:[%s577 + $0xad0] sm:$0xff]
        %v2610 = vld [vmem:[%s577 + $0xad8] sm:$0xff]
        %v2611 = vld [vmem:[%s577 + $0xae0] sm:$0xff]
        %v2612 = vld [vmem:[%s577 + $0xae8] sm:$0xff]
        %v2613 = vld [vmem:[%s577 + $0xaf0] sm:$0xff]
        %v2614 = vld [vmem:[%s577 + $0xaf8] sm:$0xff]
        %v2615 = vld [vmem:[%s577 + $0xb00] sm:$0xff]
        %v2616 = vld [vmem:[%s577 + $0xb08] sm:$0xff]
        %v2617 = vld [vmem:[%s577 + $0xb10] sm:$0xff]
        %v2618 = vld [vmem:[%s577 + $0xb18] sm:$0xff]
        %v2619 = vld [vmem:[%s577 + $0xb20] sm:$0xff]
        %v2620 = vld [vmem:[%s577 + $0xb28] sm:$0xff]
        %v2621 = vld [vmem:[%s577 + $0xb30] sm:$0xff]
        %v2622 = vld [vmem:[%s577 + $0xb38] sm:$0xff]
        %v2623 = vld [vmem:[%s577 + $0xb40] sm:$0xff]
        %v2624 = vld [vmem:[%s577 + $0xb48] sm:$0xff]
        %v2625 = vld [vmem:[%s577 + $0xb50] sm:$0xff]
        %v2626 = vld [vmem:[%s577 + $0xb58] sm:$0xff]
        %v2627 = vld [vmem:[%s577 + $0xb60] sm:$0xff]
        %v2628 = vld [vmem:[%s577 + $0xb68] sm:$0xff]
        %v2629 = vld [vmem:[%s577 + $0xb70] sm:$0xff]
        %v2630 = vld [vmem:[%s577 + $0xb78] sm:$0xff]
        %v2631 = vld [vmem:[%s577 + $0xb80] sm:$0xff]
        %v2632 = vld [vmem:[%s577 + $0xb88] sm:$0xff]
        %v2633 = vld [vmem:[%s577 + $0xb90] sm:$0xff]
        %v2634 = vld [vmem:[%s577 + $0xb98] sm:$0xff]
        %v2635 = vld [vmem:[%s577 + $0xba0] sm:$0xff]
        %v2636 = vld [vmem:[%s577 + $0xba8] sm:$0xff]
        %v2637 = vld [vmem:[%s577 + $0xbb0] sm:$0xff]
        %v2638 = vld [vmem:[%s577 + $0xbb8] sm:$0xff]
        %v2639 = vld [vmem:[%s577 + $0xbc0] sm:$0xff]
        %v2640 = vld [vmem:[%s577 + $0xbc8] sm:$0xff]
        %v2641 = vld [vmem:[%s577 + $0xbd0] sm:$0xff]
        %v2642 = vld [vmem:[%s577 + $0xbd8] sm:$0xff]
        %v2643 = vld [vmem:[%s577 + $0xbe0] sm:$0xff]
        %v2644 = vld [vmem:[%s577 + $0xbe8] sm:$0xff]
        %v2645 = vld [vmem:[%s577 + $0xbf0] sm:$0xff]
        %v2646 = vld [vmem:[%s577 + $0xbf8] sm:$0xff]
        %v2647 = vld [vmem:[%s577 + $0xc00] sm:$0xff]
        %v2648 = vld [vmem:[%s577 + $0xc08] sm:$0xff]
        %v2649 = vld [vmem:[%s577 + $0xc10] sm:$0xff]
        %v2650 = vld [vmem:[%s577 + $0xc18] sm:$0xff]
        %v2651 = vld [vmem:[%s577 + $0xc20] sm:$0xff]
        %v2652 = vld [vmem:[%s577 + $0xc28] sm:$0xff]
        %v2653 = vld [vmem:[%s577 + $0xc30] sm:$0xff]
        %v2654 = vld [vmem:[%s577 + $0xc38] sm:$0xff]
        %v2655 = vld [vmem:[%s577 + $0xc40] sm:$0xff]
        %v2656 = vld [vmem:[%s577 + $0xc48] sm:$0xff]
        %v2657 = vld [vmem:[%s577 + $0xc50] sm:$0xff]
        %v2658 = vld [vmem:[%s577 + $0xc58] sm:$0xff]
        %v2659 = vld [vmem:[%s577 + $0xc60] sm:$0xff]
        %v2660 = vld [vmem:[%s577 + $0xc68] sm:$0xff]
        %v2661 = vld [vmem:[%s577 + $0xc70] sm:$0xff]
        %v2662 = vld [vmem:[%s577 + $0xc78] sm:$0xff]
        %v2663 = vld [vmem:[%s577 + $0xc80] sm:$0xff]
        %v2664 = vld [vmem:[%s577 + $0xc88] sm:$0xff]
        %v2665 = vld [vmem:[%s577 + $0xc90] sm:$0xff]
        %v2666 = vld [vmem:[%s577 + $0xc98] sm:$0xff]
        %v2667 = vld [vmem:[%s577 + $0xca0] sm:$0xff]
        %v2668 = vld [vmem:[%s577 + $0xca8] sm:$0xff]
        %v2669 = vld [vmem:[%s577 + $0xcb0] sm:$0xff]
        %v2670 = vld [vmem:[%s577 + $0xcb8] sm:$0xff]
        %v2671 = vld [vmem:[%s577 + $0xcc0] sm:$0xff]
        %v2672 = vld [vmem:[%s577 + $0xcc8] sm:$0xff]
        %v2673 = vld [vmem:[%s577 + $0xcd0] sm:$0xff]
        %v2674 = vld [vmem:[%s577 + $0xcd8] sm:$0xff]
        %v2675 = vld [vmem:[%s577 + $0xce0] sm:$0xff]
        %v2676 = vld [vmem:[%s577 + $0xce8] sm:$0xff]
        %v2677 = vld [vmem:[%s577 + $0xcf0] sm:$0xff]
        %v2678 = vld [vmem:[%s577 + $0xcf8] sm:$0xff]
        %v2679 = vld [vmem:[%s577 + $0xd00] sm:$0xff]
        %v2680 = vld [vmem:[%s577 + $0xd08] sm:$0xff]
        %v2681 = vld [vmem:[%s577 + $0xd10] sm:$0xff]
        %v2682 = vld [vmem:[%s577 + $0xd18] sm:$0xff]
        %v2683 = vld [vmem:[%s577 + $0xd20] sm:$0xff]
        %v2684 = vld [vmem:[%s577 + $0xd28] sm:$0xff]
        %v2685 = vld [vmem:[%s577 + $0xd30] sm:$0xff]
        %v2686 = vld [vmem:[%s577 + $0xd38] sm:$0xff]
        %v2687 = vld [vmem:[%s577 + $0xd40] sm:$0xff]
        %v2688 = vld [vmem:[%s577 + $0xd48] sm:$0xff]
        %v2689 = vld [vmem:[%s577 + $0xd50] sm:$0xff]
        %v2690 = vld [vmem:[%s577 + $0xd58] sm:$0xff]
        %v2691 = vld [vmem:[%s577 + $0xd60] sm:$0xff]
        %v2692 = vld [vmem:[%s577 + $0xd68] sm:$0xff]
        %v2693 = vld [vmem:[%s577 + $0xd70] sm:$0xff]
        %v2694 = vld [vmem:[%s577 + $0xd78] sm:$0xff]
        %v2695 = vld [vmem:[%s577 + $0xd80] sm:$0xff]
        %v2696 = vld [vmem:[%s577 + $0xd88] sm:$0xff]
        %v2697 = vld [vmem:[%s577 + $0xd90] sm:$0xff]
        %v2698 = vld [vmem:[%s577 + $0xd98] sm:$0xff]
        %v2699 = vld [vmem:[%s577 + $0xda0] sm:$0xff]
        %v2700 = vld [vmem:[%s577 + $0xda8] sm:$0xff]
        %v2701 = vld [vmem:[%s577 + $0xdb0] sm:$0xff]
        %v2702 = vld [vmem:[%s577 + $0xdb8] sm:$0xff]
        %v2703 = vld [vmem:[%s577 + $0xdc0] sm:$0xff]
        %v2704 = vld [vmem:[%s577 + $0xdc8] sm:$0xff]
        %v2705 = vld [vmem:[%s577 + $0xdd0] sm:$0xff]
        %v2706 = vld [vmem:[%s577 + $0xdd8] sm:$0xff]
        %v2707 = vld [vmem:[%s577 + $0xde0] sm:$0xff]
        %v2708 = vld [vmem:[%s577 + $0xde8] sm:$0xff]
        %v2709 = vld [vmem:[%s577 + $0xdf0] sm:$0xff]
        %v2710 = vld [vmem:[%s577 + $0xdf8] sm:$0xff]
        %v2711 = vld [vmem:[%s11] sm:$0xff]
        %v2712 = vld [vmem:[%s11 + $0x8] sm:$0xff]
        %v2713 = vld [vmem:[%s11 + $0x10] sm:$0xff]
        %v2714 = vld [vmem:[%s11 + $0x18] sm:$0xff]
        %v2715 = vld [vmem:[%s11 + $0x20] sm:$0xff]
        %v2716 = vld [vmem:[%s11 + $0x28] sm:$0xff]
        %v2717 = vld [vmem:[%s11 + $0x30] sm:$0xff]
        %v2718 = vld [vmem:[%s11 + $0x38] sm:$0xff]
        %v2719 = vld [vmem:[%s11 + $0x40] sm:$0xff]
        %v2720 = vld [vmem:[%s11 + $0x48] sm:$0xff]
        %v2721 = vld [vmem:[%s11 + $0x50] sm:$0xff]
        %v2722 = vld [vmem:[%s11 + $0x58] sm:$0xff]
        %v2723 = vld [vmem:[%s11 + $0x60] sm:$0xff]
        %v2724 = vld [vmem:[%s11 + $0x68] sm:$0xff]
        %v2725 = vld [vmem:[%s11 + $0x70] sm:$0xff]
        %v2726 = vld [vmem:[%s11 + $0x78] sm:$0xff]
        %v2727 = vld [vmem:[%s11 + $0x80] sm:$0xff]
        %v2728 = vld [vmem:[%s11 + $0x88] sm:$0xff]
        %v2729 = vld [vmem:[%s11 + $0x90] sm:$0xff]
        %v2730 = vld [vmem:[%s11 + $0x98] sm:$0xff]
        %v2731 = vld [vmem:[%s11 + $0xa0] sm:$0xff]
        %v2732 = vld [vmem:[%s11 + $0xa8] sm:$0xff]
        %v2733 = vld [vmem:[%s11 + $0xb0] sm:$0xff]
        %v2734 = vld [vmem:[%s11 + $0xb8] sm:$0xff]
        %v2735 = vld [vmem:[%s11 + $0xc0] sm:$0xff]
        %v2736 = vld [vmem:[%s11 + $0xc8] sm:$0xff]
        %v2737 = vld [vmem:[%s11 + $0xd0] sm:$0xff]
        %v2738 = vld [vmem:[%s11 + $0xd8] sm:$0xff]
        %v2739 = vld [vmem:[%s11 + $0xe0] sm:$0xff]
        %v2740 = vld [vmem:[%s11 + $0xe8] sm:$0xff]
        %v2741 = vld [vmem:[%s11 + $0xf0] sm:$0xff]
        %v2742 = vld [vmem:[%s11 + $0xf8] sm:$0xff]
        %v2743 = vld [vmem:[%s11 + $0x100] sm:$0xff]
        %v2744 = vld [vmem:[%s11 + $0x108] sm:$0xff]
        %v2745 = vld [vmem:[%s11 + $0x110] sm:$0xff]
        %v2746 = vld [vmem:[%s11 + $0x118] sm:$0xff]
        %v2747 = vld [vmem:[%s11 + $0x120] sm:$0xff]
        %v2748 = vld [vmem:[%s11 + $0x128] sm:$0xff]
        %v2749 = vld [vmem:[%s11 + $0x130] sm:$0xff]
        %v2750 = vld [vmem:[%s11 + $0x138] sm:$0xff]
        %v2751 = vld [vmem:[%s11 + $0x140] sm:$0xff]
        %v2752 = vld [vmem:[%s11 + $0x148] sm:$0xff]
        %v2753 = vld [vmem:[%s11 + $0x150] sm:$0xff]
        %v2754 = vld [vmem:[%s11 + $0x158] sm:$0xff]
        %v2755 = vld [vmem:[%s11 + $0x160] sm:$0xff]
        %v2756 = vld [vmem:[%s11 + $0x168] sm:$0xff]
        %v2757 = vld [vmem:[%s11 + $0x170] sm:$0xff]
        %v2758 = vld [vmem:[%s11 + $0x178] sm:$0xff]
        %v2759 = vld [vmem:[%s11 + $0x180] sm:$0xff]
        %v2760 = vld [vmem:[%s11 + $0x188] sm:$0xff]
        %v2761 = vld [vmem:[%s11 + $0x190] sm:$0xff]
        %v2762 = vld [vmem:[%s11 + $0x198] sm:$0xff]
        %v2763 = vld [vmem:[%s11 + $0x1a0] sm:$0xff]
        %v2764 = vld [vmem:[%s11 + $0x1a8] sm:$0xff]
        %v2765 = vld [vmem:[%s11 + $0x1b0] sm:$0xff]
        %v2766 = vld [vmem:[%s11 + $0x1b8] sm:$0xff]
        %v2767 = vld [vmem:[%s11 + $0x1c0] sm:$0xff]
        %v2768 = vld [vmem:[%s11 + $0x1c8] sm:$0xff]
        %v2769 = vld [vmem:[%s11 + $0x1d0] sm:$0xff]
        %v2770 = vld [vmem:[%s11 + $0x1d8] sm:$0xff]
        %v2771 = vld [vmem:[%s11 + $0x1e0] sm:$0xff]
        %v2772 = vld [vmem:[%s11 + $0x1e8] sm:$0xff]
        %v2773 = vld [vmem:[%s11 + $0x1f0] sm:$0xff]
        %v2774 = vld [vmem:[%s11 + $0x1f8] sm:$0xff]
        %v2775 = vld [vmem:[%s11 + $0x200] sm:$0xff]
        %v2776 = vld [vmem:[%s11 + $0x208] sm:$0xff]
        %v2777 = vld [vmem:[%s11 + $0x210] sm:$0xff]
        %v2778 = vld [vmem:[%s11 + $0x218] sm:$0xff]
        %v2779 = vld [vmem:[%s11 + $0x220] sm:$0xff]
        %v2780 = vld [vmem:[%s11 + $0x228] sm:$0xff]
        %v2781 = vld [vmem:[%s11 + $0x230] sm:$0xff]
        %v2782 = vld [vmem:[%s11 + $0x238] sm:$0xff]
        %v2783 = vld [vmem:[%s11 + $0x240] sm:$0xff]
        %v2784 = vld [vmem:[%s11 + $0x248] sm:$0xff]
        %v2785 = vld [vmem:[%s11 + $0x250] sm:$0xff]
        %v2786 = vld [vmem:[%s11 + $0x258] sm:$0xff]
        %v2787 = vld [vmem:[%s11 + $0x260] sm:$0xff]
        %v2788 = vld [vmem:[%s11 + $0x268] sm:$0xff]
        %v2789 = vld [vmem:[%s11 + $0x270] sm:$0xff]
        %v2790 = vld [vmem:[%s11 + $0x278] sm:$0xff]
        %v2791 = vld [vmem:[%s11 + $0x280] sm:$0xff]
        %v2792 = vld [vmem:[%s11 + $0x288] sm:$0xff]
        %v2793 = vld [vmem:[%s11 + $0x290] sm:$0xff]
        %v2794 = vld [vmem:[%s11 + $0x298] sm:$0xff]
        %v2795 = vld [vmem:[%s11 + $0x2a0] sm:$0xff]
        %v2796 = vld [vmem:[%s11 + $0x2a8] sm:$0xff]
        %v2797 = vld [vmem:[%s11 + $0x2b0] sm:$0xff]
        %v2798 = vld [vmem:[%s11 + $0x2b8] sm:$0xff]
        %v2799 = vld [vmem:[%s11 + $0x2c0] sm:$0xff]
        %v2800 = vld [vmem:[%s11 + $0x2c8] sm:$0xff]
        %v2801 = vld [vmem:[%s11 + $0x2d0] sm:$0xff]
        %v2802 = vld [vmem:[%s11 + $0x2d8] sm:$0xff]
        %v2803 = vld [vmem:[%s11 + $0x2e0] sm:$0xff]
        %v2804 = vld [vmem:[%s11 + $0x2e8] sm:$0xff]
        %v2805 = vld [vmem:[%s11 + $0x2f0] sm:$0xff]
        %v2806 = vld [vmem:[%s11 + $0x2f8] sm:$0xff]
        %v2807 = vld [vmem:[%s11 + $0x300] sm:$0xff]
        %v2808 = vld [vmem:[%s11 + $0x308] sm:$0xff]
        %v2809 = vld [vmem:[%s11 + $0x310] sm:$0xff]
        %v2810 = vld [vmem:[%s11 + $0x318] sm:$0xff]
        %v2811 = vld [vmem:[%s11 + $0x320] sm:$0xff]
        %v2812 = vld [vmem:[%s11 + $0x328] sm:$0xff]
        %v2813 = vld [vmem:[%s11 + $0x330] sm:$0xff]
        %v2814 = vld [vmem:[%s11 + $0x338] sm:$0xff]
        %v2815 = vld [vmem:[%s11 + $0x340] sm:$0xff]
        %v2816 = vld [vmem:[%s11 + $0x348] sm:$0xff]
        %v2817 = vld [vmem:[%s11 + $0x350] sm:$0xff]
        %v2818 = vld [vmem:[%s11 + $0x358] sm:$0xff]
        %v2819 = vld [vmem:[%s11 + $0x360] sm:$0xff]
        %v2820 = vld [vmem:[%s11 + $0x368] sm:$0xff]
        %v2821 = vld [vmem:[%s11 + $0x370] sm:$0xff]
        %v2822 = vld [vmem:[%s11 + $0x378] sm:$0xff]
        %v2823 = vld [vmem:[%s11 + $0x380] sm:$0xff]
        %v2824 = vld [vmem:[%s11 + $0x388] sm:$0xff]
        %v2825 = vld [vmem:[%s11 + $0x390] sm:$0xff]
        %v2826 = vld [vmem:[%s11 + $0x398] sm:$0xff]
        %v2827 = vld [vmem:[%s11 + $0x3a0] sm:$0xff]
        %v2828 = vld [vmem:[%s11 + $0x3a8] sm:$0xff]
        %v2829 = vld [vmem:[%s11 + $0x3b0] sm:$0xff]
        %v2830 = vld [vmem:[%s11 + $0x3b8] sm:$0xff]
        %v2831 = vld [vmem:[%s11 + $0x3c0] sm:$0xff]
        %v2832 = vld [vmem:[%s11 + $0x3c8] sm:$0xff]
        %v2833 = vld [vmem:[%s11 + $0x3d0] sm:$0xff]
        %v2834 = vld [vmem:[%s11 + $0x3d8] sm:$0xff]
        %v2835 = vld [vmem:[%s11 + $0x3e0] sm:$0xff]
        %v2836 = vld [vmem:[%s11 + $0x3e8] sm:$0xff]
        %v2837 = vld [vmem:[%s11 + $0x3f0] sm:$0xff]
        %v2838 = vld [vmem:[%s11 + $0x3f8] sm:$0xff]
        %v2839 = vld [vmem:[%s11 + $0x400] sm:$0xff]
        %v2840 = vld [vmem:[%s11 + $0x408] sm:$0xff]
        %v2841 = vld [vmem:[%s11 + $0x410] sm:$0xff]
        %v2842 = vld [vmem:[%s11 + $0x418] sm:$0xff]
        %v2843 = vld [vmem:[%s11 + $0x420] sm:$0xff]
        %v2844 = vld [vmem:[%s11 + $0x428] sm:$0xff]
        %v2845 = vld [vmem:[%s11 + $0x430] sm:$0xff]
        %v2846 = vld [vmem:[%s11 + $0x438] sm:$0xff]
        %v2847 = vld [vmem:[%s11 + $0x440] sm:$0xff]
        %v2848 = vld [vmem:[%s11 + $0x448] sm:$0xff]
        %v2849 = vld [vmem:[%s11 + $0x450] sm:$0xff]
        %v2850 = vld [vmem:[%s11 + $0x458] sm:$0xff]
        %v2851 = vld [vmem:[%s11 + $0x460] sm:$0xff]
        %v2852 = vld [vmem:[%s11 + $0x468] sm:$0xff]
        %v2853 = vld [vmem:[%s11 + $0x470] sm:$0xff]
        %v2854 = vld [vmem:[%s11 + $0x478] sm:$0xff]
        %v2855 = vld [vmem:[%s11 + $0x480] sm:$0xff]
        %v2856 = vld [vmem:[%s11 + $0x488] sm:$0xff]
        %v2857 = vld [vmem:[%s11 + $0x490] sm:$0xff]
        %v2858 = vld [vmem:[%s11 + $0x498] sm:$0xff]
        %v2859 = vld [vmem:[%s11 + $0x4a0] sm:$0xff]
        %v2860 = vld [vmem:[%s11 + $0x4a8] sm:$0xff]
        %v2861 = vld [vmem:[%s11 + $0x4b0] sm:$0xff]
        %v2862 = vld [vmem:[%s11 + $0x4b8] sm:$0xff]
        %v2863 = vld [vmem:[%s11 + $0x4c0] sm:$0xff]
        %v2864 = vld [vmem:[%s11 + $0x4c8] sm:$0xff]
        %v2865 = vld [vmem:[%s11 + $0x4d0] sm:$0xff]
        %v2866 = vld [vmem:[%s11 + $0x4d8] sm:$0xff]
        %v2867 = vld [vmem:[%s11 + $0x4e0] sm:$0xff]
        %v2868 = vld [vmem:[%s11 + $0x4e8] sm:$0xff]
        %v2869 = vld [vmem:[%s11 + $0x4f0] sm:$0xff]
        %v2870 = vld [vmem:[%s11 + $0x4f8] sm:$0xff]
        %v2871 = vld [vmem:[%s11 + $0x500] sm:$0xff]
        %v2872 = vld [vmem:[%s11 + $0x508] sm:$0xff]
        %v2873 = vld [vmem:[%s11 + $0x510] sm:$0xff]
        %v2874 = vld [vmem:[%s11 + $0x518] sm:$0xff]
        %v2875 = vld [vmem:[%s11 + $0x520] sm:$0xff]
        %v2876 = vld [vmem:[%s11 + $0x528] sm:$0xff]
        %v2877 = vld [vmem:[%s11 + $0x530] sm:$0xff]
        %v2878 = vld [vmem:[%s11 + $0x538] sm:$0xff]
        %v2879 = vld [vmem:[%s11 + $0x540] sm:$0xff]
        %v2880 = vld [vmem:[%s11 + $0x548] sm:$0xff]
        %v2881 = vld [vmem:[%s11 + $0x550] sm:$0xff]
        %v2882 = vld [vmem:[%s11 + $0x558] sm:$0xff]
        %v2883 = vld [vmem:[%s11 + $0x560] sm:$0xff]
        %v2884 = vld [vmem:[%s11 + $0x568] sm:$0xff]
        %v2885 = vld [vmem:[%s11 + $0x570] sm:$0xff]
        %v2886 = vld [vmem:[%s11 + $0x578] sm:$0xff]
        %v2887 = vld [vmem:[%s11 + $0x580] sm:$0xff]
        %v2888 = vld [vmem:[%s11 + $0x588] sm:$0xff]
        %v2889 = vld [vmem:[%s11 + $0x590] sm:$0xff]
        %v2890 = vld [vmem:[%s11 + $0x598] sm:$0xff]
        %v2891 = vld [vmem:[%s11 + $0x5a0] sm:$0xff]
        %v2892 = vld [vmem:[%s11 + $0x5a8] sm:$0xff]
        %v2893 = vld [vmem:[%s11 + $0x5b0] sm:$0xff]
        %v2894 = vld [vmem:[%s11 + $0x5b8] sm:$0xff]
        %v2895 = vld [vmem:[%s11 + $0x5c0] sm:$0xff]
        %v2896 = vld [vmem:[%s11 + $0x5c8] sm:$0xff]
        %v2897 = vld [vmem:[%s11 + $0x5d0] sm:$0xff]
        %v2898 = vld [vmem:[%s11 + $0x5d8] sm:$0xff]
        %v2899 = vld [vmem:[%s11 + $0x5e0] sm:$0xff]
        %v2900 = vld [vmem:[%s11 + $0x5e8] sm:$0xff]
        %v2901 = vld [vmem:[%s11 + $0x5f0] sm:$0xff]
        %v2902 = vld [vmem:[%s11 + $0x5f8] sm:$0xff]
        %v2903 = vld [vmem:[%s11 + $0x600] sm:$0xff]
        %v2904 = vld [vmem:[%s11 + $0x608] sm:$0xff]
        %v2905 = vld [vmem:[%s11 + $0x610] sm:$0xff]
        %v2906 = vld [vmem:[%s11 + $0x618] sm:$0xff]
        %v2907 = vld [vmem:[%s11 + $0x620] sm:$0xff]
        %v2908 = vld [vmem:[%s11 + $0x628] sm:$0xff]
        %v2909 = vld [vmem:[%s11 + $0x630] sm:$0xff]
        %v2910 = vld [vmem:[%s11 + $0x638] sm:$0xff]
        %v2911 = vld [vmem:[%s11 + $0x640] sm:$0xff]
        %v2912 = vld [vmem:[%s11 + $0x648] sm:$0xff]
        %v2913 = vld [vmem:[%s11 + $0x650] sm:$0xff]
        %v2914 = vld [vmem:[%s11 + $0x658] sm:$0xff]
        %v2915 = vld [vmem:[%s11 + $0x660] sm:$0xff]
        %v2916 = vld [vmem:[%s11 + $0x668] sm:$0xff]
        %v2917 = vld [vmem:[%s11 + $0x670] sm:$0xff]
        %v2918 = vld [vmem:[%s11 + $0x678] sm:$0xff]
        %v2919 = vld [vmem:[%s11 + $0x680] sm:$0xff]
        %v2920 = vld [vmem:[%s11 + $0x688] sm:$0xff]
        %v2921 = vld [vmem:[%s11 + $0x690] sm:$0x3]
        %vm2922 = vcmask 146432
        %v2924 = vsel %vm2922, %v2276, 0
        %v2927 = vsel %vm2922, %v2290, 0
        %v2930 = vsel %vm2922, %v2304, 0
        %v2933 = vsel %vm2922, %v2318, 0
        %v2936 = vsel %vm2922, %v2332, 0
        %v2939 = vsel %vm2922, %v2346, 0
        %v2942 = vsel %vm2922, %v2360, 0
        %v2945 = vsel %vm2922, %v2374, 0
        %v2948 = vsel %vm2922, %v2388, 0
        %v2951 = vsel %vm2922, %v2402, 0
        %v2954 = vsel %vm2922, %v2416, 0
        %v2957 = vsel %vm2922, %v2430, 0
        %v2960 = vsel %vm2922, %v2444, 0
        %v2963 = vsel %vm2922, %v2458, 0
        %v2966 = vsel %vm2922, %v2472, 0
        %v2969 = vsel %vm2922, %v2486, 0
        %v2972 = vsel %vm2922, %v2500, 0
        %v2975 = vsel %vm2922, %v2514, 0
        %v2978 = vsel %vm2922, %v2528, 0
        %v2981 = vsel %vm2922, %v2542, 0
        %v2984 = vsel %vm2922, %v2556, 0
        %v2987 = vsel %vm2922, %v2570, 0
        %v2990 = vsel %vm2922, %v2584, 0
        %v2993 = vsel %vm2922, %v2598, 0
        %v2996 = vsel %vm2922, %v2612, 0
        %v2999 = vsel %vm2922, %v2626, 0
        %v3002 = vsel %vm2922, %v2640, 0
        %v3005 = vsel %vm2922, %v2654, 0
        %v3008 = vsel %vm2922, %v2668, 0
        %v3011 = vsel %vm2922, %v2682, 0
        %v3014 = vsel %vm2922, %v2696, 0
        %v3017 = vsel %vm2922, %v2710, 0
        %vm3019 = vcmask 1041408
        %v3021 = vsel %vm3019, %v2921, 0
        %3023 = vmatprep.subr.mxu0 0.0
        %3024 = vmatpush1.msra.mxu0 %v2711
        %3025 = vmatprep.subr.mxu0 0.0
        %3026 = vmatpush1.msra.mxu0 %v2712
        %3027 = vmatprep.subr.mxu0 0.0
        %3028 = vmatpush1.msra.mxu0 %v2713
        %3029 = vmatprep.subr.mxu0 0.0
        %3030 = vmatpush1.msra.mxu0 %v2714
        %3031 = vmatprep.subr.mxu0 0.0
        %3032 = vmatpush1.msra.mxu0 %v2715
        %3033 = vmatprep.subr.mxu0 0.0
        %3034 = vmatpush1.msra.mxu0 %v2716
        %3035 = vmatprep.subr.mxu0 0.0
        %3036 = vmatpush1.msra.mxu0 %v2717
        %3037 = vmatprep.subr.mxu0 0.0
        %3038 = vmatpush1.msra.mxu0 %v2718
        %3039 = vmatprep.subr.mxu0 0.0
        %3040 = vmatpush1.msra.mxu0 %v2719
        %3041 = vmatprep.subr.mxu0 0.0
        %3042 = vmatpush1.msra.mxu0 %v2720
        %3043 = vmatprep.subr.mxu0 0.0
        %3044 = vmatpush1.msra.mxu0 %v2721
        %3045 = vmatprep.subr.mxu0 0.0
        %3046 = vmatpush1.msra.mxu0 %v2722
        %3047 = vmatprep.subr.mxu0 0.0
        %3048 = vmatpush1.msra.mxu0 %v2723
        %3049 = vmatprep.subr.mxu0 0.0
        %3050 = vmatpush1.msra.mxu0 %v2724
        %3051 = vmatprep.subr.mxu0 0.0
        %3052 = vmatpush1.msra.mxu0 %v2725
        %3053 = vmatprep.subr.mxu0 0.0
        %3054 = vmatpush1.msra.mxu0 %v2726
        %3055 = vmatprep.subr.mxu0 0.0
        %3056 = vmatpush1.msra.mxu0 %v2727
        %3057 = vmatprep.subr.mxu0 0.0
        %3058 = vmatpush1.msra.mxu0 %v2728
        %3059 = vmatprep.subr.mxu0 0.0
        %3060 = vmatpush1.msra.mxu0 %v2729
        %3061 = vmatprep.subr.mxu0 0.0
        %3062 = vmatpush1.msra.mxu0 %v2730
        %3063 = vmatprep.subr.mxu0 0.0
        %3064 = vmatpush1.msra.mxu0 %v2731
        %3065 = vmatprep.subr.mxu0 0.0
        %3066 = vmatpush1.msra.mxu0 %v2732
        %3067 = vmatprep.subr.mxu0 0.0
        %3068 = vmatpush1.msra.mxu0 %v2733
        %3069 = vmatprep.subr.mxu0 0.0
        %3070 = vmatpush1.msra.mxu0 %v2734
        %3071 = vmatprep.subr.mxu0 0.0
        %3072 = vmatpush1.msra.mxu0 %v2735
        %3073 = vmatprep.subr.mxu0 0.0
        %3074 = vmatpush1.msra.mxu0 %v2736
        %3075 = vmatprep.subr.mxu0 0.0
        %3076 = vmatpush1.msra.mxu0 %v2737
        %3077 = vmatprep.subr.mxu0 0.0
        %3078 = vmatpush1.msra.mxu0 %v2738
        %3079 = vmatprep.subr.mxu0 0.0
        %3080 = vmatpush1.msra.mxu0 %v2739
        %3081 = vmatprep.subr.mxu0 0.0
        %3082 = vmatpush1.msra.mxu0 %v2740
        %3083 = vmatprep.subr.mxu0 0.0
        %3084 = vmatpush1.msra.mxu0 %v2741
        %3085 = vmatprep.subr.mxu0 0.0
        %3086 = vmatpush1.msra.mxu0 %v2742
        %3087 = vmatprep.mubr.f32.mxu0 %v2264
        %3088 = vmatmul.mubr.f32.gmra.mrb[0].mxu0 %v2263
        %v3089 = vpop.f32.mrb[0].mxu0
        %v3090 = vadd.f32 0.0, %v3089
        %v3091 = vpop.f32.mrb[0].mxu0
        %3092 = vmatprep.mubr.f32.mxu0 %v2278
        %3093 = vmatmul.mubr.f32.gmra.mrb[0].mxu0 %v2277
        %v3094 = vpop.f32.mrb[0].mxu0
        %v3095 = vadd.f32 0.0, %v3094
        %v3096 = vpop.f32.mrb[0].mxu0
        %3097 = vmatprep.mubr.f32.mxu0 %v2292
        %3098 = vmatmul.mubr.f32.gmra.mrb[0].mxu0 %v2291
        %v3099 = vpop.f32.mrb[0].mxu0
        %v3100 = vadd.f32 0.0, %v3099
        %v3101 = vpop.f32.mrb[0].mxu0
        %3102 = vmatprep.mubr.f32.mxu0 %v2306
        %3103 = vmatmul.mubr.f32.gmra.mrb[0].mxu0 %v2305
        %v3104 = vpop.f32.mrb[0].mxu0
        %v3105 = vadd.f32 0.0, %v3104
        %v3106 = vpop.f32.mrb[0].mxu0
        %3107 = vmatprep.mubr.f32.mxu0 %v2320
        %3108 = vmatmul.mubr.f32.gmra.mrb[0].mxu0 %v2319
        %v3109 = vpop.f32.mrb[0].mxu0
        %v3110 = vadd.f32 0.0, %v3109
        %v3111 = vpop.f32.mrb[0].mxu0
        %3112 = vmatprep.mubr.f32.mxu0 %v2334
        %3113 = vmatmul.mubr.f32.gmra.mrb[0].mxu0 %v2333
        %v3114 = vpop.f32.mrb[0].mxu0
        %v3115 = vadd.f32 0.0, %v3114
        %v3116 = vpop.f32.mrb[0].mxu0
        %3117 = vmatprep.mubr.f32.mxu0 %v2348
        %3118 = vmatmul.mubr.f32.gmra.mrb[0].mxu0 %v2347
        %v3119 = vpop.f32.mrb[0].mxu0
        %v3120 = vadd.f32 0.0, %v3119
        %v3121 = vpop.f32.mrb[0].mxu0
        %3122 = vmatprep.mubr.f32.mxu0 %v2362
        %3123 = vmatmul.mubr.f32.gmra.mrb[0].mxu0 %v2361
        %v3124 = vpop.f32.mrb[0].mxu0
        %v3125 = vadd.f32 0.0, %v3124
        %v3126 = vpop.f32.mrb[0].mxu0
        %3127 = vmatprep.mubr.f32.mxu0 %v2376
        %3128 = vmatmul.mubr.f32.gmra.mrb[0].mxu0 %v2375
        %v3129 = vpop.f32.mrb[0].mxu0
        %v3130 = vadd.f32 0.0, %v3129
        %v3131 = vpop.f32.mrb[0].mxu0
        %3132 = vmatprep.mubr.f32.mxu0 %v2390
        %3133 = vmatmul.mubr.f32.gmra.mrb[0].mxu0 %v2389
        %v3134 = vpop.f32.mrb[0].mxu0
        %v3135 = vadd.f32 0.0, %v3134
        %v3136 = vpop.f32.mrb[0].mxu0
        %3137 = vmatprep.mubr.f32.mxu0 %v2404
        %3138 = vmatmul.mubr.f32.gmra.mrb[0].mxu0 %v2403
        %v3139 = vpop.f32.mrb[0].mxu0
        %v3140 = vadd.f32 0.0, %v3139
        %v3141 = vpop.f32.mrb[0].mxu0
        %3142 = vmatprep.mubr.f32.mxu0 %v2418
        %3143 = vmatmul.mubr.f32.gmra.mrb[0].mxu0 %v2417
        %v3144 = vpop.f32.mrb[0].mxu0
        %v3145 = vadd.f32 0.0, %v3144
        %v3146 = vpop.f32.mrb[0].mxu0
        %3147 = vmatprep.mubr.f32.mxu0 %v2432
        %3148 = vmatmul.mubr.f32.gmra.mrb[0].mxu0 %v2431
        %v3149 = vpop.f32.mrb[0].mxu0
        %v3150 = vadd.f32 0.0, %v3149
        %v3151 = vpop.f32.mrb[0].mxu0
        %3152 = vmatprep.mubr.f32.mxu0 %v2446
        %3153 = vmatmul.mubr.f32.gmra.mrb[0].mxu0 %v2445
        %v3154 = vpop.f32.mrb[0].mxu0
        %v3155 = vadd.f32 0.0, %v3154
        %v3156 = vpop.f32.mrb[0].mxu0
        %3157 = vmatprep.mubr.f32.mxu0 %v2460
        %3158 = vmatmul.mubr.f32.gmra.mrb[0].mxu0 %v2459
        %v3159 = vpop.f32.mrb[0].mxu0
        %v3160 = vadd.f32 0.0, %v3159
        %v3161 = vpop.f32.mrb[0].mxu0
        %3162 = vmatprep.mubr.f32.mxu0 %v2474
        %3163 = vmatmul.mubr.f32.gmra.mrb[0].mxu0 %v2473
        %v3164 = vpop.f32.mrb[0].mxu0
        %v3165 = vadd.f32 0.0, %v3164
        %v3166 = vpop.f32.mrb[0].mxu0
        %3167 = vmatprep.mubr.f32.mxu0 %v2488
        %3168 = vmatmul.mubr.f32.gmra.mrb[0].mxu0 %v2487
        %v3169 = vpop.f32.mrb[0].mxu0
        %v3170 = vadd.f32 0.0, %v3169
        %v3171 = vpop.f32.mrb[0].mxu0
        %3172 = vmatprep.mubr.f32.mxu0 %v2502
        %3173 = vmatmul.mubr.f32.gmra.mrb[0].mxu0 %v2501
        %v3174 = vpop.f32.mrb[0].mxu0
        %v3175 = vadd.f32 0.0, %v3174
        %v3176 = vpop.f32.mrb[0].mxu0
        %3177 = vmatprep.mubr.f32.mxu0 %v2516
        %3178 = vmatmul.mubr.f32.gmra.mrb[0].mxu0 %v2515
        %v3179 = vpop.f32.mrb[0].mxu0
        %v3180 = vadd.f32 0.0, %v3179
        %v3181 = vpop.f32.mrb[0].mxu0
        %3182 = vmatprep.mubr.f32.mxu0 %v2530
        %3183 = vmatmul.mubr.f32.gmra.mrb[0].mxu0 %v2529
        %v3184 = vpop.f32.mrb[0].mxu0
        %v3185 = vadd.f32 0.0, %v3184
        %v3186 = vpop.f32.mrb[0].mxu0
        %3187 = vmatprep.mubr.f32.mxu0 %v2544
        %3188 = vmatmul.mubr.f32.gmra.mrb[0].mxu0 %v2543
        %v3189 = vpop.f32.mrb[0].mxu0
        %v3190 = vadd.f32 0.0, %v3189
        %v3191 = vpop.f32.mrb[0].mxu0
        %3192 = vmatprep.mubr.f32.mxu0 %v2558
        %3193 = vmatmul.mubr.f32.gmra.mrb[0].mxu0 %v2557
        %v3194 = vpop.f32.mrb[0].mxu0
        %v3195 = vadd.f32 0.0, %v3194
        %v3196 = vpop.f32.mrb[0].mxu0
        %3197 = vmatprep.mubr.f32.mxu0 %v2572
        %3198 = vmatmul.mubr.f32.gmra.mrb[0].mxu0 %v2571
        %v3199 = vpop.f32.mrb[0].mxu0
        %v3200 = vadd.f32 0.0, %v3199
        %v3201 = vpop.f32.mrb[0].mxu0
        %3202 = vmatprep.mubr.f32.mxu0 %v2586
        %3203 = vmatmul.mubr.f32.gmra.mrb[0].mxu0 %v2585
        %v3204 = vpop.f32.mrb[0].mxu0
        %v3205 = vadd.f32 0.0, %v3204
        %v3206 = vpop.f32.mrb[0].mxu0
        %3207 = vmatprep.mubr.f32.mxu0 %v2600
        %3208 = vmatmul.mubr.f32.gmra.mrb[0].mxu0 %v2599
        %v3209 = vpop.f32.mrb[0].mxu0
        %v3210 = vadd.f32 0.0, %v3209
        %v3211 = vpop.f32.mrb[0].mxu0
        %3212 = vmatprep.mubr.f32.mxu0 %v2614
        %3213 = vmatmul.mubr.f32.gmra.mrb[0].mxu0 %v2613
        %v3214 = vpop.f32.mrb[0].mxu0
        %v3215 = vadd.f32 0.0, %v3214
        %v3216 = vpop.f32.mrb[0].mxu0
        %3217 = vmatprep.mubr.f32.mxu0 %v2628
        %3218 = vmatmul.mubr.f32.gmra.mrb[0].mxu0 %v2627
        %v3219 = vpop.f32.mrb[0].mxu0
        %v3220 = vadd.f32 0.0, %v3219
        %v3221 = vpop.f32.mrb[0].mxu0
        %3222 = vmatprep.mubr.f32.mxu0 %v2642
        %3223 = vmatmul.mubr.f32.gmra.mrb[0].mxu0 %v2641
        %v3224 = vpop.f32.mrb[0].mxu0
        %v3225 = vadd.f32 0.0, %v3224
        %v3226 = vpop.f32.mrb[0].mxu0
        %3227 = vmatprep.mubr.f32.mxu0 %v2656
        %3228 = vmatmul.mubr.f32.gmra.mrb[0].mxu0 %v2655
        %v3229 = vpop.f32.mrb[0].mxu0
        %v3230 = vadd.f32 0.0, %v3229
        %v3231 = vpop.f32.mrb[0].mxu0
        %3232 = vmatprep.mubr.f32.mxu0 %v2670
        %3233 = vmatmul.mubr.f32.gmra.mrb[0].mxu0 %v2669
        %v3234 = vpop.f32.mrb[0].mxu0
        %v3235 = vadd.f32 0.0, %v3234
        %v3236 = vpop.f32.mrb[0].mxu0
        %3237 = vmatprep.mubr.f32.mxu0 %v2684
        %3238 = vmatmul.mubr.f32.gmra.mrb[0].mxu0 %v2683
        %v3239 = vpop.f32.mrb[0].mxu0
        %v3240 = vadd.f32 0.0, %v3239
        %v3241 = vpop.f32.mrb[0].mxu0
        %3242 = vmatprep.mubr.f32.mxu0 %v2698
        %3243 = vmatmul.mubr.f32.gmra.mrb[0].mxu0 %v2697
        %v3244 = vpop.f32.mrb[0].mxu0
        %v3245 = vadd.f32 0.0, %v3244
        %v3246 = vpop.f32.mrb[0].mxu0
        %3247 = vdwg.mxu0
        %3248 = vmatprep.subr.mxu0 0.0
        %3249 = vmatpush1.msra.mxu0 %v2743
        %3250 = vmatprep.subr.mxu0 0.0
        %3251 = vmatpush1.msra.mxu0 %v2744
        %3252 = vmatprep.subr.mxu0 0.0
        %3253 = vmatpush1.msra.mxu0 %v2745
        %3254 = vmatprep.subr.mxu0 0.0
        %3255 = vmatpush1.msra.mxu0 %v2746
        %3256 = vmatprep.subr.mxu0 0.0
        %3257 = vmatpush1.msra.mxu0 %v2747
        %3258 = vmatprep.subr.mxu0 0.0
        %3259 = vmatpush1.msra.mxu0 %v2748
        %3260 = vmatprep.subr.mxu0 0.0
        %3261 = vmatpush1.msra.mxu0 %v2749
        %3262 = vmatprep.subr.mxu0 0.0
        %3263 = vmatpush1.msra.mxu0 %v2750
        %3264 = vmatprep.subr.mxu0 0.0
        %3265 = vmatpush1.msra.mxu0 %v2751
        %3266 = vmatprep.subr.mxu0 0.0
        %3267 = vmatpush1.msra.mxu0 %v2752
        %3268 = vmatprep.subr.mxu0 0.0
        %3269 = vmatpush1.msra.mxu0 %v2753
        %3270 = vmatprep.subr.mxu0 0.0
        %3271 = vmatpush1.msra.mxu0 %v2754
        %3272 = vmatprep.subr.mxu0 0.0
        %3273 = vmatpush1.msra.mxu0 %v2755
        %3274 = vmatprep.subr.mxu0 0.0
        %3275 = vmatpush1.msra.mxu0 %v2756
        %3276 = vmatprep.subr.mxu0 0.0
        %3277 = vmatpush1.msra.mxu0 %v2757
        %3278 = vmatprep.subr.mxu0 0.0
        %3279 = vmatpush1.msra.mxu0 %v2758
        %3280 = vmatprep.subr.mxu0 0.0
        %3281 = vmatpush1.msra.mxu0 %v2759
        %3282 = vmatprep.subr.mxu0 0.0
        %3283 = vmatpush1.msra.mxu0 %v2760
        %3284 = vmatprep.subr.mxu0 0.0
        %3285 = vmatpush1.msra.mxu0 %v2761
        %3286 = vmatprep.subr.mxu0 0.0
        %3287 = vmatpush1.msra.mxu0 %v2762
        %3288 = vmatprep.subr.mxu0 0.0
        %3289 = vmatpush1.msra.mxu0 %v2763
        %3290 = vmatprep.subr.mxu0 0.0
        %3291 = vmatpush1.msra.mxu0 %v2764
        %3292 = vmatprep.subr.mxu0 0.0
        %3293 = vmatpush1.msra.mxu0 %v2765
        %3294 = vmatprep.subr.mxu0 0.0
        %3295 = vmatpush1.msra.mxu0 %v2766
        %3296 = vmatprep.subr.mxu0 0.0
        %3297 = vmatpush1.msra.mxu0 %v2767
        %3298 = vmatprep.subr.mxu0 0.0
        %3299 = vmatpush1.msra.mxu0 %v2768
        %3300 = vmatprep.subr.mxu0 0.0
        %3301 = vmatpush1.msra.mxu0 %v2769
        %3302 = vmatprep.subr.mxu0 0.0
        %3303 = vmatpush1.msra.mxu0 %v2770
        %3304 = vmatprep.subr.mxu0 0.0
        %3305 = vmatpush1.msra.mxu0 %v2771
        %3306 = vmatprep.subr.mxu0 0.0
        %3307 = vmatpush1.msra.mxu0 %v2772
        %3308 = vmatprep.subr.mxu0 0.0
        %3309 = vmatpush1.msra.mxu0 %v2773
        %3310 = vmatprep.subr.mxu0 0.0
        %3311 = vmatpush1.msra.mxu0 %v2774
        %3312 = vmatprep.mubr.f32.mxu0 %v2266
        %3313 = vmatmul.mubr.f32.gmra.mrb[0].mxu0 %v2265
        %v3314 = vpop.f32.mrb[0].mxu0
        %v3315 = vadd.f32 %v3090, %v3314
        %v3316 = vpop.f32.mrb[0].mxu0
        %3317 = vmatprep.mubr.f32.mxu0 %v2280
        %3318 = vmatmul.mubr.f32.gmra.mrb[0].mxu0 %v2279
        %v3319 = vpop.f32.mrb[0].mxu0
        %v3320 = vadd.f32 %v3095, %v3319
        %v3321 = vpop.f32.mrb[0].mxu0
        %3322 = vmatprep.mubr.f32.mxu0 %v2294
        %3323 = vmatmul.mubr.f32.gmra.mrb[0].mxu0 %v2293
        %v3324 = vpop.f32.mrb[0].mxu0
        %v3325 = vadd.f32 %v3100, %v3324
        %v3326 = vpop.f32.mrb[0].mxu0
        %3327 = vmatprep.mubr.f32.mxu0 %v2308
        %3328 = vmatmul.mubr.f32.gmra.mrb[0].mxu0 %v2307
        %v3329 = vpop.f32.mrb[0].mxu0
        %v3330 = vadd.f32 %v3105, %v3329
        %v3331 = vpop.f32.mrb[0].mxu0
        %3332 = vmatprep.mubr.f32.mxu0 %v2322
        %3333 = vmatmul.mubr.f32.gmra.mrb[0].mxu0 %v2321
        %v3334 = vpop.f32.mrb[0].mxu0
        %v3335 = vadd.f32 %v3110, %v3334
        %v3336 = vpop.f32.mrb[0].mxu0
        %3337 = vmatprep.mubr.f32.mxu0 %v2336
        %3338 = vmatmul.mubr.f32.gmra.mrb[0].mxu0 %v2335
        %v3339 = vpop.f32.mrb[0].mxu0
        %v3340 = vadd.f32 %v3115, %v3339
        %v3341 = vpop.f32.mrb[0].mxu0
        %3342 = vmatprep.mubr.f32.mxu0 %v2350
        %3343 = vmatmul.mubr.f32.gmra.mrb[0].mxu0 %v2349
        %v3344 = vpop.f32.mrb[0].mxu0
        %v3345 = vadd.f32 %v3120, %v3344
        %v3346 = vpop.f32.mrb[0].mxu0
        %3347 = vmatprep.mubr.f32.mxu0 %v2364
        %3348 = vmatmul.mubr.f32.gmra.mrb[0].mxu0 %v2363
        %v3349 = vpop.f32.mrb[0].mxu0
        %v3350 = vadd.f32 %v3125, %v3349
        %v3351 = vpop.f32.mrb[0].mxu0
        %3352 = vmatprep.mubr.f32.mxu0 %v2378
        %3353 = vmatmul.mubr.f32.gmra.mrb[0].mxu0 %v2377
        %v3354 = vpop.f32.mrb[0].mxu0
        %v3355 = vadd.f32 %v3130, %v3354
        %v3356 = vpop.f32.mrb[0].mxu0
        %3357 = vmatprep.mubr.f32.mxu0 %v2392
        %3358 = vmatmul.mubr.f32.gmra.mrb[0].mxu0 %v2391
        %v3359 = vpop.f32.mrb[0].mxu0
        %v3360 = vadd.f32 %v3135, %v3359
        %v3361 = vpop.f32.mrb[0].mxu0
        %3362 = vmatprep.mubr.f32.mxu0 %v2406
        %3363 = vmatmul.mubr.f32.gmra.mrb[0].mxu0 %v2405
        %v3364 = vpop.f32.mrb[0].mxu0
        %v3365 = vadd.f32 %v3140, %v3364
        %v3366 = vpop.f32.mrb[0].mxu0
        %3367 = vmatprep.mubr.f32.mxu0 %v2420
        %3368 = vmatmul.mubr.f32.gmra.mrb[0].mxu0 %v2419
        %v3369 = vpop.f32.mrb[0].mxu0
        %v3370 = vadd.f32 %v3145, %v3369
        %v3371 = vpop.f32.mrb[0].mxu0
        %3372 = vmatprep.mubr.f32.mxu0 %v2434
        %3373 = vmatmul.mubr.f32.gmra.mrb[0].mxu0 %v2433
        %v3374 = vpop.f32.mrb[0].mxu0
        %v3375 = vadd.f32 %v3150, %v3374
        %v3376 = vpop.f32.mrb[0].mxu0
        %3377 = vmatprep.mubr.f32.mxu0 %v2448
        %3378 = vmatmul.mubr.f32.gmra.mrb[0].mxu0 %v2447
        %v3379 = vpop.f32.mrb[0].mxu0
        %v3380 = vadd.f32 %v3155, %v3379
        %v3381 = vpop.f32.mrb[0].mxu0
        %3382 = vmatprep.mubr.f32.mxu0 %v2462
        %3383 = vmatmul.mubr.f32.gmra.mrb[0].mxu0 %v2461
        %v3384 = vpop.f32.mrb[0].mxu0
        %v3385 = vadd.f32 %v3160, %v3384
        %v3386 = vpop.f32.mrb[0].mxu0
        %3387 = vmatprep.mubr.f32.mxu0 %v2476
        %3388 = vmatmul.mubr.f32.gmra.mrb[0].mxu0 %v2475
        %v3389 = vpop.f32.mrb[0].mxu0
        %v3390 = vadd.f32 %v3165, %v3389
        %v3391 = vpop.f32.mrb[0].mxu0
        %3392 = vmatprep.mubr.f32.mxu0 %v2490
        %3393 = vmatmul.mubr.f32.gmra.mrb[0].mxu0 %v2489
        %v3394 = vpop.f32.mrb[0].mxu0
        %v3395 = vadd.f32 %v3170, %v3394
        %v3396 = vpop.f32.mrb[0].mxu0
        %3397 = vmatprep.mubr.f32.mxu0 %v2504
        %3398 = vmatmul.mubr.f32.gmra.mrb[0].mxu0 %v2503
        %v3399 = vpop.f32.mrb[0].mxu0
        %v3400 = vadd.f32 %v3175, %v3399
        %v3401 = vpop.f32.mrb[0].mxu0
        %3402 = vmatprep.mubr.f32.mxu0 %v2518
        %3403 = vmatmul.mubr.f32.gmra.mrb[0].mxu0 %v2517
        %v3404 = vpop.f32.mrb[0].mxu0
        %v3405 = vadd.f32 %v3180, %v3404
        %v3406 = vpop.f32.mrb[0].mxu0
        %3407 = vmatprep.mubr.f32.mxu0 %v2532
        %3408 = vmatmul.mubr.f32.gmra.mrb[0].mxu0 %v2531
        %v3409 = vpop.f32.mrb[0].mxu0
        %v3410 = vadd.f32 %v3185, %v3409
        %v3411 = vpop.f32.mrb[0].mxu0
        %3412 = vmatprep.mubr.f32.mxu0 %v2546
        %3413 = vmatmul.mubr.f32.gmra.mrb[0].mxu0 %v2545
        %v3414 = vpop.f32.mrb[0].mxu0
        %v3415 = vadd.f32 %v3190, %v3414
        %v3416 = vpop.f32.mrb[0].mxu0
        %3417 = vmatprep.mubr.f32.mxu0 %v2560
        %3418 = vmatmul.mubr.f32.gmra.mrb[0].mxu0 %v2559
        %v3419 = vpop.f32.mrb[0].mxu0
        %v3420 = vadd.f32 %v3195, %v3419
        %v3421 = vpop.f32.mrb[0].mxu0
        %3422 = vmatprep.mubr.f32.mxu0 %v2574
        %3423 = vmatmul.mubr.f32.gmra.mrb[0].mxu0 %v2573
        %v3424 = vpop.f32.mrb[0].mxu0
        %v3425 = vadd.f32 %v3200, %v3424
        %v3426 = vpop.f32.mrb[0].mxu0
        %3427 = vmatprep.mubr.f32.mxu0 %v2588
        %3428 = vmatmul.mubr.f32.gmra.mrb[0].mxu0 %v2587
        %v3429 = vpop.f32.mrb[0].mxu0
        %v3430 = vadd.f32 %v3205, %v3429
        %v3431 = vpop.f32.mrb[0].mxu0
        %3432 = vmatprep.mubr.f32.mxu0 %v2602
        %3433 = vmatmul.mubr.f32.gmra.mrb[0].mxu0 %v2601
        %v3434 = vpop.f32.mrb[0].mxu0
        %v3435 = vadd.f32 %v3210, %v3434
        %v3436 = vpop.f32.mrb[0].mxu0
        %3437 = vmatprep.mubr.f32.mxu0 %v2616
        %3438 = vmatmul.mubr.f32.gmra.mrb[0].mxu0 %v2615
        %v3439 = vpop.f32.mrb[0].mxu0
        %v3440 = vadd.f32 %v3215, %v3439
        %v3441 = vpop.f32.mrb[0].mxu0
        %3442 = vmatprep.mubr.f32.mxu0 %v2630
        %3443 = vmatmul.mubr.f32.gmra.mrb[0].mxu0 %v2629
        %v3444 = vpop.f32.mrb[0].mxu0
        %v3445 = vadd.f32 %v3220, %v3444
        %v3446 = vpop.f32.mrb[0].mxu0
        %3447 = vmatprep.mubr.f32.mxu0 %v2644
        %3448 = vmatmul.mubr.f32.gmra.mrb[0].mxu0 %v2643
        %v3449 = vpop.f32.mrb[0].mxu0
        %v3450 = vadd.f32 %v3225, %v3449
        %v3451 = vpop.f32.mrb[0].mxu0
        %3452 = vmatprep.mubr.f32.mxu0 %v2658
        %3453 = vmatmul.mubr.f32.gmra.mrb[0].mxu0 %v2657
        %v3454 = vpop.f32.mrb[0].mxu0
        %v3455 = vadd.f32 %v3230, %v3454
        %v3456 = vpop.f32.mrb[0].mxu0
        %3457 = vmatprep.mubr.f32.mxu0 %v2672
        %3458 = vmatmul.mubr.f32.gmra.mrb[0].mxu0 %v2671
        %v3459 = vpop.f32.mrb[0].mxu0
        %v3460 = vadd.f32 %v3235, %v3459
        %v3461 = vpop.f32.mrb[0].mxu0
        %3462 = vmatprep.mubr.f32.mxu0 %v2686
        %3463 = vmatmul.mubr.f32.gmra.mrb[0].mxu0 %v2685
        %v3464 = vpop.f32.mrb[0].mxu0
        %v3465 = vadd.f32 %v3240, %v3464
        %v3466 = vpop.f32.mrb[0].mxu0
        %3467 = vmatprep.mubr.f32.mxu0 %v2700
        %3468 = vmatmul.mubr.f32.gmra.mrb[0].mxu0 %v2699
        %v3469 = vpop.f32.mrb[0].mxu0
        %v3470 = vadd.f32 %v3245, %v3469
        %v3471 = vpop.f32.mrb[0].mxu0
        %3472 = vdwg.mxu0
        %3473 = vmatprep.subr.mxu0 0.0
        %3474 = vmatpush1.msra.mxu0 %v2775
        %3475 = vmatprep.subr.mxu0 0.0
        %3476 = vmatpush1.msra.mxu0 %v2776
        %3477 = vmatprep.subr.mxu0 0.0
        %3478 = vmatpush1.msra.mxu0 %v2777
        %3479 = vmatprep.subr.mxu0 0.0
        %3480 = vmatpush1.msra.mxu0 %v2778
        %3481 = vmatprep.subr.mxu0 0.0
        %3482 = vmatpush1.msra.mxu0 %v2779
        %3483 = vmatprep.subr.mxu0 0.0
        %3484 = vmatpush1.msra.mxu0 %v2780
        %3485 = vmatprep.subr.mxu0 0.0
        %3486 = vmatpush1.msra.mxu0 %v2781
        %3487 = vmatprep.subr.mxu0 0.0
        %3488 = vmatpush1.msra.mxu0 %v2782
        %3489 = vmatprep.subr.mxu0 0.0
        %3490 = vmatpush1.msra.mxu0 %v2783
        %3491 = vmatprep.subr.mxu0 0.0
        %3492 = vmatpush1.msra.mxu0 %v2784
        %3493 = vmatprep.subr.mxu0 0.0
        %3494 = vmatpush1.msra.mxu0 %v2785
        %3495 = vmatprep.subr.mxu0 0.0
        %3496 = vmatpush1.msra.mxu0 %v2786
        %3497 = vmatprep.subr.mxu0 0.0
        %3498 = vmatpush1.msra.mxu0 %v2787
        %3499 = vmatprep.subr.mxu0 0.0
        %3500 = vmatpush1.msra.mxu0 %v2788
        %3501 = vmatprep.subr.mxu0 0.0
        %3502 = vmatpush1.msra.mxu0 %v2789
        %3503 = vmatprep.subr.mxu0 0.0
        %3504 = vmatpush1.msra.mxu0 %v2790
        %3505 = vmatprep.subr.mxu0 0.0
        %3506 = vmatpush1.msra.mxu0 %v2791
        %3507 = vmatprep.subr.mxu0 0.0
        %3508 = vmatpush1.msra.mxu0 %v2792
        %3509 = vmatprep.subr.mxu0 0.0
        %3510 = vmatpush1.msra.mxu0 %v2793
        %3511 = vmatprep.subr.mxu0 0.0
        %3512 = vmatpush1.msra.mxu0 %v2794
        %3513 = vmatprep.subr.mxu0 0.0
        %3514 = vmatpush1.msra.mxu0 %v2795
        %3515 = vmatprep.subr.mxu0 0.0
        %3516 = vmatpush1.msra.mxu0 %v2796
        %3517 = vmatprep.subr.mxu0 0.0
        %3518 = vmatpush1.msra.mxu0 %v2797
        %3519 = vmatprep.subr.mxu0 0.0
        %3520 = vmatpush1.msra.mxu0 %v2798
        %3521 = vmatprep.subr.mxu0 0.0
        %3522 = vmatpush1.msra.mxu0 %v2799
        %3523 = vmatprep.subr.mxu0 0.0
        %3524 = vmatpush1.msra.mxu0 %v2800
        %3525 = vmatprep.subr.mxu0 0.0
        %3526 = vmatpush1.msra.mxu0 %v2801
        %3527 = vmatprep.subr.mxu0 0.0
        %3528 = vmatpush1.msra.mxu0 %v2802
        %3529 = vmatprep.subr.mxu0 0.0
        %3530 = vmatpush1.msra.mxu0 %v2803
        %3531 = vmatprep.subr.mxu0 0.0
        %3532 = vmatpush1.msra.mxu0 %v2804
        %3533 = vmatprep.subr.mxu0 0.0
        %3534 = vmatpush1.msra.mxu0 %v2805
        %3535 = vmatprep.subr.mxu0 0.0
        %3536 = vmatpush1.msra.mxu0 %v2806
        %3537 = vmatprep.mubr.f32.mxu0 %v2268
        %3538 = vmatmul.mubr.f32.gmra.mrb[0].mxu0 %v2267
        %v3539 = vpop.f32.mrb[0].mxu0
        %v3540 = vadd.f32 %v3315, %v3539
        %v3541 = vpop.f32.mrb[0].mxu0
        %3542 = vmatprep.mubr.f32.mxu0 %v2282
        %3543 = vmatmul.mubr.f32.gmra.mrb[0].mxu0 %v2281
        %v3544 = vpop.f32.mrb[0].mxu0
        %v3545 = vadd.f32 %v3320, %v3544
        %v3546 = vpop.f32.mrb[0].mxu0
        %3547 = vmatprep.mubr.f32.mxu0 %v2296
        %3548 = vmatmul.mubr.f32.gmra.mrb[0].mxu0 %v2295
        %v3549 = vpop.f32.mrb[0].mxu0
        %v3550 = vadd.f32 %v3325, %v3549
        %v3551 = vpop.f32.mrb[0].mxu0
        %3552 = vmatprep.mubr.f32.mxu0 %v2310
        %3553 = vmatmul.mubr.f32.gmra.mrb[0].mxu0 %v2309
        %v3554 = vpop.f32.mrb[0].mxu0
        %v3555 = vadd.f32 %v3330, %v3554
        %v3556 = vpop.f32.mrb[0].mxu0
        %3557 = vmatprep.mubr.f32.mxu0 %v2324
        %3558 = vmatmul.mubr.f32.gmra.mrb[0].mxu0 %v2323
        %v3559 = vpop.f32.mrb[0].mxu0
        %v3560 = vadd.f32 %v3335, %v3559
        %v3561 = vpop.f32.mrb[0].mxu0
        %3562 = vmatprep.mubr.f32.mxu0 %v2338
        %3563 = vmatmul.mubr.f32.gmra.mrb[0].mxu0 %v2337
        %v3564 = vpop.f32.mrb[0].mxu0
        %v3565 = vadd.f32 %v3340, %v3564
        %v3566 = vpop.f32.mrb[0].mxu0
        %3567 = vmatprep.mubr.f32.mxu0 %v2352
        %3568 = vmatmul.mubr.f32.gmra.mrb[0].mxu0 %v2351
        %v3569 = vpop.f32.mrb[0].mxu0
        %v3570 = vadd.f32 %v3345, %v3569
        %v3571 = vpop.f32.mrb[0].mxu0
        %3572 = vmatprep.mubr.f32.mxu0 %v2366
        %3573 = vmatmul.mubr.f32.gmra.mrb[0].mxu0 %v2365
        %v3574 = vpop.f32.mrb[0].mxu0
        %v3575 = vadd.f32 %v3350, %v3574
        %v3576 = vpop.f32.mrb[0].mxu0
        %3577 = vmatprep.mubr.f32.mxu0 %v2380
        %3578 = vmatmul.mubr.f32.gmra.mrb[0].mxu0 %v2379
        %v3579 = vpop.f32.mrb[0].mxu0
        %v3580 = vadd.f32 %v3355, %v3579
        %v3581 = vpop.f32.mrb[0].mxu0
        %3582 = vmatprep.mubr.f32.mxu0 %v2394
        %3583 = vmatmul.mubr.f32.gmra.mrb[0].mxu0 %v2393
        %v3584 = vpop.f32.mrb[0].mxu0
        %v3585 = vadd.f32 %v3360, %v3584
        %v3586 = vpop.f32.mrb[0].mxu0
        %3587 = vmatprep.mubr.f32.mxu0 %v2408
        %3588 = vmatmul.mubr.f32.gmra.mrb[0].mxu0 %v2407
        %v3589 = vpop.f32.mrb[0].mxu0
        %v3590 = vadd.f32 %v3365, %v3589
        %v3591 = vpop.f32.mrb[0].mxu0
        %3592 = vmatprep.mubr.f32.mxu0 %v2422
        %3593 = vmatmul.mubr.f32.gmra.mrb[0].mxu0 %v2421
        %v3594 = vpop.f32.mrb[0].mxu0
        %v3595 = vadd.f32 %v3370, %v3594
        %v3596 = vpop.f32.mrb[0].mxu0
        %3597 = vmatprep.mubr.f32.mxu0 %v2436
        %3598 = vmatmul.mubr.f32.gmra.mrb[0].mxu0 %v2435
        %v3599 = vpop.f32.mrb[0].mxu0
        %v3600 = vadd.f32 %v3375, %v3599
        %v3601 = vpop.f32.mrb[0].mxu0
        %3602 = vmatprep.mubr.f32.mxu0 %v2450
        %3603 = vmatmul.mubr.f32.gmra.mrb[0].mxu0 %v2449
        %v3604 = vpop.f32.mrb[0].mxu0
        %v3605 = vadd.f32 %v3380, %v3604
        %v3606 = vpop.f32.mrb[0].mxu0
        %3607 = vmatprep.mubr.f32.mxu0 %v2464
        %3608 = vmatmul.mubr.f32.gmra.mrb[0].mxu0 %v2463
        %v3609 = vpop.f32.mrb[0].mxu0
        %v3610 = vadd.f32 %v3385, %v3609
        %v3611 = vpop.f32.mrb[0].mxu0
        %3612 = vmatprep.mubr.f32.mxu0 %v2478
        %3613 = vmatmul.mubr.f32.gmra.mrb[0].mxu0 %v2477
        %v3614 = vpop.f32.mrb[0].mxu0
        %v3615 = vadd.f32 %v3390, %v3614
        %v3616 = vpop.f32.mrb[0].mxu0
        %3617 = vmatprep.mubr.f32.mxu0 %v2492
        %3618 = vmatmul.mubr.f32.gmra.mrb[0].mxu0 %v2491
        %v3619 = vpop.f32.mrb[0].mxu0
        %v3620 = vadd.f32 %v3395, %v3619
        %v3621 = vpop.f32.mrb[0].mxu0
        %3622 = vmatprep.mubr.f32.mxu0 %v2506
        %3623 = vmatmul.mubr.f32.gmra.mrb[0].mxu0 %v2505
        %v3624 = vpop.f32.mrb[0].mxu0
        %v3625 = vadd.f32 %v3400, %v3624
        %v3626 = vpop.f32.mrb[0].mxu0
        %3627 = vmatprep.mubr.f32.mxu0 %v2520
        %3628 = vmatmul.mubr.f32.gmra.mrb[0].mxu0 %v2519
        %v3629 = vpop.f32.mrb[0].mxu0
        %v3630 = vadd.f32 %v3405, %v3629
        %v3631 = vpop.f32.mrb[0].mxu0
        %3632 = vmatprep.mubr.f32.mxu0 %v2534
        %3633 = vmatmul.mubr.f32.gmra.mrb[0].mxu0 %v2533
        %v3634 = vpop.f32.mrb[0].mxu0
        %v3635 = vadd.f32 %v3410, %v3634
        %v3636 = vpop.f32.mrb[0].mxu0
        %3637 = vmatprep.mubr.f32.mxu0 %v2548
        %3638 = vmatmul.mubr.f32.gmra.mrb[0].mxu0 %v2547
        %v3639 = vpop.f32.mrb[0].mxu0
        %v3640 = vadd.f32 %v3415, %v3639
        %v3641 = vpop.f32.mrb[0].mxu0
        %3642 = vmatprep.mubr.f32.mxu0 %v2562
        %3643 = vmatmul.mubr.f32.gmra.mrb[0].mxu0 %v2561
        %v3644 = vpop.f32.mrb[0].mxu0
        %v3645 = vadd.f32 %v3420, %v3644
        %v3646 = vpop.f32.mrb[0].mxu0
        %3647 = vmatprep.mubr.f32.mxu0 %v2576
        %3648 = vmatmul.mubr.f32.gmra.mrb[0].mxu0 %v2575
        %v3649 = vpop.f32.mrb[0].mxu0
        %v3650 = vadd.f32 %v3425, %v3649
        %v3651 = vpop.f32.mrb[0].mxu0
        %3652 = vmatprep.mubr.f32.mxu0 %v2590
        %3653 = vmatmul.mubr.f32.gmra.mrb[0].mxu0 %v2589
        %v3654 = vpop.f32.mrb[0].mxu0
        %v3655 = vadd.f32 %v3430, %v3654
        %v3656 = vpop.f32.mrb[0].mxu0
        %3657 = vmatprep.mubr.f32.mxu0 %v2604
        %3658 = vmatmul.mubr.f32.gmra.mrb[0].mxu0 %v2603
        %v3659 = vpop.f32.mrb[0].mxu0
        %v3660 = vadd.f32 %v3435, %v3659
        %v3661 = vpop.f32.mrb[0].mxu0
        %3662 = vmatprep.mubr.f32.mxu0 %v2618
        %3663 = vmatmul.mubr.f32.gmra.mrb[0].mxu0 %v2617
        %v3664 = vpop.f32.mrb[0].mxu0
        %v3665 = vadd.f32 %v3440, %v3664
        %v3666 = vpop.f32.mrb[0].mxu0
        %3667 = vmatprep.mubr.f32.mxu0 %v2632
        %3668 = vmatmul.mubr.f32.gmra.mrb[0].mxu0 %v2631
        %v3669 = vpop.f32.mrb[0].mxu0
        %v3670 = vadd.f32 %v3445, %v3669
        %v3671 = vpop.f32.mrb[0].mxu0
        %3672 = vmatprep.mubr.f32.mxu0 %v2646
        %3673 = vmatmul.mubr.f32.gmra.mrb[0].mxu0 %v2645
        %v3674 = vpop.f32.mrb[0].mxu0
        %v3675 = vadd.f32 %v3450, %v3674
        %v3676 = vpop.f32.mrb[0].mxu0
        %3677 = vmatprep.mubr.f32.mxu0 %v2660
        %3678 = vmatmul.mubr.f32.gmra.mrb[0].mxu0 %v2659
        %v3679 = vpop.f32.mrb[0].mxu0
        %v3680 = vadd.f32 %v3455, %v3679
        %v3681 = vpop.f32.mrb[0].mxu0
        %3682 = vmatprep.mubr.f32.mxu0 %v2674
        %3683 = vmatmul.mubr.f32.gmra.mrb[0].mxu0 %v2673
        %v3684 = vpop.f32.mrb[0].mxu0
        %v3685 = vadd.f32 %v3460, %v3684
        %v3686 = vpop.f32.mrb[0].mxu0
        %3687 = vmatprep.mubr.f32.mxu0 %v2688
        %3688 = vmatmul.mubr.f32.gmra.mrb[0].mxu0 %v2687
        %v3689 = vpop.f32.mrb[0].mxu0
        %v3690 = vadd.f32 %v3465, %v3689
        %v3691 = vpop.f32.mrb[0].mxu0
        %3692 = vmatprep.mubr.f32.mxu0 %v2702
        %3693 = vmatmul.mubr.f32.gmra.mrb[0].mxu0 %v2701
        %v3694 = vpop.f32.mrb[0].mxu0
        %v3695 = vadd.f32 %v3470, %v3694
        %v3696 = vpop.f32.mrb[0].mxu0
        %3697 = vdwg.mxu0
        %3698 = vmatprep.subr.mxu0 0.0
        %3699 = vmatpush1.msra.mxu0 %v2807
        %3700 = vmatprep.subr.mxu0 0.0
        %3701 = vmatpush1.msra.mxu0 %v2808
        %3702 = vmatprep.subr.mxu0 0.0
        %3703 = vmatpush1.msra.mxu0 %v2809
        %3704 = vmatprep.subr.mxu0 0.0
        %3705 = vmatpush1.msra.mxu0 %v2810
        %3706 = vmatprep.subr.mxu0 0.0
        %3707 = vmatpush1.msra.mxu0 %v2811
        %3708 = vmatprep.subr.mxu0 0.0
        %3709 = vmatpush1.msra.mxu0 %v2812
        %3710 = vmatprep.subr.mxu0 0.0
        %3711 = vmatpush1.msra.mxu0 %v2813
        %3712 = vmatprep.subr.mxu0 0.0
        %3713 = vmatpush1.msra.mxu0 %v2814
        %3714 = vmatprep.subr.mxu0 0.0
        %3715 = vmatpush1.msra.mxu0 %v2815
        %3716 = vmatprep.subr.mxu0 0.0
        %3717 = vmatpush1.msra.mxu0 %v2816
        %3718 = vmatprep.subr.mxu0 0.0
        %3719 = vmatpush1.msra.mxu0 %v2817
        %3720 = vmatprep.subr.mxu0 0.0
        %3721 = vmatpush1.msra.mxu0 %v2818
        %3722 = vmatprep.subr.mxu0 0.0
        %3723 = vmatpush1.msra.mxu0 %v2819
        %3724 = vmatprep.subr.mxu0 0.0
        %3725 = vmatpush1.msra.mxu0 %v2820
        %3726 = vmatprep.subr.mxu0 0.0
        %3727 = vmatpush1.msra.mxu0 %v2821
        %3728 = vmatprep.subr.mxu0 0.0
        %3729 = vmatpush1.msra.mxu0 %v2822
        %3730 = vmatprep.subr.mxu0 0.0
        %3731 = vmatpush1.msra.mxu0 %v2823
        %3732 = vmatprep.subr.mxu0 0.0
        %3733 = vmatpush1.msra.mxu0 %v2824
        %3734 = vmatprep.subr.mxu0 0.0
        %3735 = vmatpush1.msra.mxu0 %v2825
        %3736 = vmatprep.subr.mxu0 0.0
        %3737 = vmatpush1.msra.mxu0 %v2826
        %3738 = vmatprep.subr.mxu0 0.0
        %3739 = vmatpush1.msra.mxu0 %v2827
        %3740 = vmatprep.subr.mxu0 0.0
        %3741 = vmatpush1.msra.mxu0 %v2828
        %3742 = vmatprep.subr.mxu0 0.0
        %3743 = vmatpush1.msra.mxu0 %v2829
        %3744 = vmatprep.subr.mxu0 0.0
        %3745 = vmatpush1.msra.mxu0 %v2830
        %3746 = vmatprep.subr.mxu0 0.0
        %3747 = vmatpush1.msra.mxu0 %v2831
        %3748 = vmatprep.subr.mxu0 0.0
        %3749 = vmatpush1.msra.mxu0 %v2832
        %3750 = vmatprep.subr.mxu0 0.0
        %3751 = vmatpush1.msra.mxu0 %v2833
        %3752 = vmatprep.subr.mxu0 0.0
        %3753 = vmatpush1.msra.mxu0 %v2834
        %3754 = vmatprep.subr.mxu0 0.0
        %3755 = vmatpush1.msra.mxu0 %v2835
        %3756 = vmatprep.subr.mxu0 0.0
        %3757 = vmatpush1.msra.mxu0 %v2836
        %3758 = vmatprep.subr.mxu0 0.0
        %3759 = vmatpush1.msra.mxu0 %v2837
        %3760 = vmatprep.subr.mxu0 0.0
        %3761 = vmatpush1.msra.mxu0 %v2838
        %3762 = vmatprep.mubr.f32.mxu0 %v2270
        %3763 = vmatmul.mubr.f32.gmra.mrb[0].mxu0 %v2269
        %v3764 = vpop.f32.mrb[0].mxu0
        %v3765 = vadd.f32 %v3540, %v3764
        %v3766 = vpop.f32.mrb[0].mxu0
        %3767 = vmatprep.mubr.f32.mxu0 %v2284
        %3768 = vmatmul.mubr.f32.gmra.mrb[0].mxu0 %v2283
        %v3769 = vpop.f32.mrb[0].mxu0
        %v3770 = vadd.f32 %v3545, %v3769
        %v3771 = vpop.f32.mrb[0].mxu0
        %3772 = vmatprep.mubr.f32.mxu0 %v2298
        %3773 = vmatmul.mubr.f32.gmra.mrb[0].mxu0 %v2297
        %v3774 = vpop.f32.mrb[0].mxu0
        %v3775 = vadd.f32 %v3550, %v3774
        %v3776 = vpop.f32.mrb[0].mxu0
        %3777 = vmatprep.mubr.f32.mxu0 %v2312
        %3778 = vmatmul.mubr.f32.gmra.mrb[0].mxu0 %v2311
        %v3779 = vpop.f32.mrb[0].mxu0
        %v3780 = vadd.f32 %v3555, %v3779
        %v3781 = vpop.f32.mrb[0].mxu0
        %3782 = vmatprep.mubr.f32.mxu0 %v2326
        %3783 = vmatmul.mubr.f32.gmra.mrb[0].mxu0 %v2325
        %v3784 = vpop.f32.mrb[0].mxu0
        %v3785 = vadd.f32 %v3560, %v3784
        %v3786 = vpop.f32.mrb[0].mxu0
        %3787 = vmatprep.mubr.f32.mxu0 %v2340
        %3788 = vmatmul.mubr.f32.gmra.mrb[0].mxu0 %v2339
        %v3789 = vpop.f32.mrb[0].mxu0
        %v3790 = vadd.f32 %v3565, %v3789
        %v3791 = vpop.f32.mrb[0].mxu0
        %3792 = vmatprep.mubr.f32.mxu0 %v2354
        %3793 = vmatmul.mubr.f32.gmra.mrb[0].mxu0 %v2353
        %v3794 = vpop.f32.mrb[0].mxu0
        %v3795 = vadd.f32 %v3570, %v3794
        %v3796 = vpop.f32.mrb[0].mxu0
        %3797 = vmatprep.mubr.f32.mxu0 %v2368
        %3798 = vmatmul.mubr.f32.gmra.mrb[0].mxu0 %v2367
        %v3799 = vpop.f32.mrb[0].mxu0
        %v3800 = vadd.f32 %v3575, %v3799
        %v3801 = vpop.f32.mrb[0].mxu0
        %3802 = vmatprep.mubr.f32.mxu0 %v2382
        %3803 = vmatmul.mubr.f32.gmra.mrb[0].mxu0 %v2381
        %v3804 = vpop.f32.mrb[0].mxu0
        %v3805 = vadd.f32 %v3580, %v3804
        %v3806 = vpop.f32.mrb[0].mxu0
        %3807 = vmatprep.mubr.f32.mxu0 %v2396
        %3808 = vmatmul.mubr.f32.gmra.mrb[0].mxu0 %v2395
        %v3809 = vpop.f32.mrb[0].mxu0
        %v3810 = vadd.f32 %v3585, %v3809
        %v3811 = vpop.f32.mrb[0].mxu0
        %3812 = vmatprep.mubr.f32.mxu0 %v2410
        %3813 = vmatmul.mubr.f32.gmra.mrb[0].mxu0 %v2409
        %v3814 = vpop.f32.mrb[0].mxu0
        %v3815 = vadd.f32 %v3590, %v3814
        %v3816 = vpop.f32.mrb[0].mxu0
        %3817 = vmatprep.mubr.f32.mxu0 %v2424
        %3818 = vmatmul.mubr.f32.gmra.mrb[0].mxu0 %v2423
        %v3819 = vpop.f32.mrb[0].mxu0
        %v3820 = vadd.f32 %v3595, %v3819
        %v3821 = vpop.f32.mrb[0].mxu0
        %3822 = vmatprep.mubr.f32.mxu0 %v2438
        %3823 = vmatmul.mubr.f32.gmra.mrb[0].mxu0 %v2437
        %v3824 = vpop.f32.mrb[0].mxu0
        %v3825 = vadd.f32 %v3600, %v3824
        %v3826 = vpop.f32.mrb[0].mxu0
        %3827 = vmatprep.mubr.f32.mxu0 %v2452
        %3828 = vmatmul.mubr.f32.gmra.mrb[0].mxu0 %v2451
        %v3829 = vpop.f32.mrb[0].mxu0
        %v3830 = vadd.f32 %v3605, %v3829
        %v3831 = vpop.f32.mrb[0].mxu0
        %3832 = vmatprep.mubr.f32.mxu0 %v2466
        %3833 = vmatmul.mubr.f32.gmra.mrb[0].mxu0 %v2465
        %v3834 = vpop.f32.mrb[0].mxu0
        %v3835 = vadd.f32 %v3610, %v3834
        %v3836 = vpop.f32.mrb[0].mxu0
        %3837 = vmatprep.mubr.f32.mxu0 %v2480
        %3838 = vmatmul.mubr.f32.gmra.mrb[0].mxu0 %v2479
        %v3839 = vpop.f32.mrb[0].mxu0
        %v3840 = vadd.f32 %v3615, %v3839
        %v3841 = vpop.f32.mrb[0].mxu0
        %3842 = vmatprep.mubr.f32.mxu0 %v2494
        %3843 = vmatmul.mubr.f32.gmra.mrb[0].mxu0 %v2493
        %v3844 = vpop.f32.mrb[0].mxu0
        %v3845 = vadd.f32 %v3620, %v3844
        %v3846 = vpop.f32.mrb[0].mxu0
        %3847 = vmatprep.mubr.f32.mxu0 %v2508
        %3848 = vmatmul.mubr.f32.gmra.mrb[0].mxu0 %v2507
        %v3849 = vpop.f32.mrb[0].mxu0
        %v3850 = vadd.f32 %v3625, %v3849
        %v3851 = vpop.f32.mrb[0].mxu0
        %3852 = vmatprep.mubr.f32.mxu0 %v2522
        %3853 = vmatmul.mubr.f32.gmra.mrb[0].mxu0 %v2521
        %v3854 = vpop.f32.mrb[0].mxu0
        %v3855 = vadd.f32 %v3630, %v3854
        %v3856 = vpop.f32.mrb[0].mxu0
        %3857 = vmatprep.mubr.f32.mxu0 %v2536
        %3858 = vmatmul.mubr.f32.gmra.mrb[0].mxu0 %v2535
        %v3859 = vpop.f32.mrb[0].mxu0
        %v3860 = vadd.f32 %v3635, %v3859
        %v3861 = vpop.f32.mrb[0].mxu0
        %3862 = vmatprep.mubr.f32.mxu0 %v2550
        %3863 = vmatmul.mubr.f32.gmra.mrb[0].mxu0 %v2549
        %v3864 = vpop.f32.mrb[0].mxu0
        %v3865 = vadd.f32 %v3640, %v3864
        %v3866 = vpop.f32.mrb[0].mxu0
        %3867 = vmatprep.mubr.f32.mxu0 %v2564
        %3868 = vmatmul.mubr.f32.gmra.mrb[0].mxu0 %v2563
        %v3869 = vpop.f32.mrb[0].mxu0
        %v3870 = vadd.f32 %v3645, %v3869
        %v3871 = vpop.f32.mrb[0].mxu0
        %3872 = vmatprep.mubr.f32.mxu0 %v2578
        %3873 = vmatmul.mubr.f32.gmra.mrb[0].mxu0 %v2577
        %v3874 = vpop.f32.mrb[0].mxu0
        %v3875 = vadd.f32 %v3650, %v3874
        %v3876 = vpop.f32.mrb[0].mxu0
        %3877 = vmatprep.mubr.f32.mxu0 %v2592
        %3878 = vmatmul.mubr.f32.gmra.mrb[0].mxu0 %v2591
        %v3879 = vpop.f32.mrb[0].mxu0
        %v3880 = vadd.f32 %v3655, %v3879
        %v3881 = vpop.f32.mrb[0].mxu0
        %3882 = vmatprep.mubr.f32.mxu0 %v2606
        %3883 = vmatmul.mubr.f32.gmra.mrb[0].mxu0 %v2605
        %v3884 = vpop.f32.mrb[0].mxu0
        %v3885 = vadd.f32 %v3660, %v3884
        %v3886 = vpop.f32.mrb[0].mxu0
        %3887 = vmatprep.mubr.f32.mxu0 %v2620
        %3888 = vmatmul.mubr.f32.gmra.mrb[0].mxu0 %v2619
        %v3889 = vpop.f32.mrb[0].mxu0
        %v3890 = vadd.f32 %v3665, %v3889
        %v3891 = vpop.f32.mrb[0].mxu0
        %3892 = vmatprep.mubr.f32.mxu0 %v2634
        %3893 = vmatmul.mubr.f32.gmra.mrb[0].mxu0 %v2633
        %v3894 = vpop.f32.mrb[0].mxu0
        %v3895 = vadd.f32 %v3670, %v3894
        %v3896 = vpop.f32.mrb[0].mxu0
        %3897 = vmatprep.mubr.f32.mxu0 %v2648
        %3898 = vmatmul.mubr.f32.gmra.mrb[0].mxu0 %v2647
        %v3899 = vpop.f32.mrb[0].mxu0
        %v3900 = vadd.f32 %v3675, %v3899
        %v3901 = vpop.f32.mrb[0].mxu0
        %3902 = vmatprep.mubr.f32.mxu0 %v2662
        %3903 = vmatmul.mubr.f32.gmra.mrb[0].mxu0 %v2661
        %v3904 = vpop.f32.mrb[0].mxu0
        %v3905 = vadd.f32 %v3680, %v3904
        %v3906 = vpop.f32.mrb[0].mxu0
        %3907 = vmatprep.mubr.f32.mxu0 %v2676
        %3908 = vmatmul.mubr.f32.gmra.mrb[0].mxu0 %v2675
        %v3909 = vpop.f32.mrb[0].mxu0
        %v3910 = vadd.f32 %v3685, %v3909
        %v3911 = vpop.f32.mrb[0].mxu0
        %3912 = vmatprep.mubr.f32.mxu0 %v2690
        %3913 = vmatmul.mubr.f32.gmra.mrb[0].mxu0 %v2689
        %v3914 = vpop.f32.mrb[0].mxu0
        %v3915 = vadd.f32 %v3690, %v3914
        %v3916 = vpop.f32.mrb[0].mxu0
        %3917 = vmatprep.mubr.f32.mxu0 %v2704
        %3918 = vmatmul.mubr.f32.gmra.mrb[0].mxu0 %v2703
        %v3919 = vpop.f32.mrb[0].mxu0
        %v3920 = vadd.f32 %v3695, %v3919
        %v3921 = vpop.f32.mrb[0].mxu0
        %3922 = vdwg.mxu0
        %3923 = vmatprep.subr.mxu0 0.0
        %3924 = vmatpush1.msra.mxu0 %v2839
        %3925 = vmatprep.subr.mxu0 0.0
        %3926 = vmatpush1.msra.mxu0 %v2840
        %3927 = vmatprep.subr.mxu0 0.0
        %3928 = vmatpush1.msra.mxu0 %v2841
        %3929 = vmatprep.subr.mxu0 0.0
        %3930 = vmatpush1.msra.mxu0 %v2842
        %3931 = vmatprep.subr.mxu0 0.0
        %3932 = vmatpush1.msra.mxu0 %v2843
        %3933 = vmatprep.subr.mxu0 0.0
        %3934 = vmatpush1.msra.mxu0 %v2844
        %3935 = vmatprep.subr.mxu0 0.0
        %3936 = vmatpush1.msra.mxu0 %v2845
        %3937 = vmatprep.subr.mxu0 0.0
        %3938 = vmatpush1.msra.mxu0 %v2846
        %3939 = vmatprep.subr.mxu0 0.0
        %3940 = vmatpush1.msra.mxu0 %v2847
        %3941 = vmatprep.subr.mxu0 0.0
        %3942 = vmatpush1.msra.mxu0 %v2848
        %3943 = vmatprep.subr.mxu0 0.0
        %3944 = vmatpush1.msra.mxu0 %v2849
        %3945 = vmatprep.subr.mxu0 0.0
        %3946 = vmatpush1.msra.mxu0 %v2850
        %3947 = vmatprep.subr.mxu0 0.0
        %3948 = vmatpush1.msra.mxu0 %v2851
        %3949 = vmatprep.subr.mxu0 0.0
        %3950 = vmatpush1.msra.mxu0 %v2852
        %3951 = vmatprep.subr.mxu0 0.0
        %3952 = vmatpush1.msra.mxu0 %v2853
        %3953 = vmatprep.subr.mxu0 0.0
        %3954 = vmatpush1.msra.mxu0 %v2854
        %3955 = vmatprep.subr.mxu0 0.0
        %3956 = vmatpush1.msra.mxu0 %v2855
        %3957 = vmatprep.subr.mxu0 0.0
        %3958 = vmatpush1.msra.mxu0 %v2856
        %3959 = vmatprep.subr.mxu0 0.0
        %3960 = vmatpush1.msra.mxu0 %v2857
        %3961 = vmatprep.subr.mxu0 0.0
        %3962 = vmatpush1.msra.mxu0 %v2858
        %3963 = vmatprep.subr.mxu0 0.0
        %3964 = vmatpush1.msra.mxu0 %v2859
        %3965 = vmatprep.subr.mxu0 0.0
        %3966 = vmatpush1.msra.mxu0 %v2860
        %3967 = vmatprep.subr.mxu0 0.0
        %3968 = vmatpush1.msra.mxu0 %v2861
        %3969 = vmatprep.subr.mxu0 0.0
        %3970 = vmatpush1.msra.mxu0 %v2862
        %3971 = vmatprep.subr.mxu0 0.0
        %3972 = vmatpush1.msra.mxu0 %v2863
        %3973 = vmatprep.subr.mxu0 0.0
        %3974 = vmatpush1.msra.mxu0 %v2864
        %3975 = vmatprep.subr.mxu0 0.0
        %3976 = vmatpush1.msra.mxu0 %v2865
        %3977 = vmatprep.subr.mxu0 0.0
        %3978 = vmatpush1.msra.mxu0 %v2866
        %3979 = vmatprep.subr.mxu0 0.0
        %3980 = vmatpush1.msra.mxu0 %v2867
        %3981 = vmatprep.subr.mxu0 0.0
        %3982 = vmatpush1.msra.mxu0 %v2868
        %3983 = vmatprep.subr.mxu0 0.0
        %3984 = vmatpush1.msra.mxu0 %v2869
        %3985 = vmatprep.subr.mxu0 0.0
        %3986 = vmatpush1.msra.mxu0 %v2870
        %3987 = vmatprep.mubr.f32.mxu0 %v2272
        %3988 = vmatmul.mubr.f32.gmra.mrb[0].mxu0 %v2271
        %v3989 = vpop.f32.mrb[0].mxu0
        %v3990 = vadd.f32 %v3765, %v3989
        %v3991 = vpop.f32.mrb[0].mxu0
        %3992 = vmatprep.mubr.f32.mxu0 %v2286
        %3993 = vmatmul.mubr.f32.gmra.mrb[0].mxu0 %v2285
        %v3994 = vpop.f32.mrb[0].mxu0
        %v3995 = vadd.f32 %v3770, %v3994
        %v3996 = vpop.f32.mrb[0].mxu0
        %3997 = vmatprep.mubr.f32.mxu0 %v2300
        %3998 = vmatmul.mubr.f32.gmra.mrb[0].mxu0 %v2299
        %v3999 = vpop.f32.mrb[0].mxu0
        %v4000 = vadd.f32 %v3775, %v3999
        %v4001 = vpop.f32.mrb[0].mxu0
        %4002 = vmatprep.mubr.f32.mxu0 %v2314
        %4003 = vmatmul.mubr.f32.gmra.mrb[0].mxu0 %v2313
        %v4004 = vpop.f32.mrb[0].mxu0
        %v4005 = vadd.f32 %v3780, %v4004
        %v4006 = vpop.f32.mrb[0].mxu0
        %4007 = vmatprep.mubr.f32.mxu0 %v2328
        %4008 = vmatmul.mubr.f32.gmra.mrb[0].mxu0 %v2327
        %v4009 = vpop.f32.mrb[0].mxu0
        %v4010 = vadd.f32 %v3785, %v4009
        %v4011 = vpop.f32.mrb[0].mxu0
        %4012 = vmatprep.mubr.f32.mxu0 %v2342
        %4013 = vmatmul.mubr.f32.gmra.mrb[0].mxu0 %v2341
        %v4014 = vpop.f32.mrb[0].mxu0
        %v4015 = vadd.f32 %v3790, %v4014
        %v4016 = vpop.f32.mrb[0].mxu0
        %4017 = vmatprep.mubr.f32.mxu0 %v2356
        %4018 = vmatmul.mubr.f32.gmra.mrb[0].mxu0 %v2355
        %v4019 = vpop.f32.mrb[0].mxu0
        %v4020 = vadd.f32 %v3795, %v4019
        %v4021 = vpop.f32.mrb[0].mxu0
        %4022 = vmatprep.mubr.f32.mxu0 %v2370
        %4023 = vmatmul.mubr.f32.gmra.mrb[0].mxu0 %v2369
        %v4024 = vpop.f32.mrb[0].mxu0
        %v4025 = vadd.f32 %v3800, %v4024
        %v4026 = vpop.f32.mrb[0].mxu0
        %4027 = vmatprep.mubr.f32.mxu0 %v2384
        %4028 = vmatmul.mubr.f32.gmra.mrb[0].mxu0 %v2383
        %v4029 = vpop.f32.mrb[0].mxu0
        %v4030 = vadd.f32 %v3805, %v4029
        %v4031 = vpop.f32.mrb[0].mxu0
        %4032 = vmatprep.mubr.f32.mxu0 %v2398
        %4033 = vmatmul.mubr.f32.gmra.mrb[0].mxu0 %v2397
        %v4034 = vpop.f32.mrb[0].mxu0
        %v4035 = vadd.f32 %v3810, %v4034
        %v4036 = vpop.f32.mrb[0].mxu0
        %4037 = vmatprep.mubr.f32.mxu0 %v2412
        %4038 = vmatmul.mubr.f32.gmra.mrb[0].mxu0 %v2411
        %v4039 = vpop.f32.mrb[0].mxu0
        %v4040 = vadd.f32 %v3815, %v4039
        %v4041 = vpop.f32.mrb[0].mxu0
        %4042 = vmatprep.mubr.f32.mxu0 %v2426
        %4043 = vmatmul.mubr.f32.gmra.mrb[0].mxu0 %v2425
        %v4044 = vpop.f32.mrb[0].mxu0
        %v4045 = vadd.f32 %v3820, %v4044
        %v4046 = vpop.f32.mrb[0].mxu0
        %4047 = vmatprep.mubr.f32.mxu0 %v2440
        %4048 = vmatmul.mubr.f32.gmra.mrb[0].mxu0 %v2439
        %v4049 = vpop.f32.mrb[0].mxu0
        %v4050 = vadd.f32 %v3825, %v4049
        %v4051 = vpop.f32.mrb[0].mxu0
        %4052 = vmatprep.mubr.f32.mxu0 %v2454
        %4053 = vmatmul.mubr.f32.gmra.mrb[0].mxu0 %v2453
        %v4054 = vpop.f32.mrb[0].mxu0
        %v4055 = vadd.f32 %v3830, %v4054
        %v4056 = vpop.f32.mrb[0].mxu0
        %4057 = vmatprep.mubr.f32.mxu0 %v2468
        %4058 = vmatmul.mubr.f32.gmra.mrb[0].mxu0 %v2467
        %v4059 = vpop.f32.mrb[0].mxu0
        %v4060 = vadd.f32 %v3835, %v4059
        %v4061 = vpop.f32.mrb[0].mxu0
        %4062 = vmatprep.mubr.f32.mxu0 %v2482
        %4063 = vmatmul.mubr.f32.gmra.mrb[0].mxu0 %v2481
        %v4064 = vpop.f32.mrb[0].mxu0
        %v4065 = vadd.f32 %v3840, %v4064
        %v4066 = vpop.f32.mrb[0].mxu0
        %4067 = vmatprep.mubr.f32.mxu0 %v2496
        %4068 = vmatmul.mubr.f32.gmra.mrb[0].mxu0 %v2495
        %v4069 = vpop.f32.mrb[0].mxu0
        %v4070 = vadd.f32 %v3845, %v4069
        %v4071 = vpop.f32.mrb[0].mxu0
        %4072 = vmatprep.mubr.f32.mxu0 %v2510
        %4073 = vmatmul.mubr.f32.gmra.mrb[0].mxu0 %v2509
        %v4074 = vpop.f32.mrb[0].mxu0
        %v4075 = vadd.f32 %v3850, %v4074
        %v4076 = vpop.f32.mrb[0].mxu0
        %4077 = vmatprep.mubr.f32.mxu0 %v2524
        %4078 = vmatmul.mubr.f32.gmra.mrb[0].mxu0 %v2523
        %v4079 = vpop.f32.mrb[0].mxu0
        %v4080 = vadd.f32 %v3855, %v4079
        %v4081 = vpop.f32.mrb[0].mxu0
        %4082 = vmatprep.mubr.f32.mxu0 %v2538
        %4083 = vmatmul.mubr.f32.gmra.mrb[0].mxu0 %v2537
        %v4084 = vpop.f32.mrb[0].mxu0
        %v4085 = vadd.f32 %v3860, %v4084
        %v4086 = vpop.f32.mrb[0].mxu0
        %4087 = vmatprep.mubr.f32.mxu0 %v2552
        %4088 = vmatmul.mubr.f32.gmra.mrb[0].mxu0 %v2551
        %v4089 = vpop.f32.mrb[0].mxu0
        %v4090 = vadd.f32 %v3865, %v4089
        %v4091 = vpop.f32.mrb[0].mxu0
        %4092 = vmatprep.mubr.f32.mxu0 %v2566
        %4093 = vmatmul.mubr.f32.gmra.mrb[0].mxu0 %v2565
        %v4094 = vpop.f32.mrb[0].mxu0
        %v4095 = vadd.f32 %v3870, %v4094
        %v4096 = vpop.f32.mrb[0].mxu0
        %4097 = vmatprep.mubr.f32.mxu0 %v2580
        %4098 = vmatmul.mubr.f32.gmra.mrb[0].mxu0 %v2579
        %v4099 = vpop.f32.mrb[0].mxu0
        %v4100 = vadd.f32 %v3875, %v4099
        %v4101 = vpop.f32.mrb[0].mxu0
        %4102 = vmatprep.mubr.f32.mxu0 %v2594
        %4103 = vmatmul.mubr.f32.gmra.mrb[0].mxu0 %v2593
        %v4104 = vpop.f32.mrb[0].mxu0
        %v4105 = vadd.f32 %v3880, %v4104
        %v4106 = vpop.f32.mrb[0].mxu0
        %4107 = vmatprep.mubr.f32.mxu0 %v2608
        %4108 = vmatmul.mubr.f32.gmra.mrb[0].mxu0 %v2607
        %v4109 = vpop.f32.mrb[0].mxu0
        %v4110 = vadd.f32 %v3885, %v4109
        %v4111 = vpop.f32.mrb[0].mxu0
        %4112 = vmatprep.mubr.f32.mxu0 %v2622
        %4113 = vmatmul.mubr.f32.gmra.mrb[0].mxu0 %v2621
        %v4114 = vpop.f32.mrb[0].mxu0
        %v4115 = vadd.f32 %v3890, %v4114
        %v4116 = vpop.f32.mrb[0].mxu0
        %4117 = vmatprep.mubr.f32.mxu0 %v2636
        %4118 = vmatmul.mubr.f32.gmra.mrb[0].mxu0 %v2635
        %v4119 = vpop.f32.mrb[0].mxu0
        %v4120 = vadd.f32 %v3895, %v4119
        %v4121 = vpop.f32.mrb[0].mxu0
        %4122 = vmatprep.mubr.f32.mxu0 %v2650
        %4123 = vmatmul.mubr.f32.gmra.mrb[0].mxu0 %v2649
        %v4124 = vpop.f32.mrb[0].mxu0
        %v4125 = vadd.f32 %v3900, %v4124
        %v4126 = vpop.f32.mrb[0].mxu0
        %4127 = vmatprep.mubr.f32.mxu0 %v2664
        %4128 = vmatmul.mubr.f32.gmra.mrb[0].mxu0 %v2663
        %v4129 = vpop.f32.mrb[0].mxu0
        %v4130 = vadd.f32 %v3905, %v4129
        %v4131 = vpop.f32.mrb[0].mxu0
        %4132 = vmatprep.mubr.f32.mxu0 %v2678
        %4133 = vmatmul.mubr.f32.gmra.mrb[0].mxu0 %v2677
        %v4134 = vpop.f32.mrb[0].mxu0
        %v4135 = vadd.f32 %v3910, %v4134
        %v4136 = vpop.f32.mrb[0].mxu0
        %4137 = vmatprep.mubr.f32.mxu0 %v2692
        %4138 = vmatmul.mubr.f32.gmra.mrb[0].mxu0 %v2691
        %v4139 = vpop.f32.mrb[0].mxu0
        %v4140 = vadd.f32 %v3915, %v4139
        %v4141 = vpop.f32.mrb[0].mxu0
        %4142 = vmatprep.mubr.f32.mxu0 %v2706
        %4143 = vmatmul.mubr.f32.gmra.mrb[0].mxu0 %v2705
        %v4144 = vpop.f32.mrb[0].mxu0
        %v4145 = vadd.f32 %v3920, %v4144
        %v4146 = vpop.f32.mrb[0].mxu0
        %4147 = vdwg.mxu0
        %4148 = vmatprep.subr.mxu0 0.0
        %4149 = vmatpush1.msra.mxu0 %v2871
        %4150 = vmatprep.subr.mxu0 0.0
        %4151 = vmatpush1.msra.mxu0 %v2872
        %4152 = vmatprep.subr.mxu0 0.0
        %4153 = vmatpush1.msra.mxu0 %v2873
        %4154 = vmatprep.subr.mxu0 0.0
        %4155 = vmatpush1.msra.mxu0 %v2874
        %4156 = vmatprep.subr.mxu0 0.0
        %4157 = vmatpush1.msra.mxu0 %v2875
        %4158 = vmatprep.subr.mxu0 0.0
        %4159 = vmatpush1.msra.mxu0 %v2876
        %4160 = vmatprep.subr.mxu0 0.0
        %4161 = vmatpush1.msra.mxu0 %v2877
        %4162 = vmatprep.subr.mxu0 0.0
        %4163 = vmatpush1.msra.mxu0 %v2878
        %4164 = vmatprep.subr.mxu0 0.0
        %4165 = vmatpush1.msra.mxu0 %v2879
        %4166 = vmatprep.subr.mxu0 0.0
        %4167 = vmatpush1.msra.mxu0 %v2880
        %4168 = vmatprep.subr.mxu0 0.0
        %4169 = vmatpush1.msra.mxu0 %v2881
        %4170 = vmatprep.subr.mxu0 0.0
        %4171 = vmatpush1.msra.mxu0 %v2882
        %4172 = vmatprep.subr.mxu0 0.0
        %4173 = vmatpush1.msra.mxu0 %v2883
        %4174 = vmatprep.subr.mxu0 0.0
        %4175 = vmatpush1.msra.mxu0 %v2884
        %4176 = vmatprep.subr.mxu0 0.0
        %4177 = vmatpush1.msra.mxu0 %v2885
        %4178 = vmatprep.subr.mxu0 0.0
        %4179 = vmatpush1.msra.mxu0 %v2886
        %4180 = vmatprep.subr.mxu0 0.0
        %4181 = vmatpush1.msra.mxu0 %v2887
        %4182 = vmatprep.subr.mxu0 0.0
        %4183 = vmatpush1.msra.mxu0 %v2888
        %4184 = vmatprep.subr.mxu0 0.0
        %4185 = vmatpush1.msra.mxu0 %v2889
        %4186 = vmatprep.subr.mxu0 0.0
        %4187 = vmatpush1.msra.mxu0 %v2890
        %4188 = vmatprep.subr.mxu0 0.0
        %4189 = vmatpush1.msra.mxu0 %v2891
        %4190 = vmatprep.subr.mxu0 0.0
        %4191 = vmatpush1.msra.mxu0 %v2892
        %4192 = vmatprep.subr.mxu0 0.0
        %4193 = vmatpush1.msra.mxu0 %v2893
        %4194 = vmatprep.subr.mxu0 0.0
        %4195 = vmatpush1.msra.mxu0 %v2894
        %4196 = vmatprep.subr.mxu0 0.0
        %4197 = vmatpush1.msra.mxu0 %v2895
        %4198 = vmatprep.subr.mxu0 0.0
        %4199 = vmatpush1.msra.mxu0 %v2896
        %4200 = vmatprep.subr.mxu0 0.0
        %4201 = vmatpush1.msra.mxu0 %v2897
        %4202 = vmatprep.subr.mxu0 0.0
        %4203 = vmatpush1.msra.mxu0 %v2898
        %4204 = vmatprep.subr.mxu0 0.0
        %4205 = vmatpush1.msra.mxu0 %v2899
        %4206 = vmatprep.subr.mxu0 0.0
        %4207 = vmatpush1.msra.mxu0 %v2900
        %4208 = vmatprep.subr.mxu0 0.0
        %4209 = vmatpush1.msra.mxu0 %v2901
        %4210 = vmatprep.subr.mxu0 0.0
        %4211 = vmatpush1.msra.mxu0 %v2902
        %4212 = vmatprep.mubr.f32.mxu0 %v2274
        %4213 = vmatmul.mubr.f32.gmra.mrb[0].mxu0 %v2273
        %v4214 = vpop.f32.mrb[0].mxu0
        %v4215 = vadd.f32 %v3990, %v4214
        %v4216 = vpop.f32.mrb[0].mxu0
        %4217 = vmatprep.mubr.f32.mxu0 %v2288
        %4218 = vmatmul.mubr.f32.gmra.mrb[0].mxu0 %v2287
        %v4219 = vpop.f32.mrb[0].mxu0
        %v4220 = vadd.f32 %v3995, %v4219
        %v4221 = vpop.f32.mrb[0].mxu0
        %4222 = vmatprep.mubr.f32.mxu0 %v2302
        %4223 = vmatmul.mubr.f32.gmra.mrb[0].mxu0 %v2301
        %v4224 = vpop.f32.mrb[0].mxu0
        %v4225 = vadd.f32 %v4000, %v4224
        %v4226 = vpop.f32.mrb[0].mxu0
        %4227 = vmatprep.mubr.f32.mxu0 %v2316
        %4228 = vmatmul.mubr.f32.gmra.mrb[0].mxu0 %v2315
        %v4229 = vpop.f32.mrb[0].mxu0
        %v4230 = vadd.f32 %v4005, %v4229
        %v4231 = vpop.f32.mrb[0].mxu0
        %4232 = vmatprep.mubr.f32.mxu0 %v2330
        %4233 = vmatmul.mubr.f32.gmra.mrb[0].mxu0 %v2329
        %v4234 = vpop.f32.mrb[0].mxu0
        %v4235 = vadd.f32 %v4010, %v4234
        %v4236 = vpop.f32.mrb[0].mxu0
        %4237 = vmatprep.mubr.f32.mxu0 %v2344
        %4238 = vmatmul.mubr.f32.gmra.mrb[0].mxu0 %v2343
        %v4239 = vpop.f32.mrb[0].mxu0
        %v4240 = vadd.f32 %v4015, %v4239
        %v4241 = vpop.f32.mrb[0].mxu0
        %4242 = vmatprep.mubr.f32.mxu0 %v2358
        %4243 = vmatmul.mubr.f32.gmra.mrb[0].mxu0 %v2357
        %v4244 = vpop.f32.mrb[0].mxu0
        %v4245 = vadd.f32 %v4020, %v4244
        %v4246 = vpop.f32.mrb[0].mxu0
        %4247 = vmatprep.mubr.f32.mxu0 %v2372
        %4248 = vmatmul.mubr.f32.gmra.mrb[0].mxu0 %v2371
        %v4249 = vpop.f32.mrb[0].mxu0
        %v4250 = vadd.f32 %v4025, %v4249
        %v4251 = vpop.f32.mrb[0].mxu0
        %4252 = vmatprep.mubr.f32.mxu0 %v2386
        %4253 = vmatmul.mubr.f32.gmra.mrb[0].mxu0 %v2385
        %v4254 = vpop.f32.mrb[0].mxu0
        %v4255 = vadd.f32 %v4030, %v4254
        %v4256 = vpop.f32.mrb[0].mxu0
        %4257 = vmatprep.mubr.f32.mxu0 %v2400
        %4258 = vmatmul.mubr.f32.gmra.mrb[0].mxu0 %v2399
        %v4259 = vpop.f32.mrb[0].mxu0
        %v4260 = vadd.f32 %v4035, %v4259
        %v4261 = vpop.f32.mrb[0].mxu0
        %4262 = vmatprep.mubr.f32.mxu0 %v2414
        %4263 = vmatmul.mubr.f32.gmra.mrb[0].mxu0 %v2413
        %v4264 = vpop.f32.mrb[0].mxu0
        %v4265 = vadd.f32 %v4040, %v4264
        %v4266 = vpop.f32.mrb[0].mxu0
        %4267 = vmatprep.mubr.f32.mxu0 %v2428
        %4268 = vmatmul.mubr.f32.gmra.mrb[0].mxu0 %v2427
        %v4269 = vpop.f32.mrb[0].mxu0
        %v4270 = vadd.f32 %v4045, %v4269
        %v4271 = vpop.f32.mrb[0].mxu0
        %4272 = vmatprep.mubr.f32.mxu0 %v2442
        %4273 = vmatmul.mubr.f32.gmra.mrb[0].mxu0 %v2441
        %v4274 = vpop.f32.mrb[0].mxu0
        %v4275 = vadd.f32 %v4050, %v4274
        %v4276 = vpop.f32.mrb[0].mxu0
        %4277 = vmatprep.mubr.f32.mxu0 %v2456
        %4278 = vmatmul.mubr.f32.gmra.mrb[0].mxu0 %v2455
        %v4279 = vpop.f32.mrb[0].mxu0
        %v4280 = vadd.f32 %v4055, %v4279
        %v4281 = vpop.f32.mrb[0].mxu0
        %4282 = vmatprep.mubr.f32.mxu0 %v2470
        %4283 = vmatmul.mubr.f32.gmra.mrb[0].mxu0 %v2469
        %v4284 = vpop.f32.mrb[0].mxu0
        %v4285 = vadd.f32 %v4060, %v4284
        %v4286 = vpop.f32.mrb[0].mxu0
        %4287 = vmatprep.mubr.f32.mxu0 %v2484
        %4288 = vmatmul.mubr.f32.gmra.mrb[0].mxu0 %v2483
        %v4289 = vpop.f32.mrb[0].mxu0
        %v4290 = vadd.f32 %v4065, %v4289
        %v4291 = vpop.f32.mrb[0].mxu0
        %4292 = vmatprep.mubr.f32.mxu0 %v2498
        %4293 = vmatmul.mubr.f32.gmra.mrb[0].mxu0 %v2497
        %v4294 = vpop.f32.mrb[0].mxu0
        %v4295 = vadd.f32 %v4070, %v4294
        %v4296 = vpop.f32.mrb[0].mxu0
        %4297 = vmatprep.mubr.f32.mxu0 %v2512
        %4298 = vmatmul.mubr.f32.gmra.mrb[0].mxu0 %v2511
        %v4299 = vpop.f32.mrb[0].mxu0
        %v4300 = vadd.f32 %v4075, %v4299
        %v4301 = vpop.f32.mrb[0].mxu0
        %4302 = vmatprep.mubr.f32.mxu0 %v2526
        %4303 = vmatmul.mubr.f32.gmra.mrb[0].mxu0 %v2525
        %v4304 = vpop.f32.mrb[0].mxu0
        %v4305 = vadd.f32 %v4080, %v4304
        %v4306 = vpop.f32.mrb[0].mxu0
        %4307 = vmatprep.mubr.f32.mxu0 %v2540
        %4308 = vmatmul.mubr.f32.gmra.mrb[0].mxu0 %v2539
        %v4309 = vpop.f32.mrb[0].mxu0
        %v4310 = vadd.f32 %v4085, %v4309
        %v4311 = vpop.f32.mrb[0].mxu0
        %4312 = vmatprep.mubr.f32.mxu0 %v2554
        %4313 = vmatmul.mubr.f32.gmra.mrb[0].mxu0 %v2553
        %v4314 = vpop.f32.mrb[0].mxu0
        %v4315 = vadd.f32 %v4090, %v4314
        %v4316 = vpop.f32.mrb[0].mxu0
        %4317 = vmatprep.mubr.f32.mxu0 %v2568
        %4318 = vmatmul.mubr.f32.gmra.mrb[0].mxu0 %v2567
        %v4319 = vpop.f32.mrb[0].mxu0
        %v4320 = vadd.f32 %v4095, %v4319
        %v4321 = vpop.f32.mrb[0].mxu0
        %4322 = vmatprep.mubr.f32.mxu0 %v2582
        %4323 = vmatmul.mubr.f32.gmra.mrb[0].mxu0 %v2581
        %v4324 = vpop.f32.mrb[0].mxu0
        %v4325 = vadd.f32 %v4100, %v4324
        %v4326 = vpop.f32.mrb[0].mxu0
        %4327 = vmatprep.mubr.f32.mxu0 %v2596
        %4328 = vmatmul.mubr.f32.gmra.mrb[0].mxu0 %v2595
        %v4329 = vpop.f32.mrb[0].mxu0
        %v4330 = vadd.f32 %v4105, %v4329
        %v4331 = vpop.f32.mrb[0].mxu0
        %4332 = vmatprep.mubr.f32.mxu0 %v2610
        %4333 = vmatmul.mubr.f32.gmra.mrb[0].mxu0 %v2609
        %v4334 = vpop.f32.mrb[0].mxu0
        %v4335 = vadd.f32 %v4110, %v4334
        %v4336 = vpop.f32.mrb[0].mxu0
        %4337 = vmatprep.mubr.f32.mxu0 %v2624
        %4338 = vmatmul.mubr.f32.gmra.mrb[0].mxu0 %v2623
        %v4339 = vpop.f32.mrb[0].mxu0
        %v4340 = vadd.f32 %v4115, %v4339
        %v4341 = vpop.f32.mrb[0].mxu0
        %4342 = vmatprep.mubr.f32.mxu0 %v2638
        %4343 = vmatmul.mubr.f32.gmra.mrb[0].mxu0 %v2637
        %v4344 = vpop.f32.mrb[0].mxu0
        %v4345 = vadd.f32 %v4120, %v4344
        %v4346 = vpop.f32.mrb[0].mxu0
        %4347 = vmatprep.mubr.f32.mxu0 %v2652
        %4348 = vmatmul.mubr.f32.gmra.mrb[0].mxu0 %v2651
        %v4349 = vpop.f32.mrb[0].mxu0
        %v4350 = vadd.f32 %v4125, %v4349
        %v4351 = vpop.f32.mrb[0].mxu0
        %4352 = vmatprep.mubr.f32.mxu0 %v2666
        %4353 = vmatmul.mubr.f32.gmra.mrb[0].mxu0 %v2665
        %v4354 = vpop.f32.mrb[0].mxu0
        %v4355 = vadd.f32 %v4130, %v4354
        %v4356 = vpop.f32.mrb[0].mxu0
        %4357 = vmatprep.mubr.f32.mxu0 %v2680
        %4358 = vmatmul.mubr.f32.gmra.mrb[0].mxu0 %v2679
        %v4359 = vpop.f32.mrb[0].mxu0
        %v4360 = vadd.f32 %v4135, %v4359
        %v4361 = vpop.f32.mrb[0].mxu0
        %4362 = vmatprep.mubr.f32.mxu0 %v2694
        %4363 = vmatmul.mubr.f32.gmra.mrb[0].mxu0 %v2693
        %v4364 = vpop.f32.mrb[0].mxu0
        %v4365 = vadd.f32 %v4140, %v4364
        %v4366 = vpop.f32.mrb[0].mxu0
        %4367 = vmatprep.mubr.f32.mxu0 %v2708
        %4368 = vmatmul.mubr.f32.gmra.mrb[0].mxu0 %v2707
        %v4369 = vpop.f32.mrb[0].mxu0
        %v4370 = vadd.f32 %v4145, %v4369
        %v4371 = vpop.f32.mrb[0].mxu0
        %4372 = vdwg.mxu0
        %4373 = vmatprep.subr.mxu0 0.0
        %4374 = vmatpush1.msra.mxu0 %v2903
        %4375 = vmatprep.subr.mxu0 0.0
        %4376 = vmatpush1.msra.mxu0 %v2904
        %4377 = vmatprep.subr.mxu0 0.0
        %4378 = vmatpush1.msra.mxu0 %v2905
        %4379 = vmatprep.subr.mxu0 0.0
        %4380 = vmatpush1.msra.mxu0 %v2906
        %4381 = vmatprep.subr.mxu0 0.0
        %4382 = vmatpush1.msra.mxu0 %v2907
        %4383 = vmatprep.subr.mxu0 0.0
        %4384 = vmatpush1.msra.mxu0 %v2908
        %4385 = vmatprep.subr.mxu0 0.0
        %4386 = vmatpush1.msra.mxu0 %v2909
        %4387 = vmatprep.subr.mxu0 0.0
        %4388 = vmatpush1.msra.mxu0 %v2910
        %4389 = vmatprep.subr.mxu0 0.0
        %4390 = vmatpush1.msra.mxu0 %v2911
        %4391 = vmatprep.subr.mxu0 0.0
        %4392 = vmatpush1.msra.mxu0 %v2912
        %4393 = vmatprep.subr.mxu0 0.0
        %4394 = vmatpush1.msra.mxu0 %v2913
        %4395 = vmatprep.subr.mxu0 0.0
        %4396 = vmatpush1.msra.mxu0 %v2914
        %4397 = vmatprep.subr.mxu0 0.0
        %4398 = vmatpush1.msra.mxu0 %v2915
        %4399 = vmatprep.subr.mxu0 0.0
        %4400 = vmatpush1.msra.mxu0 %v2916
        %4401 = vmatprep.subr.mxu0 0.0
        %4402 = vmatpush1.msra.mxu0 %v2917
        %4403 = vmatprep.subr.mxu0 0.0
        %4404 = vmatpush1.msra.mxu0 %v2918
        %4405 = vmatprep.subr.mxu0 0.0
        %4406 = vmatpush1.msra.mxu0 %v2919
        %4407 = vmatprep.subr.mxu0 0.0
        %4408 = vmatpush1.msra.mxu0 %v2920
        %4409 = vmatprep.subr.mxu0 0.0
        %4410 = vmatpush1.msra.mxu0 %v3021
        %4411 = vmatprep.subr.mxu0 0.0
        %4412 = vmatpush1.msra.mxu0 0.0
        %4413 = vmatprep.subr.mxu0 0.0
        %4414 = vmatpush1.msra.mxu0 0.0
        %4415 = vmatprep.subr.mxu0 0.0
        %4416 = vmatpush1.msra.mxu0 0.0
        %4417 = vmatprep.subr.mxu0 0.0
        %4418 = vmatpush1.msra.mxu0 0.0
        %4419 = vmatprep.subr.mxu0 0.0
        %4420 = vmatpush1.msra.mxu0 0.0
        %4421 = vmatprep.subr.mxu0 0.0
        %4422 = vmatpush1.msra.mxu0 0.0
        %4423 = vmatprep.subr.mxu0 0.0
        %4424 = vmatpush1.msra.mxu0 0.0
        %4425 = vmatprep.subr.mxu0 0.0
        %4426 = vmatpush1.msra.mxu0 0.0
        %4427 = vmatprep.subr.mxu0 0.0
        %4428 = vmatpush1.msra.mxu0 0.0
        %4429 = vmatprep.subr.mxu0 0.0
        %4430 = vmatpush1.msra.mxu0 0.0
        %4431 = vmatprep.subr.mxu0 0.0
        %4432 = vmatpush1.msra.mxu0 0.0
        %4433 = vmatprep.subr.mxu0 0.0
        %4434 = vmatpush1.msra.mxu0 0.0
        %4435 = vmatprep.subr.mxu0 0.0
        %4436 = vmatpush1.msra.mxu0 0.0
        %4437 = vmatprep.mubr.f32.mxu0 %v2924
        %4438 = vmatmul.mubr.f32.gmra.mrb[0].mxu0 %v2275
        %v4439 = vpop.f32.mrb[0].mxu0
        %v4440 = vadd.f32 %v4215, %v4439
        %v4441 = vpop.f32.mrb[0].mxu0
        %4442 = vmatprep.mubr.f32.mxu0 %v2927
        %4443 = vmatmul.mubr.f32.gmra.mrb[0].mxu0 %v2289
        %v4444 = vpop.f32.mrb[0].mxu0
        %v4445 = vadd.f32 %v4220, %v4444
        %v4446 = vpop.f32.mrb[0].mxu0
        %4447 = vmatprep.mubr.f32.mxu0 %v2930
        %4448 = vmatmul.mubr.f32.gmra.mrb[0].mxu0 %v2303
        %v4449 = vpop.f32.mrb[0].mxu0
        %v4450 = vadd.f32 %v4225, %v4449
        %v4451 = vpop.f32.mrb[0].mxu0
        %4452 = vmatprep.mubr.f32.mxu0 %v2933
        %4453 = vmatmul.mubr.f32.gmra.mrb[0].mxu0 %v2317
        %v4454 = vpop.f32.mrb[0].mxu0
        %v4455 = vadd.f32 %v4230, %v4454
        %v4456 = vpop.f32.mrb[0].mxu0
        %4457 = vmatprep.mubr.f32.mxu0 %v2936
        %4458 = vmatmul.mubr.f32.gmra.mrb[0].mxu0 %v2331
        %v4459 = vpop.f32.mrb[0].mxu0
        %v4460 = vadd.f32 %v4235, %v4459
        %v4461 = vpop.f32.mrb[0].mxu0
        %4462 = vmatprep.mubr.f32.mxu0 %v2939
        %4463 = vmatmul.mubr.f32.gmra.mrb[0].mxu0 %v2345
        %v4464 = vpop.f32.mrb[0].mxu0
        %v4465 = vadd.f32 %v4240, %v4464
        %v4466 = vpop.f32.mrb[0].mxu0
        %4467 = vmatprep.mubr.f32.mxu0 %v2942
        %4468 = vmatmul.mubr.f32.gmra.mrb[0].mxu0 %v2359
        %v4469 = vpop.f32.mrb[0].mxu0
        %v4470 = vadd.f32 %v4245, %v4469
        %v4471 = vpop.f32.mrb[0].mxu0
        %4472 = vmatprep.mubr.f32.mxu0 %v2945
        %4473 = vmatmul.mubr.f32.gmra.mrb[0].mxu0 %v2373
        %v4474 = vpop.f32.mrb[0].mxu0
        %v4475 = vadd.f32 %v4250, %v4474
        %v4476 = vpop.f32.mrb[0].mxu0
        %4477 = vmatprep.mubr.f32.mxu0 %v2948
        %4478 = vmatmul.mubr.f32.gmra.mrb[0].mxu0 %v2387
        %v4479 = vpop.f32.mrb[0].mxu0
        %v4480 = vadd.f32 %v4255, %v4479
        %v4481 = vpop.f32.mrb[0].mxu0
        %4482 = vmatprep.mubr.f32.mxu0 %v2951
        %4483 = vmatmul.mubr.f32.gmra.mrb[0].mxu0 %v2401
        %v4484 = vpop.f32.mrb[0].mxu0
        %v4485 = vadd.f32 %v4260, %v4484
        %v4486 = vpop.f32.mrb[0].mxu0
        %4487 = vmatprep.mubr.f32.mxu0 %v2954
        %4488 = vmatmul.mubr.f32.gmra.mrb[0].mxu0 %v2415
        %v4489 = vpop.f32.mrb[0].mxu0
        %v4490 = vadd.f32 %v4265, %v4489
        %v4491 = vpop.f32.mrb[0].mxu0
        %4492 = vmatprep.mubr.f32.mxu0 %v2957
        %4493 = vmatmul.mubr.f32.gmra.mrb[0].mxu0 %v2429
        %v4494 = vpop.f32.mrb[0].mxu0
        %v4495 = vadd.f32 %v4270, %v4494
        %v4496 = vpop.f32.mrb[0].mxu0
        %4497 = vmatprep.mubr.f32.mxu0 %v2960
        %4498 = vmatmul.mubr.f32.gmra.mrb[0].mxu0 %v2443
        %v4499 = vpop.f32.mrb[0].mxu0
        %v4500 = vadd.f32 %v4275, %v4499
        %v4501 = vpop.f32.mrb[0].mxu0
        %4502 = vmatprep.mubr.f32.mxu0 %v2963
        %4503 = vmatmul.mubr.f32.gmra.mrb[0].mxu0 %v2457
        %v4504 = vpop.f32.mrb[0].mxu0
        %v4505 = vadd.f32 %v4280, %v4504
        %v4506 = vpop.f32.mrb[0].mxu0
        %4507 = vmatprep.mubr.f32.mxu0 %v2966
        %4508 = vmatmul.mubr.f32.gmra.mrb[0].mxu0 %v2471
        %v4509 = vpop.f32.mrb[0].mxu0
        %v4510 = vadd.f32 %v4285, %v4509
        %v4511 = vpop.f32.mrb[0].mxu0
        %4512 = vmatprep.mubr.f32.mxu0 %v2969
        %4513 = vmatmul.mubr.f32.gmra.mrb[0].mxu0 %v2485
        %v4514 = vpop.f32.mrb[0].mxu0
        %v4515 = vadd.f32 %v4290, %v4514
        %v4516 = vpop.f32.mrb[0].mxu0
        %4517 = vmatprep.mubr.f32.mxu0 %v2972
        %4518 = vmatmul.mubr.f32.gmra.mrb[0].mxu0 %v2499
        %v4519 = vpop.f32.mrb[0].mxu0
        %v4520 = vadd.f32 %v4295, %v4519
        %v4521 = vpop.f32.mrb[0].mxu0
        %4522 = vmatprep.mubr.f32.mxu0 %v2975
        %4523 = vmatmul.mubr.f32.gmra.mrb[0].mxu0 %v2513
        %v4524 = vpop.f32.mrb[0].mxu0
        %v4525 = vadd.f32 %v4300, %v4524
        %v4526 = vpop.f32.mrb[0].mxu0
        %4527 = vmatprep.mubr.f32.mxu0 %v2978
        %4528 = vmatmul.mubr.f32.gmra.mrb[0].mxu0 %v2527
        %v4529 = vpop.f32.mrb[0].mxu0
        %v4530 = vadd.f32 %v4305, %v4529
        %v4531 = vpop.f32.mrb[0].mxu0
        %4532 = vmatprep.mubr.f32.mxu0 %v2981
        %4533 = vmatmul.mubr.f32.gmra.mrb[0].mxu0 %v2541
        %v4534 = vpop.f32.mrb[0].mxu0
        %v4535 = vadd.f32 %v4310, %v4534
        %v4536 = vpop.f32.mrb[0].mxu0
        %4537 = vmatprep.mubr.f32.mxu0 %v2984
        %4538 = vmatmul.mubr.f32.gmra.mrb[0].mxu0 %v2555
        %v4539 = vpop.f32.mrb[0].mxu0
        %v4540 = vadd.f32 %v4315, %v4539
        %v4541 = vpop.f32.mrb[0].mxu0
        %4542 = vmatprep.mubr.f32.mxu0 %v2987
        %4543 = vmatmul.mubr.f32.gmra.mrb[0].mxu0 %v2569
        %v4544 = vpop.f32.mrb[0].mxu0
        %v4545 = vadd.f32 %v4320, %v4544
        %v4546 = vpop.f32.mrb[0].mxu0
        %4547 = vmatprep.mubr.f32.mxu0 %v2990
        %4548 = vmatmul.mubr.f32.gmra.mrb[0].mxu0 %v2583
        %v4549 = vpop.f32.mrb[0].mxu0
        %v4550 = vadd.f32 %v4325, %v4549
        %v4551 = vpop.f32.mrb[0].mxu0
        %4552 = vmatprep.mubr.f32.mxu0 %v2993
        %4553 = vmatmul.mubr.f32.gmra.mrb[0].mxu0 %v2597
        %v4554 = vpop.f32.mrb[0].mxu0
        %v4555 = vadd.f32 %v4330, %v4554
        %v4556 = vpop.f32.mrb[0].mxu0
        %4557 = vmatprep.mubr.f32.mxu0 %v2996
        %4558 = vmatmul.mubr.f32.gmra.mrb[0].mxu0 %v2611
        %v4559 = vpop.f32.mrb[0].mxu0
        %v4560 = vadd.f32 %v4335, %v4559
        %v4561 = vpop.f32.mrb[0].mxu0
        %4562 = vmatprep.mubr.f32.mxu0 %v2999
        %4563 = vmatmul.mubr.f32.gmra.mrb[0].mxu0 %v2625
        %v4564 = vpop.f32.mrb[0].mxu0
        %v4565 = vadd.f32 %v4340, %v4564
        %v4566 = vpop.f32.mrb[0].mxu0
        %4567 = vmatprep.mubr.f32.mxu0 %v3002
        %4568 = vmatmul.mubr.f32.gmra.mrb[0].mxu0 %v2639
        %v4569 = vpop.f32.mrb[0].mxu0
        %v4570 = vadd.f32 %v4345, %v4569
        %v4571 = vpop.f32.mrb[0].mxu0
        %4572 = vmatprep.mubr.f32.mxu0 %v3005
        %4573 = vmatmul.mubr.f32.gmra.mrb[0].mxu0 %v2653
        %v4574 = vpop.f32.mrb[0].mxu0
        %v4575 = vadd.f32 %v4350, %v4574
        %v4576 = vpop.f32.mrb[0].mxu0
        %4577 = vmatprep.mubr.f32.mxu0 %v3008
        %4578 = vmatmul.mubr.f32.gmra.mrb[0].mxu0 %v2667
        %v4579 = vpop.f32.mrb[0].mxu0
        %v4580 = vadd.f32 %v4355, %v4579
        %v4581 = vpop.f32.mrb[0].mxu0
        %4582 = vmatprep.mubr.f32.mxu0 %v3011
        %4583 = vmatmul.mubr.f32.gmra.mrb[0].mxu0 %v2681
        %v4584 = vpop.f32.mrb[0].mxu0
        %v4585 = vadd.f32 %v4360, %v4584
        %v4586 = vpop.f32.mrb[0].mxu0
        %4587 = vmatprep.mubr.f32.mxu0 %v3014
        %4588 = vmatmul.mubr.f32.gmra.mrb[0].mxu0 %v2695
        %v4589 = vpop.f32.mrb[0].mxu0
        %v4590 = vadd.f32 %v4365, %v4589
        %v4591 = vpop.f32.mrb[0].mxu0
        %4592 = vmatprep.mubr.f32.mxu0 %v3017
        %4593 = vmatmul.mubr.f32.gmra.mrb[0].mxu0 %v2709
        %v4594 = vpop.f32.mrb[0].mxu0
        %v4595 = vadd.f32 %v4370, %v4594
        %v4596 = vpop.f32.mrb[0].mxu0
        %4597 = vdwg.mxu0
        %vm4598 = vcmask 408576
        %v4600 = vsel %vm4598, %v2224, 0
        %v4603 = vsel %vm4598, %v2225, 0
        %v4606 = vsel %vm4598, %v2226, 0
        %v4609 = vsel %vm4598, %v2227, 0
        %v4612 = vsel %vm4598, %v2228, 0
        %v4615 = vsel %vm4598, %v2229, 0
        %v4618 = vsel %vm4598, %v2230, 0
        %v4621 = vsel %vm4598, %v2231, 0
        %v4624 = vsel %vm4598, %v2232, 0
        %v4627 = vsel %vm4598, %v2233, 0
        %v4630 = vsel %vm4598, %v2234, 0
        %v4633 = vsel %vm4598, %v2235, 0
        %v4636 = vsel %vm4598, %v2236, 0
        %v4639 = vsel %vm4598, %v2237, 0
        %v4642 = vsel %vm4598, %v2238, 0
        %v4645 = vsel %vm4598, %v2239, 0
        %v4648 = vsel %vm4598, %v2240, 0
        %v4651 = vsel %vm4598, %v2241, 0
        %v4654 = vsel %vm4598, %v2242, 0
        %v4657 = vsel %vm4598, %v2243, 0
        %v4660 = vsel %vm4598, %v2244, 0
        %v4663 = vsel %vm4598, %v2245, 0
        %v4666 = vsel %vm4598, %v2246, 0
        %v4669 = vsel %vm4598, %v2247, 0
        %v4672 = vsel %vm4598, %v2248, 0
        %v4675 = vsel %vm4598, %v2249, 0
        %v4678 = vsel %vm4598, %v2250, 0
        %v4681 = vsel %vm4598, %v2251, 0
        %v4684 = vsel %vm4598, %v2252, 0
        %v4687 = vsel %vm4598, %v2253, 0
        %v4690 = vsel %vm4598, %v2254, 0
        %v4693 = vsel %vm4598, %v2255, 0
        %v4696 = vsel %vm3019, %v2262, 0
        %4698 = vmatprep.subr.mxu0 0.0
        %4699 = vmatpush1.msra.mxu0 %v2256
        %4700 = vmatprep.subr.mxu0 0.0
        %4701 = vmatpush1.msra.mxu0 %v2257
        %4702 = vmatprep.subr.mxu0 0.0
        %4703 = vmatpush1.msra.mxu0 %v2258
        %4704 = vmatprep.subr.mxu0 0.0
        %4705 = vmatpush1.msra.mxu0 %v2259
        %4706 = vmatprep.subr.mxu0 0.0
        %4707 = vmatpush1.msra.mxu0 %v2260
        %4708 = vmatprep.subr.mxu0 0.0
        %4709 = vmatpush1.msra.mxu0 %v2261
        %4710 = vmatprep.subr.mxu0 0.0
        %4711 = vmatpush1.msra.mxu0 %v4696
        %4712 = vmatprep.subr.mxu0 0.0
        %4713 = vmatpush1.msra.mxu0 0.0
        %4714 = vmatprep.subr.mxu0 0.0
        %4715 = vmatpush1.msra.mxu0 0.0
        %4716 = vmatprep.subr.mxu0 0.0
        %4717 = vmatpush1.msra.mxu0 0.0
        %4718 = vmatprep.subr.mxu0 0.0
        %4719 = vmatpush1.msra.mxu0 0.0
        %4720 = vmatprep.subr.mxu0 0.0
        %4721 = vmatpush1.msra.mxu0 0.0
        %4722 = vmatprep.subr.mxu0 0.0
        %4723 = vmatpush1.msra.mxu0 0.0
        %4724 = vmatprep.subr.mxu0 0.0
        %4725 = vmatpush1.msra.mxu0 0.0
        %4726 = vmatprep.subr.mxu0 0.0
        %4727 = vmatpush1.msra.mxu0 0.0
        %4728 = vmatprep.subr.mxu0 0.0
        %4729 = vmatpush1.msra.mxu0 0.0
        %4730 = vmatprep.subr.mxu0 0.0
        %4731 = vmatpush1.msra.mxu0 0.0
        %4732 = vmatprep.subr.mxu0 0.0
        %4733 = vmatpush1.msra.mxu0 0.0
        %4734 = vmatprep.subr.mxu0 0.0
        %4735 = vmatpush1.msra.mxu0 0.0
        %4736 = vmatprep.subr.mxu0 0.0
        %4737 = vmatpush1.msra.mxu0 0.0
        %4738 = vmatprep.subr.mxu0 0.0
        %4739 = vmatpush1.msra.mxu0 0.0
        %4740 = vmatprep.subr.mxu0 0.0
        %4741 = vmatpush1.msra.mxu0 0.0
        %4742 = vmatprep.subr.mxu0 0.0
        %4743 = vmatpush1.msra.mxu0 0.0
        %4744 = vmatprep.subr.mxu0 0.0
        %4745 = vmatpush1.msra.mxu0 0.0
        %4746 = vmatprep.subr.mxu0 0.0
        %4747 = vmatpush1.msra.mxu0 0.0
        %4748 = vmatprep.subr.mxu0 0.0
        %4749 = vmatpush1.msra.mxu0 0.0
        %4750 = vmatprep.subr.mxu0 0.0
        %4751 = vmatpush1.msra.mxu0 0.0
        %4752 = vmatprep.subr.mxu0 0.0
        %4753 = vmatpush1.msra.mxu0 0.0
        %4754 = vmatprep.subr.mxu0 0.0
        %4755 = vmatpush1.msra.mxu0 0.0
        %4756 = vmatprep.subr.mxu0 0.0
        %4757 = vmatpush1.msra.mxu0 0.0
        %4758 = vmatprep.subr.mxu0 0.0
        %4759 = vmatpush1.msra.mxu0 0.0
        %4760 = vmatprep.subr.mxu0 0.0
        %4761 = vmatpush1.msra.mxu0 0.0
        %4762 = vmatprep.mubr.f32.mxu0 0.0
        %4763 = vmatmul.mubr.f32.gmra.mrb[0].mxu0 %v4600
        %v4764 = vpop.f32.mrb[0].mxu0
        %v4765 = vadd.f32 %v4440, %v4764
        %v4766 = vpop.f32.mrb[0].mxu0
        %4767 = vmatprep.mubr.f32.mxu0 0.0
        %4768 = vmatmul.mubr.f32.gmra.mrb[0].mxu0 %v4603
        %v4769 = vpop.f32.mrb[0].mxu0
        %v4770 = vadd.f32 %v4445, %v4769
        %v4771 = vpop.f32.mrb[0].mxu0
        %4772 = vmatprep.mubr.f32.mxu0 0.0
        %4773 = vmatmul.mubr.f32.gmra.mrb[0].mxu0 %v4606
        %v4774 = vpop.f32.mrb[0].mxu0
        %v4775 = vadd.f32 %v4450, %v4774
        %v4776 = vpop.f32.mrb[0].mxu0
        %4777 = vmatprep.mubr.f32.mxu0 0.0
        %4778 = vmatmul.mubr.f32.gmra.mrb[0].mxu0 %v4609
        %v4779 = vpop.f32.mrb[0].mxu0
        %v4780 = vadd.f32 %v4455, %v4779
        %v4781 = vpop.f32.mrb[0].mxu0
        %4782 = vmatprep.mubr.f32.mxu0 0.0
        %4783 = vmatmul.mubr.f32.gmra.mrb[0].mxu0 %v4612
        %v4784 = vpop.f32.mrb[0].mxu0
        %v4785 = vadd.f32 %v4460, %v4784
        %v4786 = vpop.f32.mrb[0].mxu0
        %4787 = vmatprep.mubr.f32.mxu0 0.0
        %4788 = vmatmul.mubr.f32.gmra.mrb[0].mxu0 %v4615
        %v4789 = vpop.f32.mrb[0].mxu0
        %v4790 = vadd.f32 %v4465, %v4789
        %v4791 = vpop.f32.mrb[0].mxu0
        %4792 = vmatprep.mubr.f32.mxu0 0.0
        %4793 = vmatmul.mubr.f32.gmra.mrb[0].mxu0 %v4618
        %v4794 = vpop.f32.mrb[0].mxu0
        %v4795 = vadd.f32 %v4470, %v4794
        %v4796 = vpop.f32.mrb[0].mxu0
        %4797 = vmatprep.mubr.f32.mxu0 0.0
        %4798 = vmatmul.mubr.f32.gmra.mrb[0].mxu0 %v4621
        %v4799 = vpop.f32.mrb[0].mxu0
        %v4800 = vadd.f32 %v4475, %v4799
        %v4801 = vpop.f32.mrb[0].mxu0
        %4802 = vmatprep.mubr.f32.mxu0 0.0
        %4803 = vmatmul.mubr.f32.gmra.mrb[0].mxu0 %v4624
        %v4804 = vpop.f32.mrb[0].mxu0
        %v4805 = vadd.f32 %v4480, %v4804
        %v4806 = vpop.f32.mrb[0].mxu0
        %4807 = vmatprep.mubr.f32.mxu0 0.0
        %4808 = vmatmul.mubr.f32.gmra.mrb[0].mxu0 %v4627
        %v4809 = vpop.f32.mrb[0].mxu0
        %v4810 = vadd.f32 %v4485, %v4809
        %v4811 = vpop.f32.mrb[0].mxu0
        %4812 = vmatprep.mubr.f32.mxu0 0.0
        %4813 = vmatmul.mubr.f32.gmra.mrb[0].mxu0 %v4630
        %v4814 = vpop.f32.mrb[0].mxu0
        %v4815 = vadd.f32 %v4490, %v4814
        %v4816 = vpop.f32.mrb[0].mxu0
        %4817 = vmatprep.mubr.f32.mxu0 0.0
        %4818 = vmatmul.mubr.f32.gmra.mrb[0].mxu0 %v4633
        %v4819 = vpop.f32.mrb[0].mxu0
        %v4820 = vadd.f32 %v4495, %v4819
        %v4821 = vpop.f32.mrb[0].mxu0
        %4822 = vmatprep.mubr.f32.mxu0 0.0
        %4823 = vmatmul.mubr.f32.gmra.mrb[0].mxu0 %v4636
        %v4824 = vpop.f32.mrb[0].mxu0
        %v4825 = vadd.f32 %v4500, %v4824
        %v4826 = vpop.f32.mrb[0].mxu0
        %4827 = vmatprep.mubr.f32.mxu0 0.0
        %4828 = vmatmul.mubr.f32.gmra.mrb[0].mxu0 %v4639
        %v4829 = vpop.f32.mrb[0].mxu0
        %v4830 = vadd.f32 %v4505, %v4829
        %v4831 = vpop.f32.mrb[0].mxu0
        %4832 = vmatprep.mubr.f32.mxu0 0.0
        %4833 = vmatmul.mubr.f32.gmra.mrb[0].mxu0 %v4642
        %v4834 = vpop.f32.mrb[0].mxu0
        %v4835 = vadd.f32 %v4510, %v4834
        %v4836 = vpop.f32.mrb[0].mxu0
        %4837 = vmatprep.mubr.f32.mxu0 0.0
        %4838 = vmatmul.mubr.f32.gmra.mrb[0].mxu0 %v4645
        %v4839 = vpop.f32.mrb[0].mxu0
        %v4840 = vadd.f32 %v4515, %v4839
        %v4841 = vpop.f32.mrb[0].mxu0
        %4842 = vmatprep.mubr.f32.mxu0 0.0
        %4843 = vmatmul.mubr.f32.gmra.mrb[0].mxu0 %v4648
        %v4844 = vpop.f32.mrb[0].mxu0
        %v4845 = vadd.f32 %v4520, %v4844
        %v4846 = vpop.f32.mrb[0].mxu0
        %4847 = vmatprep.mubr.f32.mxu0 0.0
        %4848 = vmatmul.mubr.f32.gmra.mrb[0].mxu0 %v4651
        %v4849 = vpop.f32.mrb[0].mxu0
        %v4850 = vadd.f32 %v4525, %v4849
        %v4851 = vpop.f32.mrb[0].mxu0
        %4852 = vmatprep.mubr.f32.mxu0 0.0
        %4853 = vmatmul.mubr.f32.gmra.mrb[0].mxu0 %v4654
        %v4854 = vpop.f32.mrb[0].mxu0
        %v4855 = vadd.f32 %v4530, %v4854
        %v4856 = vpop.f32.mrb[0].mxu0
        %4857 = vmatprep.mubr.f32.mxu0 0.0
        %4858 = vmatmul.mubr.f32.gmra.mrb[0].mxu0 %v4657
        %v4859 = vpop.f32.mrb[0].mxu0
        %v4860 = vadd.f32 %v4535, %v4859
        %v4861 = vpop.f32.mrb[0].mxu0
        %4862 = vmatprep.mubr.f32.mxu0 0.0
        %4863 = vmatmul.mubr.f32.gmra.mrb[0].mxu0 %v4660
        %v4864 = vpop.f32.mrb[0].mxu0
        %v4865 = vadd.f32 %v4540, %v4864
        %v4866 = vpop.f32.mrb[0].mxu0
        %4867 = vmatprep.mubr.f32.mxu0 0.0
        %4868 = vmatmul.mubr.f32.gmra.mrb[0].mxu0 %v4663
        %v4869 = vpop.f32.mrb[0].mxu0
        %v4870 = vadd.f32 %v4545, %v4869
        %v4871 = vpop.f32.mrb[0].mxu0
        %4872 = vmatprep.mubr.f32.mxu0 0.0
        %4873 = vmatmul.mubr.f32.gmra.mrb[0].mxu0 %v4666
        %v4874 = vpop.f32.mrb[0].mxu0
        %v4875 = vadd.f32 %v4550, %v4874
        %v4876 = vpop.f32.mrb[0].mxu0
        %4877 = vmatprep.mubr.f32.mxu0 0.0
        %4878 = vmatmul.mubr.f32.gmra.mrb[0].mxu0 %v4669
        %v4879 = vpop.f32.mrb[0].mxu0
        %v4880 = vadd.f32 %v4555, %v4879
        %v4881 = vpop.f32.mrb[0].mxu0
        %4882 = vmatprep.mubr.f32.mxu0 0.0
        %4883 = vmatmul.mubr.f32.gmra.mrb[0].mxu0 %v4672
        %v4884 = vpop.f32.mrb[0].mxu0
        %v4885 = vadd.f32 %v4560, %v4884
        %v4886 = vpop.f32.mrb[0].mxu0
        %4887 = vmatprep.mubr.f32.mxu0 0.0
        %4888 = vmatmul.mubr.f32.gmra.mrb[0].mxu0 %v4675
        %v4889 = vpop.f32.mrb[0].mxu0
        %v4890 = vadd.f32 %v4565, %v4889
        %v4891 = vpop.f32.mrb[0].mxu0
        %4892 = vmatprep.mubr.f32.mxu0 0.0
        %4893 = vmatmul.mubr.f32.gmra.mrb[0].mxu0 %v4678
        %v4894 = vpop.f32.mrb[0].mxu0
        %v4895 = vadd.f32 %v4570, %v4894
        %v4896 = vpop.f32.mrb[0].mxu0
        %4897 = vmatprep.mubr.f32.mxu0 0.0
        %4898 = vmatmul.mubr.f32.gmra.mrb[0].mxu0 %v4681
        %v4899 = vpop.f32.mrb[0].mxu0
        %v4900 = vadd.f32 %v4575, %v4899
        %v4901 = vpop.f32.mrb[0].mxu0
        %4902 = vmatprep.mubr.f32.mxu0 0.0
        %4903 = vmatmul.mubr.f32.gmra.mrb[0].mxu0 %v4684
        %v4904 = vpop.f32.mrb[0].mxu0
        %v4905 = vadd.f32 %v4580, %v4904
        %v4906 = vpop.f32.mrb[0].mxu0
        %4907 = vmatprep.mubr.f32.mxu0 0.0
        %4908 = vmatmul.mubr.f32.gmra.mrb[0].mxu0 %v4687
        %v4909 = vpop.f32.mrb[0].mxu0
        %v4910 = vadd.f32 %v4585, %v4909
        %v4911 = vpop.f32.mrb[0].mxu0
        %4912 = vmatprep.mubr.f32.mxu0 0.0
        %4913 = vmatmul.mubr.f32.gmra.mrb[0].mxu0 %v4690
        %v4914 = vpop.f32.mrb[0].mxu0
        %v4915 = vadd.f32 %v4590, %v4914
        %v4916 = vpop.f32.mrb[0].mxu0
        %4917 = vmatprep.mubr.f32.mxu0 0.0
        %4918 = vmatmul.mubr.f32.gmra.mrb[0].mxu0 %v4693
        %v4919 = vpop.f32.mrb[0].mxu0
        %v4920 = vadd.f32 %v4595, %v4919
        %v4921 = vpop.f32.mrb[0].mxu0
        %4922 = vdwg.mxu0
        %v4923 = vld [vmem:[#allocation14] sm:$0x1]
        %v4925 = vlaneseq
        %v4926 = vshrl.u32 %v4925, 7
        %v4927 = vsub.s32 0, %v4926
        %v4928 = vrot.slane %v4923, %v4927
        %v4930 = vadd.f32 %v4765, %v4928
        %v4931 = vadd.f32 %v4770, %v4928
        %v4932 = vadd.f32 %v4775, %v4928
        %v4933 = vadd.f32 %v4780, %v4928
        %v4934 = vadd.f32 %v4785, %v4928
        %v4935 = vadd.f32 %v4790, %v4928
        %v4936 = vadd.f32 %v4795, %v4928
        %v4937 = vadd.f32 %v4800, %v4928
        %v4938 = vadd.f32 %v4805, %v4928
        %v4939 = vadd.f32 %v4810, %v4928
        %v4940 = vadd.f32 %v4815, %v4928
        %v4941 = vadd.f32 %v4820, %v4928
        %v4942 = vadd.f32 %v4825, %v4928
        %v4943 = vadd.f32 %v4830, %v4928
        %v4944 = vadd.f32 %v4835, %v4928
        %v4945 = vadd.f32 %v4840, %v4928
        %v4946 = vadd.f32 %v4845, %v4928
        %v4947 = vadd.f32 %v4850, %v4928
        %v4948 = vadd.f32 %v4855, %v4928
        %v4949 = vadd.f32 %v4860, %v4928
        %v4950 = vadd.f32 %v4865, %v4928
        %v4951 = vadd.f32 %v4870, %v4928
        %v4952 = vadd.f32 %v4875, %v4928
        %v4953 = vadd.f32 %v4880, %v4928
        %v4954 = vadd.f32 %v4885, %v4928
        %v4955 = vadd.f32 %v4890, %v4928
        %v4956 = vadd.f32 %v4895, %v4928
        %v4957 = vadd.f32 %v4900, %v4928
        %v4958 = vadd.f32 %v4905, %v4928
        %v4959 = vadd.f32 %v4910, %v4928
        %v4960 = vadd.f32 %v4915, %v4928
        %v4961 = vadd.f32 %v4920, %v4928
        %v4962 = vmax.f32 %v4930, 0.0
        %v4963 = vmax.f32 %v4931, 0.0
        %v4964 = vmax.f32 %v4932, 0.0
        %v4965 = vmax.f32 %v4933, 0.0
        %v4966 = vmax.f32 %v4934, 0.0
        %v4967 = vmax.f32 %v4935, 0.0
        %v4968 = vmax.f32 %v4936, 0.0
        %v4969 = vmax.f32 %v4937, 0.0
        %v4970 = vmax.f32 %v4938, 0.0
        %v4971 = vmax.f32 %v4939, 0.0
        %v4972 = vmax.f32 %v4940, 0.0
        %v4973 = vmax.f32 %v4941, 0.0
        %v4974 = vmax.f32 %v4942, 0.0
        %v4975 = vmax.f32 %v4943, 0.0
        %v4976 = vmax.f32 %v4944, 0.0
        %v4977 = vmax.f32 %v4945, 0.0
        %v4978 = vmax.f32 %v4946, 0.0
        %v4979 = vmax.f32 %v4947, 0.0
        %v4980 = vmax.f32 %v4948, 0.0
        %v4981 = vmax.f32 %v4949, 0.0
        %v4982 = vmax.f32 %v4950, 0.0
        %v4983 = vmax.f32 %v4951, 0.0
        %v4984 = vmax.f32 %v4952, 0.0
        %v4985 = vmax.f32 %v4953, 0.0
        %v4986 = vmax.f32 %v4954, 0.0
        %v4987 = vmax.f32 %v4955, 0.0
        %v4988 = vmax.f32 %v4956, 0.0
        %v4989 = vmax.f32 %v4957, 0.0
        %v4990 = vmax.f32 %v4958, 0.0
        %v4991 = vmax.f32 %v4959, 0.0
        %v4992 = vmax.f32 %v4960, 0.0
        %v4993 = vmax.f32 %v4961, 0.0
        %v4994 = vld [vmem:[%s13] sm:$0xff]
        %v4995 = vld [vmem:[%s13 + $0x8] sm:$0xff]
        %v4996 = vld [vmem:[%s13 + $0x10] sm:$0xff]
        %v4997 = vld [vmem:[%s13 + $0x18] sm:$0x3f]
        %v4998 = vld [vmem:[#allocation2] sm:$0x1]
        %v5000 = vlaneseq
        %v5001 = vshrl.u32 %v5000, 7
        %v5002 = vsub.s32 0, %v5001
        %v5003 = vrot.slane %v4998, %v5002
        %vm5005 = vcmask 244736
        %v5007 = vsel %vm5005, %v4962, 0
        %v5010 = vsel %vm5005, %v4963, 0
        %v5013 = vsel %vm5005, %v4964, 0
        %v5016 = vsel %vm5005, %v4965, 0
        %v5019 = vsel %vm5005, %v4966, 0
        %v5022 = vsel %vm5005, %v4967, 0
        %v5025 = vsel %vm5005, %v4968, 0
        %v5028 = vsel %vm5005, %v4969, 0
        %v5031 = vsel %vm5005, %v4970, 0
        %v5034 = vsel %vm5005, %v4971, 0
        %v5037 = vsel %vm5005, %v4972, 0
        %v5040 = vsel %vm5005, %v4973, 0
        %v5043 = vsel %vm5005, %v4974, 0
        %v5046 = vsel %vm5005, %v4975, 0
        %v5049 = vsel %vm5005, %v4976, 0
        %v5052 = vsel %vm5005, %v4977, 0
        %v5055 = vsel %vm5005, %v4978, 0
        %v5058 = vsel %vm5005, %v4979, 0
        %v5061 = vsel %vm5005, %v4980, 0
        %v5064 = vsel %vm5005, %v4981, 0
        %v5067 = vsel %vm5005, %v4982, 0
        %v5070 = vsel %vm5005, %v4983, 0
        %v5073 = vsel %vm5005, %v4984, 0
        %v5076 = vsel %vm5005, %v4985, 0
        %v5079 = vsel %vm5005, %v4986, 0
        %v5082 = vsel %vm5005, %v4987, 0
        %v5085 = vsel %vm5005, %v4988, 0
        %v5088 = vsel %vm5005, %v4989, 0
        %v5091 = vsel %vm5005, %v4990, 0
        %v5094 = vsel %vm5005, %v4991, 0
        %v5097 = vsel %vm5005, %v4992, 0
        %v5100 = vsel %vm5005, %v4993, 0
        %vm5102 = vcmask 1045504
        %v5104 = vsel %vm5102, %v4997, 0
        %5106 = vmatprep.subr.mxu0 0.0
        %5107 = vmatpush1.msra.mxu0 %v4994
        %5108 = vmatprep.subr.mxu0 0.0
        %5109 = vmatpush1.msra.mxu0 %v4995
        %5110 = vmatprep.subr.mxu0 0.0
        %5111 = vmatpush1.msra.mxu0 %v4996
        %5112 = vmatprep.subr.mxu0 0.0
        %5113 = vmatpush1.msra.mxu0 %v5104
        %5114 = vmatprep.subr.mxu0 0.0
        %5115 = vmatpush1.msra.mxu0 0.0
        %5116 = vmatprep.subr.mxu0 0.0
        %5117 = vmatpush1.msra.mxu0 0.0
        %5118 = vmatprep.subr.mxu0 0.0
        %5119 = vmatpush1.msra.mxu0 0.0
        %5120 = vmatprep.subr.mxu0 0.0
        %5121 = vmatpush1.msra.mxu0 0.0
        %5122 = vmatprep.subr.mxu0 0.0
        %5123 = vmatpush1.msra.mxu0 0.0
        %5124 = vmatprep.subr.mxu0 0.0
        %5125 = vmatpush1.msra.mxu0 0.0
        %5126 = vmatprep.subr.mxu0 0.0
        %5127 = vmatpush1.msra.mxu0 0.0
        %5128 = vmatprep.subr.mxu0 0.0
        %5129 = vmatpush1.msra.mxu0 0.0
        %5130 = vmatprep.subr.mxu0 0.0
        %5131 = vmatpush1.msra.mxu0 0.0
        %5132 = vmatprep.subr.mxu0 0.0
        %5133 = vmatpush1.msra.mxu0 0.0
        %5134 = vmatprep.subr.mxu0 0.0
        %5135 = vmatpush1.msra.mxu0 0.0
        %5136 = vmatprep.subr.mxu0 0.0
        %5137 = vmatpush1.msra.mxu0 0.0
        %5138 = vmatprep.subr.mxu0 0.0
        %5139 = vmatpush1.msra.mxu0 0.0
        %5140 = vmatprep.subr.mxu0 0.0
        %5141 = vmatpush1.msra.mxu0 0.0
        %5142 = vmatprep.subr.mxu0 0.0
        %5143 = vmatpush1.msra.mxu0 0.0
        %5144 = vmatprep.subr.mxu0 0.0
        %5145 = vmatpush1.msra.mxu0 0.0
        %5146 = vmatprep.subr.mxu0 0.0
        %5147 = vmatpush1.msra.mxu0 0.0
        %5148 = vmatprep.subr.mxu0 0.0
        %5149 = vmatpush1.msra.mxu0 0.0
        %5150 = vmatprep.subr.mxu0 0.0
        %5151 = vmatpush1.msra.mxu0 0.0
        %5152 = vmatprep.subr.mxu0 0.0
        %5153 = vmatpush1.msra.mxu0 0.0
        %5154 = vmatprep.subr.mxu0 0.0
        %5155 = vmatpush1.msra.mxu0 0.0
        %5156 = vmatprep.subr.mxu0 0.0
        %5157 = vmatpush1.msra.mxu0 0.0
        %5158 = vmatprep.subr.mxu0 0.0
        %5159 = vmatpush1.msra.mxu0 0.0
        %5160 = vmatprep.subr.mxu0 0.0
        %5161 = vmatpush1.msra.mxu0 0.0
        %5162 = vmatprep.subr.mxu0 0.0
        %5163 = vmatpush1.msra.mxu0 0.0
        %5164 = vmatprep.subr.mxu0 0.0
        %5165 = vmatpush1.msra.mxu0 0.0
        %5166 = vmatprep.subr.mxu0 0.0
        %5167 = vmatpush1.msra.mxu0 0.0
        %5168 = vmatprep.subr.mxu0 0.0
        %5169 = vmatpush1.msra.mxu0 0.0
        %5170 = vmatprep.mubr.f32.mxu0 0.0
        %5171 = vmatmul.mubr.f32.gmra.mrb[0].mxu0 %v5007
        %v5172 = vpop.f32.mrb[0].mxu0
        %v5173 = vadd.f32 %v5003, %v5172
        %v5174 = vpop.f32.mrb[0].mxu0
        %5175 = vmatprep.mubr.f32.mxu0 0.0
        %5176 = vmatmul.mubr.f32.gmra.mrb[0].mxu0 %v5010
        %v5177 = vpop.f32.mrb[0].mxu0
        %v5178 = vadd.f32 %v5003, %v5177
        %v5179 = vpop.f32.mrb[0].mxu0
        %5180 = vmatprep.mubr.f32.mxu0 0.0
        %5181 = vmatmul.mubr.f32.gmra.mrb[0].mxu0 %v5013
        %v5182 = vpop.f32.mrb[0].mxu0
        %v5183 = vadd.f32 %v5003, %v5182
        %v5184 = vpop.f32.mrb[0].mxu0
        %5185 = vmatprep.mubr.f32.mxu0 0.0
        %5186 = vmatmul.mubr.f32.gmra.mrb[0].mxu0 %v5016
        %v5187 = vpop.f32.mrb[0].mxu0
        %v5188 = vadd.f32 %v5003, %v5187
        %v5189 = vpop.f32.mrb[0].mxu0
        %5190 = vmatprep.mubr.f32.mxu0 0.0
        %5191 = vmatmul.mubr.f32.gmra.mrb[0].mxu0 %v5019
        %v5192 = vpop.f32.mrb[0].mxu0
        %v5193 = vadd.f32 %v5003, %v5192
        %v5194 = vpop.f32.mrb[0].mxu0
        %5195 = vmatprep.mubr.f32.mxu0 0.0
        %5196 = vmatmul.mubr.f32.gmra.mrb[0].mxu0 %v5022
        %v5197 = vpop.f32.mrb[0].mxu0
        %v5198 = vadd.f32 %v5003, %v5197
        %v5199 = vpop.f32.mrb[0].mxu0
        %5200 = vmatprep.mubr.f32.mxu0 0.0
        %5201 = vmatmul.mubr.f32.gmra.mrb[0].mxu0 %v5025
        %v5202 = vpop.f32.mrb[0].mxu0
        %v5203 = vadd.f32 %v5003, %v5202
        %v5204 = vpop.f32.mrb[0].mxu0
        %5205 = vmatprep.mubr.f32.mxu0 0.0
        %5206 = vmatmul.mubr.f32.gmra.mrb[0].mxu0 %v5028
        %v5207 = vpop.f32.mrb[0].mxu0
        %v5208 = vadd.f32 %v5003, %v5207
        %v5209 = vpop.f32.mrb[0].mxu0
        %5210 = vmatprep.mubr.f32.mxu0 0.0
        %5211 = vmatmul.mubr.f32.gmra.mrb[0].mxu0 %v5031
        %v5212 = vpop.f32.mrb[0].mxu0
        %v5213 = vadd.f32 %v5003, %v5212
        %v5214 = vpop.f32.mrb[0].mxu0
        %5215 = vmatprep.mubr.f32.mxu0 0.0
        %5216 = vmatmul.mubr.f32.gmra.mrb[0].mxu0 %v5034
        %v5217 = vpop.f32.mrb[0].mxu0
        %v5218 = vadd.f32 %v5003, %v5217
        %v5219 = vpop.f32.mrb[0].mxu0
        %5220 = vmatprep.mubr.f32.mxu0 0.0
        %5221 = vmatmul.mubr.f32.gmra.mrb[0].mxu0 %v5037
        %v5222 = vpop.f32.mrb[0].mxu0
        %v5223 = vadd.f32 %v5003, %v5222
        %v5224 = vpop.f32.mrb[0].mxu0
        %5225 = vmatprep.mubr.f32.mxu0 0.0
        %5226 = vmatmul.mubr.f32.gmra.mrb[0].mxu0 %v5040
        %v5227 = vpop.f32.mrb[0].mxu0
        %v5228 = vadd.f32 %v5003, %v5227
        %v5229 = vpop.f32.mrb[0].mxu0
        %5230 = vmatprep.mubr.f32.mxu0 0.0
        %5231 = vmatmul.mubr.f32.gmra.mrb[0].mxu0 %v5043
        %v5232 = vpop.f32.mrb[0].mxu0
        %v5233 = vadd.f32 %v5003, %v5232
        %v5234 = vpop.f32.mrb[0].mxu0
        %5235 = vmatprep.mubr.f32.mxu0 0.0
        %5236 = vmatmul.mubr.f32.gmra.mrb[0].mxu0 %v5046
        %v5237 = vpop.f32.mrb[0].mxu0
        %v5238 = vadd.f32 %v5003, %v5237
        %v5239 = vpop.f32.mrb[0].mxu0
        %5240 = vmatprep.mubr.f32.mxu0 0.0
        %5241 = vmatmul.mubr.f32.gmra.mrb[0].mxu0 %v5049
        %v5242 = vpop.f32.mrb[0].mxu0
        %v5243 = vadd.f32 %v5003, %v5242
        %v5244 = vpop.f32.mrb[0].mxu0
        %5245 = vmatprep.mubr.f32.mxu0 0.0
        %5246 = vmatmul.mubr.f32.gmra.mrb[0].mxu0 %v5052
        %v5247 = vpop.f32.mrb[0].mxu0
        %v5248 = vadd.f32 %v5003, %v5247
        %v5249 = vpop.f32.mrb[0].mxu0
        %5250 = vmatprep.mubr.f32.mxu0 0.0
        %5251 = vmatmul.mubr.f32.gmra.mrb[0].mxu0 %v5055
        %v5252 = vpop.f32.mrb[0].mxu0
        %v5253 = vadd.f32 %v5003, %v5252
        %v5254 = vpop.f32.mrb[0].mxu0
        %5255 = vmatprep.mubr.f32.mxu0 0.0
        %5256 = vmatmul.mubr.f32.gmra.mrb[0].mxu0 %v5058
        %v5257 = vpop.f32.mrb[0].mxu0
        %v5258 = vadd.f32 %v5003, %v5257
        %v5259 = vpop.f32.mrb[0].mxu0
        %5260 = vmatprep.mubr.f32.mxu0 0.0
        %5261 = vmatmul.mubr.f32.gmra.mrb[0].mxu0 %v5061
        %v5262 = vpop.f32.mrb[0].mxu0
        %v5263 = vadd.f32 %v5003, %v5262
        %v5264 = vpop.f32.mrb[0].mxu0
        %5265 = vmatprep.mubr.f32.mxu0 0.0
        %5266 = vmatmul.mubr.f32.gmra.mrb[0].mxu0 %v5064
        %v5267 = vpop.f32.mrb[0].mxu0
        %v5268 = vadd.f32 %v5003, %v5267
        %v5269 = vpop.f32.mrb[0].mxu0
        %5270 = vmatprep.mubr.f32.mxu0 0.0
        %5271 = vmatmul.mubr.f32.gmra.mrb[0].mxu0 %v5067
        %v5272 = vpop.f32.mrb[0].mxu0
        %v5273 = vadd.f32 %v5003, %v5272
        %v5274 = vpop.f32.mrb[0].mxu0
        %5275 = vmatprep.mubr.f32.mxu0 0.0
        %5276 = vmatmul.mubr.f32.gmra.mrb[0].mxu0 %v5070
        %v5277 = vpop.f32.mrb[0].mxu0
        %v5278 = vadd.f32 %v5003, %v5277
        %v5279 = vpop.f32.mrb[0].mxu0
        %5280 = vmatprep.mubr.f32.mxu0 0.0
        %5281 = vmatmul.mubr.f32.gmra.mrb[0].mxu0 %v5073
        %v5282 = vpop.f32.mrb[0].mxu0
        %v5283 = vadd.f32 %v5003, %v5282
        %v5284 = vpop.f32.mrb[0].mxu0
        %5285 = vmatprep.mubr.f32.mxu0 0.0
        %5286 = vmatmul.mubr.f32.gmra.mrb[0].mxu0 %v5076
        %v5287 = vpop.f32.mrb[0].mxu0
        %v5288 = vadd.f32 %v5003, %v5287
        %v5289 = vpop.f32.mrb[0].mxu0
        %5290 = vmatprep.mubr.f32.mxu0 0.0
        %5291 = vmatmul.mubr.f32.gmra.mrb[0].mxu0 %v5079
        %v5292 = vpop.f32.mrb[0].mxu0
        %v5293 = vadd.f32 %v5003, %v5292
        %v5294 = vpop.f32.mrb[0].mxu0
        %5295 = vmatprep.mubr.f32.mxu0 0.0
        %5296 = vmatmul.mubr.f32.gmra.mrb[0].mxu0 %v5082
        %v5297 = vpop.f32.mrb[0].mxu0
        %v5298 = vadd.f32 %v5003, %v5297
        %v5299 = vpop.f32.mrb[0].mxu0
        %5300 = vmatprep.mubr.f32.mxu0 0.0
        %5301 = vmatmul.mubr.f32.gmra.mrb[0].mxu0 %v5085
        %v5302 = vpop.f32.mrb[0].mxu0
        %v5303 = vadd.f32 %v5003, %v5302
        %v5304 = vpop.f32.mrb[0].mxu0
        %5305 = vmatprep.mubr.f32.mxu0 0.0
        %5306 = vmatmul.mubr.f32.gmra.mrb[0].mxu0 %v5088
        %v5307 = vpop.f32.mrb[0].mxu0
        %v5308 = vadd.f32 %v5003, %v5307
        %v5309 = vpop.f32.mrb[0].mxu0
        %5310 = vmatprep.mubr.f32.mxu0 0.0
        %5311 = vmatmul.mubr.f32.gmra.mrb[0].mxu0 %v5091
        %v5312 = vpop.f32.mrb[0].mxu0
        %v5313 = vadd.f32 %v5003, %v5312
        %v5314 = vpop.f32.mrb[0].mxu0
        %5315 = vmatprep.mubr.f32.mxu0 0.0
        %5316 = vmatmul.mubr.f32.gmra.mrb[0].mxu0 %v5094
        %v5317 = vpop.f32.mrb[0].mxu0
        %v5318 = vadd.f32 %v5003, %v5317
        %v5319 = vpop.f32.mrb[0].mxu0
        %5320 = vmatprep.mubr.f32.mxu0 0.0
        %5321 = vmatmul.mubr.f32.gmra.mrb[0].mxu0 %v5097
        %v5322 = vpop.f32.mrb[0].mxu0
        %v5323 = vadd.f32 %v5003, %v5322
        %v5324 = vpop.f32.mrb[0].mxu0
        %5325 = vmatprep.mubr.f32.mxu0 0.0
        %5326 = vmatmul.mubr.f32.gmra.mrb[0].mxu0 %v5100
        %v5327 = vpop.f32.mrb[0].mxu0
        %v5328 = vadd.f32 %v5003, %v5327
        %v5329 = vpop.f32.mrb[0].mxu0
        %5330 = vdwg.mxu0
        %v5331 = vxor.u32 %v5173, 2147483648
        %v5332 = vxor.u32 %v5178, 2147483648
        %v5333 = vxor.u32 %v5183, 2147483648
        %v5334 = vxor.u32 %v5188, 2147483648
        %v5335 = vxor.u32 %v5193, 2147483648
        %v5336 = vxor.u32 %v5198, 2147483648
        %v5337 = vxor.u32 %v5203, 2147483648
        %v5338 = vxor.u32 %v5208, 2147483648
        %v5339 = vxor.u32 %v5213, 2147483648
        %v5340 = vxor.u32 %v5218, 2147483648
        %v5341 = vxor.u32 %v5223, 2147483648
        %v5342 = vxor.u32 %v5228, 2147483648
        %v5343 = vxor.u32 %v5233, 2147483648
        %v5344 = vxor.u32 %v5238, 2147483648
        %v5345 = vxor.u32 %v5243, 2147483648
        %v5346 = vxor.u32 %v5248, 2147483648
        %v5347 = vxor.u32 %v5253, 2147483648
        %v5348 = vxor.u32 %v5258, 2147483648
        %v5349 = vxor.u32 %v5263, 2147483648
        %v5350 = vxor.u32 %v5268, 2147483648
        %v5351 = vxor.u32 %v5273, 2147483648
        %v5352 = vxor.u32 %v5278, 2147483648
        %v5353 = vxor.u32 %v5283, 2147483648
        %v5354 = vxor.u32 %v5288, 2147483648
        %v5355 = vxor.u32 %v5293, 2147483648
        %v5356 = vxor.u32 %v5298, 2147483648
        %v5357 = vxor.u32 %v5303, 2147483648
        %v5358 = vxor.u32 %v5308, 2147483648
        %v5359 = vxor.u32 %v5313, 2147483648
        %v5360 = vxor.u32 %v5318, 2147483648
        %v5361 = vxor.u32 %v5323, 2147483648
        %v5362 = vxor.u32 %v5328, 2147483648
        %v5363 = vmul.f32 %v5331, 1.442695
        %v5364 = vpow.pop %v5363
        %v5365 = vmul.f32 %v5332, 1.442695
        %v5366 = vpow.pop %v5365
        %v5367 = vmul.f32 %v5333, 1.442695
        %v5368 = vpow.pop %v5367
        %v5369 = vmul.f32 %v5334, 1.442695
        %v5370 = vpow.pop %v5369
        %v5371 = vmul.f32 %v5335, 1.442695
        %v5372 = vpow.pop %v5371
        %v5373 = vmul.f32 %v5336, 1.442695
        %v5374 = vpow.pop %v5373
        %v5375 = vmul.f32 %v5337, 1.442695
        %v5376 = vpow.pop %v5375
        %v5377 = vmul.f32 %v5338, 1.442695
        %v5378 = vpow.pop %v5377
        %v5379 = vmul.f32 %v5339, 1.442695
        %v5380 = vpow.pop %v5379
        %v5381 = vmul.f32 %v5340, 1.442695
        %v5382 = vpow.pop %v5381
        %v5383 = vmul.f32 %v5341, 1.442695
        %v5384 = vpow.pop %v5383
        %v5385 = vmul.f32 %v5342, 1.442695
        %v5386 = vpow.pop %v5385
        %v5387 = vmul.f32 %v5343, 1.442695
        %v5388 = vpow.pop %v5387
        %v5389 = vmul.f32 %v5344, 1.442695
        %v5390 = vpow.pop %v5389
        %v5391 = vmul.f32 %v5345, 1.442695
        %v5392 = vpow.pop %v5391
        %v5393 = vmul.f32 %v5346, 1.442695
        %v5394 = vpow.pop %v5393
        %v5395 = vmul.f32 %v5347, 1.442695
        %v5396 = vpow.pop %v5395
        %v5397 = vmul.f32 %v5348, 1.442695
        %v5398 = vpow.pop %v5397
        %v5399 = vmul.f32 %v5349, 1.442695
        %v5400 = vpow.pop %v5399
        %v5401 = vmul.f32 %v5350, 1.442695
        %v5402 = vpow.pop %v5401
        %v5403 = vmul.f32 %v5351, 1.442695
        %v5404 = vpow.pop %v5403
        %v5405 = vmul.f32 %v5352, 1.442695
        %v5406 = vpow.pop %v5405
        %v5407 = vmul.f32 %v5353, 1.442695
        %v5408 = vpow.pop %v5407
        %v5409 = vmul.f32 %v5354, 1.442695
        %v5410 = vpow.pop %v5409
        %v5411 = vmul.f32 %v5355, 1.442695
        %v5412 = vpow.pop %v5411
        %v5413 = vmul.f32 %v5356, 1.442695
        %v5414 = vpow.pop %v5413
        %v5415 = vmul.f32 %v5357, 1.442695
        %v5416 = vpow.pop %v5415
        %v5417 = vmul.f32 %v5358, 1.442695
        %v5418 = vpow.pop %v5417
        %v5419 = vmul.f32 %v5359, 1.442695
        %v5420 = vpow.pop %v5419
        %v5421 = vmul.f32 %v5360, 1.442695
        %v5422 = vpow.pop %v5421
        %v5423 = vmul.f32 %v5361, 1.442695
        %v5424 = vpow.pop %v5423
        %v5425 = vmul.f32 %v5362, 1.442695
        %v5426 = vpow.pop %v5425
        %v5427 = vadd.f32 %v5364, 1.0
        %v5428 = vadd.f32 %v5366, 1.0
        %v5429 = vadd.f32 %v5368, 1.0
        %v5430 = vadd.f32 %v5370, 1.0
        %v5431 = vadd.f32 %v5372, 1.0
        %v5432 = vadd.f32 %v5374, 1.0
        %v5433 = vadd.f32 %v5376, 1.0
        %v5434 = vadd.f32 %v5378, 1.0
        %v5435 = vadd.f32 %v5380, 1.0
        %v5436 = vadd.f32 %v5382, 1.0
        %v5437 = vadd.f32 %v5384, 1.0
        %v5438 = vadd.f32 %v5386, 1.0
        %v5439 = vadd.f32 %v5388, 1.0
        %v5440 = vadd.f32 %v5390, 1.0
        %v5441 = vadd.f32 %v5392, 1.0
        %v5442 = vadd.f32 %v5394, 1.0
        %v5443 = vadd.f32 %v5396, 1.0
        %v5444 = vadd.f32 %v5398, 1.0
        %v5445 = vadd.f32 %v5400, 1.0
        %v5446 = vadd.f32 %v5402, 1.0
        %v5447 = vadd.f32 %v5404, 1.0
        %v5448 = vadd.f32 %v5406, 1.0
        %v5449 = vadd.f32 %v5408, 1.0
        %v5450 = vadd.f32 %v5410, 1.0
        %v5451 = vadd.f32 %v5412, 1.0
        %v5452 = vadd.f32 %v5414, 1.0
        %v5453 = vadd.f32 %v5416, 1.0
        %v5454 = vadd.f32 %v5418, 1.0
        %v5455 = vadd.f32 %v5420, 1.0
        %v5456 = vadd.f32 %v5422, 1.0
        %v5457 = vadd.f32 %v5424, 1.0
        %v5458 = vadd.f32 %v5426, 1.0
        %v5459 = vrcp.pop %v5427
        %v5460 = vmul.f32 1.0, %v5459
        %v5461 = vrcp.pop %v5428
        %v5462 = vmul.f32 1.0, %v5461
        %v5463 = vrcp.pop %v5429
        %v5464 = vmul.f32 1.0, %v5463
        %v5465 = vrcp.pop %v5430
        %v5466 = vmul.f32 1.0, %v5465
        %v5467 = vrcp.pop %v5431
        %v5468 = vmul.f32 1.0, %v5467
        %v5469 = vrcp.pop %v5432
        %v5470 = vmul.f32 1.0, %v5469
        %v5471 = vrcp.pop %v5433
        %v5472 = vmul.f32 1.0, %v5471
        %v5473 = vrcp.pop %v5434
        %v5474 = vmul.f32 1.0, %v5473
        %v5475 = vrcp.pop %v5435
        %v5476 = vmul.f32 1.0, %v5475
        %v5477 = vrcp.pop %v5436
        %v5478 = vmul.f32 1.0, %v5477
        %v5479 = vrcp.pop %v5437
        %v5480 = vmul.f32 1.0, %v5479
        %v5481 = vrcp.pop %v5438
        %v5482 = vmul.f32 1.0, %v5481
        %v5483 = vrcp.pop %v5439
        %v5484 = vmul.f32 1.0, %v5483
        %v5485 = vrcp.pop %v5440
        %v5486 = vmul.f32 1.0, %v5485
        %v5487 = vrcp.pop %v5441
        %v5488 = vmul.f32 1.0, %v5487
        %v5489 = vrcp.pop %v5442
        %v5490 = vmul.f32 1.0, %v5489
        %v5491 = vrcp.pop %v5443
        %v5492 = vmul.f32 1.0, %v5491
        %v5493 = vrcp.pop %v5444
        %v5494 = vmul.f32 1.0, %v5493
        %v5495 = vrcp.pop %v5445
        %v5496 = vmul.f32 1.0, %v5495
        %v5497 = vrcp.pop %v5446
        %v5498 = vmul.f32 1.0, %v5497
        %v5499 = vrcp.pop %v5447
        %v5500 = vmul.f32 1.0, %v5499
        %v5501 = vrcp.pop %v5448
        %v5502 = vmul.f32 1.0, %v5501
        %v5503 = vrcp.pop %v5449
        %v5504 = vmul.f32 1.0, %v5503
        %v5505 = vrcp.pop %v5450
        %v5506 = vmul.f32 1.0, %v5505
        %v5507 = vrcp.pop %v5451
        %v5508 = vmul.f32 1.0, %v5507
        %v5509 = vrcp.pop %v5452
        %v5510 = vmul.f32 1.0, %v5509
        %v5511 = vrcp.pop %v5453
        %v5512 = vmul.f32 1.0, %v5511
        %v5513 = vrcp.pop %v5454
        %v5514 = vmul.f32 1.0, %v5513
        %v5515 = vrcp.pop %v5455
        %v5516 = vmul.f32 1.0, %v5515
        %v5517 = vrcp.pop %v5456
        %v5518 = vmul.f32 1.0, %v5517
        %v5519 = vrcp.pop %v5457
        %v5520 = vmul.f32 1.0, %v5519
        %v5521 = vrcp.pop %v5458
        %v5522 = vmul.f32 1.0, %v5521
        %vm5523 = vcmask 7168
        %5524 = vst.msk [vmem:[%s668] sm:$0xff] %vm5523, %v5460
        %5525 = vst.msk [vmem:[%s668 + $0x8] sm:$0xff] %vm5523, %v5462
        %5526 = vst.msk [vmem:[%s668 + $0x10] sm:$0xff] %vm5523, %v5464
        %5527 = vst.msk [vmem:[%s668 + $0x18] sm:$0xff] %vm5523, %v5466
        %5528 = vst.msk [vmem:[%s668 + $0x20] sm:$0xff] %vm5523, %v5468
        %5529 = vst.msk [vmem:[%s668 + $0x28] sm:$0xff] %vm5523, %v5470
        %5530 = vst.msk [vmem:[%s668 + $0x30] sm:$0xff] %vm5523, %v5472
        %5531 = vst.msk [vmem:[%s668 + $0x38] sm:$0xff] %vm5523, %v5474
        %5532 = vst.msk [vmem:[%s668 + $0x40] sm:$0xff] %vm5523, %v5476
        %5533 = vst.msk [vmem:[%s668 + $0x48] sm:$0xff] %vm5523, %v5478
        %5534 = vst.msk [vmem:[%s668 + $0x50] sm:$0xff] %vm5523, %v5480
        %5535 = vst.msk [vmem:[%s668 + $0x58] sm:$0xff] %vm5523, %v5482
        %5536 = vst.msk [vmem:[%s668 + $0x60] sm:$0xff] %vm5523, %v5484
        %5537 = vst.msk [vmem:[%s668 + $0x68] sm:$0xff] %vm5523, %v5486
        %5538 = vst.msk [vmem:[%s668 + $0x70] sm:$0xff] %vm5523, %v5488
        %5539 = vst.msk [vmem:[%s668 + $0x78] sm:$0xff] %vm5523, %v5490
        %5540 = vst.msk [vmem:[%s668 + $0x80] sm:$0xff] %vm5523, %v5492
        %5541 = vst.msk [vmem:[%s668 + $0x88] sm:$0xff] %vm5523, %v5494
        %5542 = vst.msk [vmem:[%s668 + $0x90] sm:$0xff] %vm5523, %v5496
        %5543 = vst.msk [vmem:[%s668 + $0x98] sm:$0xff] %vm5523, %v5498
        %5544 = vst.msk [vmem:[%s668 + $0xa0] sm:$0xff] %vm5523, %v5500
        %5545 = vst.msk [vmem:[%s668 + $0xa8] sm:$0xff] %vm5523, %v5502
        %5546 = vst.msk [vmem:[%s668 + $0xb0] sm:$0xff] %vm5523, %v5504
        %5547 = vst.msk [vmem:[%s668 + $0xb8] sm:$0xff] %vm5523, %v5506
        %5548 = vst.msk [vmem:[%s668 + $0xc0] sm:$0xff] %vm5523, %v5508
        %5549 = vst.msk [vmem:[%s668 + $0xc8] sm:$0xff] %vm5523, %v5510
        %5550 = vst.msk [vmem:[%s668 + $0xd0] sm:$0xff] %vm5523, %v5512
        %5551 = vst.msk [vmem:[%s668 + $0xd8] sm:$0xff] %vm5523, %v5514
        %5552 = vst.msk [vmem:[%s668 + $0xe0] sm:$0xff] %vm5523, %v5516
        %5553 = vst.msk [vmem:[%s668 + $0xe8] sm:$0xff] %vm5523, %v5518
        %5554 = vst.msk [vmem:[%s668 + $0xf0] sm:$0xff] %vm5523, %v5520
        %5555 = vst.msk [vmem:[%s668 + $0xf8] sm:$0xff] %vm5523, %v5522
        %s5556 = sand.u32 %s373, 1
        %s5557 = sand.u32 %s373, 1
        %s5558 = smul.addr %s5557, 256
        %s5559 = scalar_lea.vmem [#allocation16], %s5558
        // Predicated region
        $region113: #{data_value_evaluator_forward.1} parent=79 // pred_check
          %p5560 = pneg %p383
        $region114: #{data_value_evaluator_forward.1} parent=79 // pred_check_branch
          %5562 = sbr.rel (%p5560) target = $region116
        $region115: #{data_value_evaluator_forward.1} parent=79 // pred_region
          %s5563 = smul.u32 32, %s35
          %s5564 = ssub.s32 38, %s5563
          %p5565 = scmp.lt.s32.totalorder %s5564, 32
          %s5566 = scalar_select %p5565, %s5564, 32
          %s5567 = smul.u32 128, %s5566
          %p5568 = scmp.ne.s32.totalorder 0, %s5567
          %s5569 = smul.addr %s5563, 8
          %s5570 = scalar_lea.vmem %s15, %s5569
          // Predicated region
          $region117: #{data_value_evaluator_forward.1} parent=115 // pred_check
            %p5571 = pneg %p5568
          $region118: #{data_value_evaluator_forward.1} parent=115 // pred_check_branch
            %5573 = sbr.rel (%p5571) target = $region120
          $region119: #{data_value_evaluator_forward.1} parent=115 // pred_region
            // Predicated region
            $region121: #{data_value_evaluator_forward.1} parent=119 // pred_check
              _
            $region122: #{data_value_evaluator_forward.1} parent=119 // pred_check_branch
              %5575 = sbr.rel (0) target = $region124
            $region123: #{data_value_evaluator_forward.1} parent=119 // pred_region
              // Predicated region
              $region143: #{data_value_evaluator_forward.1} parent=123 // pred_check
                _
              $region144: #{data_value_evaluator_forward.1} parent=123 // pred_check_branch
                %5686 = sbr.rel (0) target = $region146
              $region145: #{data_value_evaluator_forward.1} parent=123 // pred_region
                %s5687 = sshrl.u32 %s5566, 5
                // While loop
                $region147: #{data_value_evaluator_forward.1} parent=145 // loop_pre_header
                  _
                $region148: #{data_value_evaluator_forward.1} parent=145 // loop_header
                  %s5689 = sphi 0, %s5691
                  %p5690 = scmp.ge.s32.totalorder %s5689, %s5687
                  %s5694 = sphi 0, %s5763
                  %s5695 = sphi %s5559, %s5766
                  %s5696 = sphi %s5570, %s5767
                $region149: #{data_value_evaluator_forward.1} parent=145 // loop_header_branch
                  %5693 = sbr.rel (%p5690) target = $region153
                $region150: #{data_value_evaluator_forward.1} parent=145 // loop_body
                  %v5697 = vld [vmem:[%s5695] sm:$0xff]
                  %5698 = vst [vmem:[%s5696] sm:$0xff] %v5697
                  %v5699 = vld [vmem:[%s5695 + $0x8] sm:$0xff]
                  %5700 = vst [vmem:[%s5696 + $0x8] sm:$0xff] %v5699
                  %v5701 = vld [vmem:[%s5695 + $0x10] sm:$0xff]
                  %5702 = vst [vmem:[%s5696 + $0x10] sm:$0xff] %v5701
                  %v5703 = vld [vmem:[%s5695 + $0x18] sm:$0xff]
                  %5704 = vst [vmem:[%s5696 + $0x18] sm:$0xff] %v5703
                  %v5705 = vld [vmem:[%s5695 + $0x20] sm:$0xff]
                  %5706 = vst [vmem:[%s5696 + $0x20] sm:$0xff] %v5705
                  %v5707 = vld [vmem:[%s5695 + $0x28] sm:$0xff]
                  %5708 = vst [vmem:[%s5696 + $0x28] sm:$0xff] %v5707
                  %v5709 = vld [vmem:[%s5695 + $0x30] sm:$0xff]
                  %5710 = vst [vmem:[%s5696 + $0x30] sm:$0xff] %v5709
                  %v5711 = vld [vmem:[%s5695 + $0x38] sm:$0xff]
                  %5712 = vst [vmem:[%s5696 + $0x38] sm:$0xff] %v5711
                  %v5713 = vld [vmem:[%s5695 + $0x40] sm:$0xff]
                  %5714 = vst [vmem:[%s5696 + $0x40] sm:$0xff] %v5713
                  %v5715 = vld [vmem:[%s5695 + $0x48] sm:$0xff]
                  %5716 = vst [vmem:[%s5696 + $0x48] sm:$0xff] %v5715
                  %v5717 = vld [vmem:[%s5695 + $0x50] sm:$0xff]
                  %5718 = vst [vmem:[%s5696 + $0x50] sm:$0xff] %v5717
                  %v5719 = vld [vmem:[%s5695 + $0x58] sm:$0xff]
                  %5720 = vst [vmem:[%s5696 + $0x58] sm:$0xff] %v5719
                  %v5721 = vld [vmem:[%s5695 + $0x60] sm:$0xff]
                  %5722 = vst [vmem:[%s5696 + $0x60] sm:$0xff] %v5721
                  %v5723 = vld [vmem:[%s5695 + $0x68] sm:$0xff]
                  %5724 = vst [vmem:[%s5696 + $0x68] sm:$0xff] %v5723
                  %v5725 = vld [vmem:[%s5695 + $0x70] sm:$0xff]
                  %5726 = vst [vmem:[%s5696 + $0x70] sm:$0xff] %v5725
                  %v5727 = vld [vmem:[%s5695 + $0x78] sm:$0xff]
                  %5728 = vst [vmem:[%s5696 + $0x78] sm:$0xff] %v5727
                  %v5729 = vld [vmem:[%s5695 + $0x80] sm:$0xff]
                  %5730 = vst [vmem:[%s5696 + $0x80] sm:$0xff] %v5729
                  %v5731 = vld [vmem:[%s5695 + $0x88] sm:$0xff]
                  %5732 = vst [vmem:[%s5696 + $0x88] sm:$0xff] %v5731
                  %v5733 = vld [vmem:[%s5695 + $0x90] sm:$0xff]
                  %5734 = vst [vmem:[%s5696 + $0x90] sm:$0xff] %v5733
                  %v5735 = vld [vmem:[%s5695 + $0x98] sm:$0xff]
                  %5736 = vst [vmem:[%s5696 + $0x98] sm:$0xff] %v5735
                  %v5737 = vld [vmem:[%s5695 + $0xa0] sm:$0xff]
                  %5738 = vst [vmem:[%s5696 + $0xa0] sm:$0xff] %v5737
                  %v5739 = vld [vmem:[%s5695 + $0xa8] sm:$0xff]
                  %5740 = vst [vmem:[%s5696 + $0xa8] sm:$0xff] %v5739
                  %v5741 = vld [vmem:[%s5695 + $0xb0] sm:$0xff]
                  %5742 = vst [vmem:[%s5696 + $0xb0] sm:$0xff] %v5741
                  %v5743 = vld [vmem:[%s5695 + $0xb8] sm:$0xff]
                  %5744 = vst [vmem:[%s5696 + $0xb8] sm:$0xff] %v5743
                  %v5745 = vld [vmem:[%s5695 + $0xc0] sm:$0xff]
                  %5746 = vst [vmem:[%s5696 + $0xc0] sm:$0xff] %v5745
                  %v5747 = vld [vmem:[%s5695 + $0xc8] sm:$0xff]
                  %5748 = vst [vmem:[%s5696 + $0xc8] sm:$0xff] %v5747
                  %v5749 = vld [vmem:[%s5695 + $0xd0] sm:$0xff]
                  %5750 = vst [vmem:[%s5696 + $0xd0] sm:$0xff] %v5749
                  %v5751 = vld [vmem:[%s5695 + $0xd8] sm:$0xff]
                  %5752 = vst [vmem:[%s5696 + $0xd8] sm:$0xff] %v5751
                  %v5753 = vld [vmem:[%s5695 + $0xe0] sm:$0xff]
                  %5754 = vst [vmem:[%s5696 + $0xe0] sm:$0xff] %v5753
                  %v5755 = vld [vmem:[%s5695 + $0xe8] sm:$0xff]
                  %5756 = vst [vmem:[%s5696 + $0xe8] sm:$0xff] %v5755
                  %v5757 = vld [vmem:[%s5695 + $0xf0] sm:$0xff]
                  %5758 = vst [vmem:[%s5696 + $0xf0] sm:$0xff] %v5757
                  %v5759 = vld [vmem:[%s5695 + $0xf8] sm:$0xff]
                  %5760 = vst [vmem:[%s5696 + $0xf8] sm:$0xff] %v5759
                  %s5761 = sadd.s32 1, %s5694
                  %p5762 = scmp.ge.s32.totalorder %s5761, %s5687
                  %s5763 = scalar_select %p5762, 0, %s5761
                  %s5764 = smul.u32 %s5763, 256
                  %s5765 = smul.u32 %s5763, 256
                  %s5766 = scalar_lea.vmem %s5559, %s5764 [#allocation16]
                  %s5767 = scalar_lea.vmem %s5570, %s5765
                $region151: #{data_value_evaluator_forward.1} parent=145 // loop_footer
                  %s5691 = sadd.s32 %s5689, 1
                $region152: #{data_value_evaluator_forward.1} parent=145 // loop_footer_branch
                  %5688 = sbr.rel target = $region148
                $region153: #{data_value_evaluator_forward.1} parent=145 // loop_exit
                  _
                %s5768 = sshrl.u32 %s5566, 5
                %s5769 = sand.u32 %s5566, 31
                %s5770 = smul.u32 %s5768, 32
                %s5771 = smul.u32 8, %s5770
                %s5772 = scalar_lea.vmem %s5559, %s5771 [#allocation16]
                %s5773 = smul.u32 8, %s5770
                %s5774 = scalar_lea.vmem %s5570, %s5773
                // While loop
                $region154: #{data_value_evaluator_forward.1} parent=145 // loop_pre_header
                  _
                $region155: #{data_value_evaluator_forward.1} parent=145 // loop_header
                  %s5776 = sphi 0, %s5778
                  %p5777 = scmp.ge.s32.totalorder %s5776, %s5769
                  %s5781 = sphi 0, %s5788
                  %s5782 = sphi %s5772, %s5791
                  %s5783 = sphi %s5774, %s5792
                $region156: #{data_value_evaluator_forward.1} parent=145 // loop_header_branch
                  %5780 = sbr.rel (%p5777) target = $region160
                $region157: #{data_value_evaluator_forward.1} parent=145 // loop_body
                  %v5784 = vld [vmem:[%s5782] sm:$0xff]
                  %5785 = vst [vmem:[%s5783] sm:$0xff] %v5784
                  %s5786 = sadd.s32 1, %s5781
                  %p5787 = scmp.ge.s32.totalorder %s5786, %s5769
                  %s5788 = scalar_select %p5787, 0, %s5786
                  %s5789 = smul.u32 %s5788, 8
                  %s5790 = smul.u32 %s5788, 8
                  %s5791 = scalar_lea.vmem %s5772, %s5789 [#allocation16]
                  %s5792 = scalar_lea.vmem %s5774, %s5790
                $region158: #{data_value_evaluator_forward.1} parent=145 // loop_footer
                  %s5778 = sadd.s32 %s5776, 1
                $region159: #{data_value_evaluator_forward.1} parent=145 // loop_footer_branch
                  %5775 = sbr.rel target = $region155
                $region160: #{data_value_evaluator_forward.1} parent=145 // loop_exit
                  _
              $region146: #{data_value_evaluator_forward.1} parent=123 // pred_fallthru
                _
              // Predicated region
              $region161: #{data_value_evaluator_forward.1} parent=123 // pred_check
                _
              $region162: #{data_value_evaluator_forward.1} parent=123 // pred_check_branch
                %5794 = sbr.rel target = $region164
              $region163: #{data_value_evaluator_forward.1} parent=123 // pred_region
                _
              $region164: #{data_value_evaluator_forward.1} parent=123 // pred_fallthru
                _
            $region124: #{data_value_evaluator_forward.1} parent=119 // pred_fallthru
              _
            // Predicated region
            $region125: #{data_value_evaluator_forward.1} parent=119 // pred_check
              _
            $region126: #{data_value_evaluator_forward.1} parent=119 // pred_check_branch
              %5577 = sbr.rel target = $region128
            $region127: #{data_value_evaluator_forward.1} parent=119 // pred_region
              %s5579 = sshrl.u32 %s5566, 5
              // While loop
              $region129: #{data_value_evaluator_forward.1} parent=127 // loop_pre_header
                _
              $region130: #{data_value_evaluator_forward.1} parent=127 // loop_header
                %s5581 = sphi 0, %s5583
                %p5582 = scmp.ge.s32.totalorder %s5581, %s5579
                %s5586 = sphi 0, %s5655
                %s5587 = sphi %s5559, %s5658
                %s5588 = sphi %s5570, %s5659
              $region131: #{data_value_evaluator_forward.1} parent=127 // loop_header_branch
                %5585 = sbr.rel (%p5582) target = $region135
              $region132: #{data_value_evaluator_forward.1} parent=127 // loop_body
                %v5589 = vld [vmem:[%s5587] sm:$0xff]
                %5590 = vst [vmem:[%s5588] sm:$0xff] %v5589
                %v5591 = vld [vmem:[%s5587 + $0x8] sm:$0xff]
                %5592 = vst [vmem:[%s5588 + $0x8] sm:$0xff] %v5591
                %v5593 = vld [vmem:[%s5587 + $0x10] sm:$0xff]
                %5594 = vst [vmem:[%s5588 + $0x10] sm:$0xff] %v5593
                %v5595 = vld [vmem:[%s5587 + $0x18] sm:$0xff]
                %5596 = vst [vmem:[%s5588 + $0x18] sm:$0xff] %v5595
                %v5597 = vld [vmem:[%s5587 + $0x20] sm:$0xff]
                %5598 = vst [vmem:[%s5588 + $0x20] sm:$0xff] %v5597
                %v5599 = vld [vmem:[%s5587 + $0x28] sm:$0xff]
                %5600 = vst [vmem:[%s5588 + $0x28] sm:$0xff] %v5599
                %v5601 = vld [vmem:[%s5587 + $0x30] sm:$0xff]
                %5602 = vst [vmem:[%s5588 + $0x30] sm:$0xff] %v5601
                %v5603 = vld [vmem:[%s5587 + $0x38] sm:$0xff]
                %5604 = vst [vmem:[%s5588 + $0x38] sm:$0xff] %v5603
                %v5605 = vld [vmem:[%s5587 + $0x40] sm:$0xff]
                %5606 = vst [vmem:[%s5588 + $0x40] sm:$0xff] %v5605
                %v5607 = vld [vmem:[%s5587 + $0x48] sm:$0xff]
                %5608 = vst [vmem:[%s5588 + $0x48] sm:$0xff] %v5607
                %v5609 = vld [vmem:[%s5587 + $0x50] sm:$0xff]
                %5610 = vst [vmem:[%s5588 + $0x50] sm:$0xff] %v5609
                %v5611 = vld [vmem:[%s5587 + $0x58] sm:$0xff]
                %5612 = vst [vmem:[%s5588 + $0x58] sm:$0xff] %v5611
                %v5613 = vld [vmem:[%s5587 + $0x60] sm:$0xff]
                %5614 = vst [vmem:[%s5588 + $0x60] sm:$0xff] %v5613
                %v5615 = vld [vmem:[%s5587 + $0x68] sm:$0xff]
                %5616 = vst [vmem:[%s5588 + $0x68] sm:$0xff] %v5615
                %v5617 = vld [vmem:[%s5587 + $0x70] sm:$0xff]
                %5618 = vst [vmem:[%s5588 + $0x70] sm:$0xff] %v5617
                %v5619 = vld [vmem:[%s5587 + $0x78] sm:$0xff]
                %5620 = vst [vmem:[%s5588 + $0x78] sm:$0xff] %v5619
                %v5621 = vld [vmem:[%s5587 + $0x80] sm:$0xff]
                %5622 = vst [vmem:[%s5588 + $0x80] sm:$0xff] %v5621
                %v5623 = vld [vmem:[%s5587 + $0x88] sm:$0xff]
                %5624 = vst [vmem:[%s5588 + $0x88] sm:$0xff] %v5623
                %v5625 = vld [vmem:[%s5587 + $0x90] sm:$0xff]
                %5626 = vst [vmem:[%s5588 + $0x90] sm:$0xff] %v5625
                %v5627 = vld [vmem:[%s5587 + $0x98] sm:$0xff]
                %5628 = vst [vmem:[%s5588 + $0x98] sm:$0xff] %v5627
                %v5629 = vld [vmem:[%s5587 + $0xa0] sm:$0xff]
                %5630 = vst [vmem:[%s5588 + $0xa0] sm:$0xff] %v5629
                %v5631 = vld [vmem:[%s5587 + $0xa8] sm:$0xff]
                %5632 = vst [vmem:[%s5588 + $0xa8] sm:$0xff] %v5631
                %v5633 = vld [vmem:[%s5587 + $0xb0] sm:$0xff]
                %5634 = vst [vmem:[%s5588 + $0xb0] sm:$0xff] %v5633
                %v5635 = vld [vmem:[%s5587 + $0xb8] sm:$0xff]
                %5636 = vst [vmem:[%s5588 + $0xb8] sm:$0xff] %v5635
                %v5637 = vld [vmem:[%s5587 + $0xc0] sm:$0xff]
                %5638 = vst [vmem:[%s5588 + $0xc0] sm:$0xff] %v5637
                %v5639 = vld [vmem:[%s5587 + $0xc8] sm:$0xff]
                %5640 = vst [vmem:[%s5588 + $0xc8] sm:$0xff] %v5639
                %v5641 = vld [vmem:[%s5587 + $0xd0] sm:$0xff]
                %5642 = vst [vmem:[%s5588 + $0xd0] sm:$0xff] %v5641
                %v5643 = vld [vmem:[%s5587 + $0xd8] sm:$0xff]
                %5644 = vst [vmem:[%s5588 + $0xd8] sm:$0xff] %v5643
                %v5645 = vld [vmem:[%s5587 + $0xe0] sm:$0xff]
                %5646 = vst [vmem:[%s5588 + $0xe0] sm:$0xff] %v5645
                %v5647 = vld [vmem:[%s5587 + $0xe8] sm:$0xff]
                %5648 = vst [vmem:[%s5588 + $0xe8] sm:$0xff] %v5647
                %v5649 = vld [vmem:[%s5587 + $0xf0] sm:$0xff]
                %5650 = vst [vmem:[%s5588 + $0xf0] sm:$0xff] %v5649
                %v5651 = vld [vmem:[%s5587 + $0xf8] sm:$0xff]
                %5652 = vst [vmem:[%s5588 + $0xf8] sm:$0xff] %v5651
                %s5653 = sadd.s32 1, %s5586
                %p5654 = scmp.ge.s32.totalorder %s5653, %s5579
                %s5655 = scalar_select %p5654, 0, %s5653
                %s5656 = smul.u32 %s5655, 256
                %s5657 = smul.u32 %s5655, 256
                %s5658 = scalar_lea.vmem %s5559, %s5656 [#allocation16]
                %s5659 = scalar_lea.vmem %s5570, %s5657
              $region133: #{data_value_evaluator_forward.1} parent=127 // loop_footer
                %s5583 = sadd.s32 %s5581, 1
              $region134: #{data_value_evaluator_forward.1} parent=127 // loop_footer_branch
                %5580 = sbr.rel target = $region130
              $region135: #{data_value_evaluator_forward.1} parent=127 // loop_exit
                _
              %s5660 = sshrl.u32 %s5566, 5
              %s5661 = sand.u32 %s5566, 31
              %s5662 = smul.u32 %s5660, 32
              %s5663 = smul.u32 8, %s5662
              %s5664 = scalar_lea.vmem %s5559, %s5663 [#allocation16]
              %s5665 = smul.u32 8, %s5662
              %s5666 = scalar_lea.vmem %s5570, %s5665
              // While loop
              $region136: #{data_value_evaluator_forward.1} parent=127 // loop_pre_header
                _
              $region137: #{data_value_evaluator_forward.1} parent=127 // loop_header
                %s5668 = sphi 0, %s5670
                %p5669 = scmp.ge.s32.totalorder %s5668, %s5661
                %s5673 = sphi 0, %s5680
                %s5674 = sphi %s5664, %s5683
                %s5675 = sphi %s5666, %s5684
              $region138: #{data_value_evaluator_forward.1} parent=127 // loop_header_branch
                %5672 = sbr.rel (%p5669) target = $region142
              $region139: #{data_value_evaluator_forward.1} parent=127 // loop_body
                %v5676 = vld [vmem:[%s5674] sm:$0xff]
                %5677 = vst [vmem:[%s5675] sm:$0xff] %v5676
                %s5678 = sadd.s32 1, %s5673
                %p5679 = scmp.ge.s32.totalorder %s5678, %s5661
                %s5680 = scalar_select %p5679, 0, %s5678
                %s5681 = smul.u32 %s5680, 8
                %s5682 = smul.u32 %s5680, 8
                %s5683 = scalar_lea.vmem %s5664, %s5681 [#allocation16]
                %s5684 = scalar_lea.vmem %s5666, %s5682
              $region140: #{data_value_evaluator_forward.1} parent=127 // loop_footer
                %s5670 = sadd.s32 %s5668, 1
              $region141: #{data_value_evaluator_forward.1} parent=127 // loop_footer_branch
                %5667 = sbr.rel target = $region137
              $region142: #{data_value_evaluator_forward.1} parent=127 // loop_exit
                _
            $region128: #{data_value_evaluator_forward.1} parent=119 // pred_fallthru
              _
          $region120: #{data_value_evaluator_forward.1} parent=115 // pred_fallthru
            _
          %5795 = vnop
        $region116: #{data_value_evaluator_forward.1} parent=79 // pred_fallthru
          _
      $region80: #{data_value_evaluator_forward.1} parent=5 // pred_fallthru
        _
      %p5796 = scmp.le.s32.totalorder 2, %s30
      // Predicated region
      $region165: #{data_value_evaluator_forward.1} parent=5 // pred_check
        %p5797 = pneg %p5796
      $region166: #{data_value_evaluator_forward.1} parent=5 // pred_check_branch
        %5799 = sbr.rel (%p5797) target = $region168
      $region167: #{data_value_evaluator_forward.1} parent=5 // pred_region
        %s5800 = ssub.s32 %s30, 2
        // Predicated region
        $region169: #{data_value_evaluator_forward.1} parent=167 // pred_check
          %p5801 = pneg %p389
        $region170: #{data_value_evaluator_forward.1} parent=167 // pred_check_branch
          %5803 = sbr.rel (%p5801) target = $region172
        $region171: #{data_value_evaluator_forward.1} parent=167 // pred_region
          %s5804 = sand.u32 %s374, 1
          %s5805 = sand.u32 %s374, 1
          %s5806 = smul.addr %s5805, 256
          %s5807 = scalar_lea.vmem [#allocation16], %s5806
        $region172: #{data_value_evaluator_forward.1} parent=167 // pred_fallthru
          _
      $region168: #{data_value_evaluator_forward.1} parent=5 // pred_fallthru
        _
    $region6: #{data_value_evaluator_forward.1} parent=1 // loop_footer
      %s34 = sadd.s32 1, %s30
    $region7: #{data_value_evaluator_forward.1} parent=1 // loop_footer_branch
      %29 = sbr.rel target = $region3
    $region8: #{data_value_evaluator_forward.1} parent=1 // loop_exit
      _
    %5808 = vsyncpa [#allocation4], 1
    %s5809 = scalar_lea.sflag [#allocation4], 1
    %5810 = vsyncpa %s5809, 1
    %5811 = vsyncpa [#allocation6], 1
    %5812 = vsyncpa [#allocation9], 1
    %5813 = vsyncpa [#allocation12], 1
    %5814 = vsyncpa [#allocation15], 1

</llo_original>
